<compile_context>
chip_gen: v6e
topology: v6e:2x2x1
jax: 0.10.0
libtpu: 0.0.40
codegen_flags: <defaults>
</compile_context>

<pallas_src>
import functools
import math

import jax
import jax.numpy as jnp
from jax import lax
from jax.experimental import pallas as pl
from jax.experimental.pallas import tpu as pltpu


# ---------------------------------------------------------------------------
# Kernel
# ---------------------------------------------------------------------------
def _decoder_block_kernel(*refs, num_heads, dq, dk, dv, has_mask, eps):
    if has_mask:
        y_ref, enc_ref, mask_ref = refs[:3]
        rest = refs[3:]
    else:
        y_ref, enc_ref = refs[:2]
        mask_ref = None
        rest = refs[2:]

    (w_qkv1_ref, b_qkv1_ref, wo1_ref, bo1_ref,
     w_q2_ref, b_q2_ref, w_kv2_ref, b_kv2_ref, wo2_ref, bo2_ref,
     w_ff1_ref, b_ff1_ref, w_ff2_ref, b_ff2_ref,
     ln_g_ref, ln_b_ref, out_ref) = rest

    H = num_heads
    Hdq, Hdk, Hdv = H * dq, H * dk, H * dv
    scale = 1.0 / math.sqrt(dk)

    y = y_ref[...]          # (S, E)     decoder tokens of this batch element
    enc = enc_ref[...]      # (S_enc, E) encoder tokens of this batch element
    gamma = ln_g_ref[...]   # (1, E)
    beta = ln_b_ref[...]    # (1, E)

    def layer_norm(x):
        mu = jnp.mean(x, axis=-1, keepdims=True)
        xc = x - mu
        var = jnp.mean(xc * xc, axis=-1, keepdims=True)
        return xc * lax.rsqrt(var + eps) * gamma + beta

    def split_heads(x2d, d):
        # (S, H*d) head-contiguous columns -> (H, S, d), leading head axis.
        return jnp.stack([x2d[:, h * d:(h + 1) * d] for h in range(H)], axis=0)

    def attention(qh, kh, vh, wo3, bo_row, mask2d):
        # qh: (H, Sq, dq)  kh: (H, Sk, dk)  vh: (H, Sk, dv)  wo3: (H, dv, E)
        # Head-batched scores; contract the last dims (no explicit transpose of K).
        energy = lax.dot_general(qh, kh, (((2,), (2,)), ((0,), (0,))),
                                 preferred_element_type=jnp.float32)   # (H, Sq, Sk)
        if mask2d is not None:
            energy = jnp.where(mask2d[None, :, :] == 0.0, -1e20, energy)
        s = energy * scale
        p = jnp.exp(s - jnp.max(s, axis=-1, keepdims=True))
        l = jnp.sum(p, axis=-1, keepdims=True)                         # (H, Sq, 1)
        ctx = lax.dot_general(p, vh, (((2,), (1,)), ((0,), (0,))),
                              preferred_element_type=jnp.float32)      # (H, Sq, dv)
        # Normalize after the P@V matmul (Sq*dv multiplies instead of Sq*Sk).
        # approx=True would go to the EUP for free but kept exact for f32 tolerances.
        ctx = ctx * pl.reciprocal(l, approx=False)
        # Output projection as a head-batched matmul + leading-axis sum (no concat).
        proj = lax.dot_general(ctx, wo3, (((2,), (1,)), ((0,), (0,))),
                               preferred_element_type=jnp.float32)     # (H, Sq, E)
        return jnp.sum(proj, axis=0) + bo_row                          # (Sq, E)

    # -------- 1. masked multi-head self-attention + residual + LN --------
    qkv = jnp.dot(y, w_qkv1_ref[...],
                  preferred_element_type=jnp.float32) + b_qkv1_ref[...]  # (S, 3*H*d)
    q1 = split_heads(qkv[:, :Hdq], dq)
    k1 = split_heads(qkv[:, Hdq:Hdq + Hdk], dk)
    v1 = split_heads(qkv[:, Hdq + Hdk:], dv)
    mask2d = mask_ref[...] if has_mask else None
    sa = attention(q1, k1, v1, wo1_ref[...], bo1_ref[...], mask2d)
    x = layer_norm(y + sa)

    # -------- 2. cross multi-head attention (K/V from encoder) + residual + LN ----
    q2 = split_heads(jnp.dot(x, w_q2_ref[...],
                             preferred_element_type=jnp.float32) + b_q2_ref[...], dq)
    kv = jnp.dot(enc, w_kv2_ref[...],
                 preferred_element_type=jnp.float32) + b_kv2_ref[...]    # (S_enc, 2*H*d)
    k2 = split_heads(kv[:, :Hdk], dk)
    v2 = split_heads(kv[:, Hdk:], dv)
    ca = attention(q2, k2, v2, wo2_ref[...], bo2_ref[...], None)
    x = layer_norm(x + ca)

    # -------- 3. feed-forward (E -> 4E -> E) + residual + LN --------
    h = jnp.maximum(jnp.dot(x, w_ff1_ref[...],
                            preferred_element_type=jnp.float32) + b_ff1_ref[...], 0.0)
    ff = jnp.dot(h, w_ff2_ref[...],
                 preferred_element_type=jnp.float32) + b_ff2_ref[...]
    x = layer_norm(x + ff)

    out_ref[...] = x.astype(out_ref.dtype)


# ---------------------------------------------------------------------------
# One-time weight preparation (hoisted out of the per-call path)
# ---------------------------------------------------------------------------
def prepare_decoder_params(params, num_heads):
    """torch-layout params -> kernel-layout weights.

    params = (masked-MHA: wq,bq,wk,bk,wv,bv,wo,bo,
              cross-MHA : wq,bq,wk,bk,wv,bv,wo,bo,
              FF        : w1,b1,w2,b2,
              LN        : gamma,beta)
    torch Linear weights are (out, in); MHA head i uses projection columns i::num_heads
    (torch reshapes the projection to (B, S, d, H) and indexes the trailing head axis).
    """
    (m_wq, m_bq, m_wk, m_bk, m_wv, m_bv, m_wo, m_bo,
     c_wq, c_bq, c_wk, c_bk, c_wv, c_bv, c_wo, c_bo,
     f_w1, f_b1, f_w2, f_b2, ln_g, ln_b) = params

    E = m_wq.shape[1]
    dq = m_wq.shape[0] // num_heads
    dk = m_wk.shape[0] // num_heads
    dv = m_wv.shape[0] // num_heads

    def group_heads(w, b, d):
        # new column h*d + t  <-  torch projection column t*num_heads + h
        cols = (jnp.arange(num_heads)[:, None]
                + num_heads * jnp.arange(d)[None, :]).reshape(-1)
        return jnp.transpose(w[cols, :]), b[cols][None, :]   # (E, H*d), (1, H*d)

    def prep_mha(wq, bq, wk, bk, wv, bv, wo, bo):
        wq_g, bq_g = group_heads(wq, bq, dq)
        wk_g, bk_g = group_heads(wk, bk, dk)
        wv_g, bv_g = group_heads(wv, bv, dv)
        wo_g = jnp.transpose(wo).reshape(num_heads, dv, E)    # (H, dv, E) head-major rows
        bo_g = bo[None, :]                                    # (1, E)
        return wq_g, bq_g, wk_g, bk_g, wv_g, bv_g, wo_g, bo_g

    m = prep_mha(m_wq, m_bq, m_wk, m_bk, m_wv, m_bv, m_wo, m_bo)
    c = prep_mha(c_wq, c_bq, c_wk, c_bk, c_wv, c_bv, c_wo, c_bo)

    w_qkv1 = jnp.concatenate([m[0], m[2], m[4]], axis=1)      # (E, 3*H*d) fused QKV
    b_qkv1 = jnp.concatenate([m[1], m[3], m[5]], axis=1)
    w_q2, b_q2 = c[0], c[1]
    w_kv2 = jnp.concatenate([c[2], c[4]], axis=1)             # (E, 2*H*d) fused KV
    b_kv2 = jnp.concatenate([c[3], c[5]], axis=1)

    weights = (w_qkv1, b_qkv1, m[6], m[7],
               w_q2, b_q2, w_kv2, b_kv2, c[6], c[7],
               jnp.transpose(f_w1), f_b1[None, :],
               jnp.transpose(f_w2), f_b2[None, :],
               ln_g[None, :], ln_b[None, :])
    return jax.tree_util.tree_map(jnp.asarray, weights), (dq, dk, dv)


# ---------------------------------------------------------------------------
# Wrapper
# ---------------------------------------------------------------------------
def transformer_decoder_block_pallas(encoder_embedding, output_embedding,
                                     prepped_weights, dims, num_heads, mask=None):
    dq, dk, dv = dims
    B, S, E = output_embedding.shape
    _, S_enc, _ = encoder_embedding.shape
    has_mask = mask is not None

    kernel = functools.partial(_decoder_block_kernel, num_heads=num_heads,
                               dq=dq, dk=dk, dv=dv, has_mask=has_mask, eps=1e-5)

    def batch_spec(s_len, width):
        # One batch element per grid step; leading batch dim squeezed away.
        return pl.BlockSpec((None, s_len, width), lambda b: (b, 0, 0))

    def full_spec(arr):
        # Grid-invariant whole-array block (weights): DMA'd once, reused every step.
        nd = arr.ndim
        return pl.BlockSpec(arr.shape, lambda b, _nd=nd: (0,) * _nd)

    inputs = [output_embedding, encoder_embedding]
    in_specs = [batch_spec(S, E), batch_spec(S_enc, E)]
    if has_mask:
        inputs.append(mask.astype(jnp.float32))
        in_specs.append(batch_spec(S, S))
    inputs.extend(prepped_weights)
    in_specs.extend(full_spec(w) for w in prepped_weights)

    return pl.pallas_call(
        kernel,
        out_shape=jax.ShapeDtypeStruct((B, S, E), output_embedding.dtype),
        grid_spec=pltpu.PrefetchScalarGridSpec(
            num_scalar_prefetch=0,
            grid=(B,),
            in_specs=in_specs,
            out_specs=pl.BlockSpec((None, S, E), lambda b: (b, 0, 0)),
        ),
        compiler_params=pltpu.CompilerParams(
            dimension_semantics=("parallel",)),
    )(*inputs)


# ---------------------------------------------------------------------------
# Plain-JAX reference (mirrors the torch forward exactly) for verification
# ---------------------------------------------------------------------------
def _mha_ref(q, k, v, p, num_heads, mask=None):
    wq, bq, wk, bk, wv, bv, wo, bo = p
    B, Sq, E = q.shape
    Sk = k.shape[1]
    dq = wq.shape[0] // num_heads
    dk = wk.shape[0] // num_heads
    dv = wv.shape[0] // num_heads
    yq = (q @ wq.T + bq).reshape(B, Sq, dq, num_heads)
    yk = (k @ wk.T + bk).reshape(B, Sk, dk, num_heads)
    yv = (v @ wv.T + bv).reshape(B, Sk, dv, num_heads)
    scale = 1.0 / math.sqrt(dk)
    outs = []
    for i in range(num_heads):
        qi, ki, vi = yq[..., i], yk[..., i], yv[..., i]
        energy = jnp.einsum('bqd,bkd->bqk', qi, ki)
        if mask is not None:
            energy = jnp.where(mask == 0, -1e20, energy)
        attn = jax.nn.softmax(energy * scale, axis=-1)
        outs.append(jnp.einsum('bqk,bkd->bqd', attn, vi))
    return jnp.concatenate(outs, axis=-1) @ wo.T + bo


def transformer_decoder_block_ref(encoder_embedding, output_embedding, params,
                                  num_heads, mask=None, eps=1e-5):
    p_masked = params[0:8]
    p_cross = params[8:16]
    f_w1, f_b1, f_w2, f_b2, ln_g, ln_b = params[16:22]

    def layer_norm(x):
        mu = jnp.mean(x, axis=-1, keepdims=True)
        var = jnp.mean((x - mu) ** 2, axis=-1, keepdims=True)
        return (x - mu) / jnp.sqrt(var + eps) * ln_g + ln_b

    y = output_embedding
    x = layer_norm(y + _mha_ref(y, y, y, p_masked, num_heads, mask))
    x = layer_norm(x + _mha_ref(x, encoder_embedding, encoder_embedding, p_cross, num_heads))
    ff = jnp.maximum(x @ f_w1.T + f_b1, 0.0) @ f_w2.T + f_b2
    x = layer_norm(x + ff)
    return x


# ---------------------------------------------------------------------------
# Test
# ---------------------------------------------------------------------------
if __name__ == "__main__":
    B, S, E, H = 2, 8, 32, 4            # per-head dim = E // H = 8
    d = E // H

    key = jax.random.PRNGKey(0)
    k_iter = iter(jax.random.split(key, 32))

    def linear_params(out_dim, in_dim):
        bound = 1.0 / math.sqrt(in_dim)
        w = jax.random.uniform(next(k_iter), (out_dim, in_dim), jnp.float32, -bound, bound)
        b = jax.random.uniform(next(k_iter), (out_dim,), jnp.float32, -bound, bound)
        return w, b

    def mha_params():
        wq, bq = linear_params(H * d, E)
        wk, bk = linear_params(H * d, E)
        wv, bv = linear_params(H * d, E)
        wo, bo = linear_params(E, H * d)
        return (wq, bq, wk, bk, wv, bv, wo, bo)

    masked_p = mha_params()
    cross_p = mha_params()
    f_w1, f_b1 = linear_params(4 * E, E)
    f_w2, f_b2 = linear_params(E, 4 * E)
    ln_g = 1.0 + 0.1 * jax.random.normal(next(k_iter), (E,), jnp.float32)
    ln_b = 0.1 * jax.random.normal(next(k_iter), (E,), jnp.float32)

    params = (*masked_p, *cross_p, f_w1, f_b1, f_w2, f_b2, ln_g, ln_b)

    enc = jax.random.normal(next(k_iter), (B, S, E), jnp.float32)   # encoder embedding
    dec = jax.random.normal(next(k_iter), (B, S, E), jnp.float32)   # output embedding
    causal = jnp.broadcast_to(jnp.tril(jnp.ones((S, S), jnp.float32)), (B, S, S))

    prepped, dims = prepare_decoder_params(params, H)   # one-time, not per forward

    out_masked = transformer_decoder_block_pallas(enc, dec, prepped, dims, H, mask=causal)
    out_nomask = transformer_decoder_block_pallas(enc, dec, prepped, dims, H, mask=None)
    jax.block_until_ready((out_masked, out_nomask))

    ref_masked = transformer_decoder_block_ref(enc, dec, params, H, mask=causal)
    ref_nomask = transformer_decoder_block_ref(enc, dec, params, H, mask=None)

    assert out_masked.shape == (B, S, E)
    assert jnp.allclose(out_masked, ref_masked, atol=1e-3, rtol=1e-3), "masked mismatch"
    assert jnp.allclose(out_nomask, ref_nomask, atol=1e-3, rtol=1e-3), "no-mask mismatch"

    print("KERNEL_OK")
</pallas_src>

<mosaic_0001>
module attributes {stable_mosaic.version = 11 : i64} {
  func.func @_decoder_block_kernel(%arg0: i32, %arg1: memref<1x8x32xf32, #tpu.memory_space<vmem>>, %arg2: memref<1x8x32xf32, #tpu.memory_space<vmem>>, %arg3: memref<1x8x8xf32, #tpu.memory_space<vmem>>, %arg4: memref<32x96xf32, #tpu.memory_space<vmem>>, %arg5: memref<1x96xf32, #tpu.memory_space<vmem>>, %arg6: memref<4x8x32xf32, #tpu.memory_space<vmem>>, %arg7: memref<1x32xf32, #tpu.memory_space<vmem>>, %arg8: memref<32x32xf32, #tpu.memory_space<vmem>>, %arg9: memref<1x32xf32, #tpu.memory_space<vmem>>, %arg10: memref<32x64xf32, #tpu.memory_space<vmem>>, %arg11: memref<1x64xf32, #tpu.memory_space<vmem>>, %arg12: memref<4x8x32xf32, #tpu.memory_space<vmem>>, %arg13: memref<1x32xf32, #tpu.memory_space<vmem>>, %arg14: memref<32x128xf32, #tpu.memory_space<vmem>>, %arg15: memref<1x128xf32, #tpu.memory_space<vmem>>, %arg16: memref<128x32xf32, #tpu.memory_space<vmem>>, %arg17: memref<1x32xf32, #tpu.memory_space<vmem>>, %arg18: memref<1x32xf32, #tpu.memory_space<vmem>>, %arg19: memref<1x32xf32, #tpu.memory_space<vmem>>, %arg20: memref<1x8x32xf32, #tpu.memory_space<vmem>>) attributes {dimension_semantics = [#tpu.dimension_semantics<parallel>], iteration_bounds = array<i64: 2>, scalar_prefetch = 0 : i64, scratch_operands = 0 : i64, tpu.core_type = #tpu.core_type<tc>, window_params = [{transform_indices = @transform_0, window_bounds = array<i64: 1, 8, 32>}, {transform_indices = @transform_1, window_bounds = array<i64: 1, 8, 32>}, {transform_indices = @transform_2, window_bounds = array<i64: 1, 8, 8>}, {pipeline_mode = #tpu.pipeline_mode<synchronous>, transform_indices = @transform_3, window_bounds = array<i64: 32, 96>}, {pipeline_mode = #tpu.pipeline_mode<synchronous>, transform_indices = @transform_4, window_bounds = array<i64: 1, 96>}, {pipeline_mode = #tpu.pipeline_mode<synchronous>, transform_indices = @transform_5, window_bounds = array<i64: 4, 8, 32>}, {pipeline_mode = #tpu.pipeline_mode<synchronous>, transform_indices = @transform_6, window_bounds = array<i64: 1, 32>}, {pipeline_mode = #tpu.pipeline_mode<synchronous>, transform_indices = @transform_7, window_bounds = array<i64: 32, 32>}, {pipeline_mode = #tpu.pipeline_mode<synchronous>, transform_indices = @transform_8, window_bounds = array<i64: 1, 32>}, {pipeline_mode = #tpu.pipeline_mode<synchronous>, transform_indices = @transform_9, window_bounds = array<i64: 32, 64>}, {pipeline_mode = #tpu.pipeline_mode<synchronous>, transform_indices = @transform_10, window_bounds = array<i64: 1, 64>}, {pipeline_mode = #tpu.pipeline_mode<synchronous>, transform_indices = @transform_11, window_bounds = array<i64: 4, 8, 32>}, {pipeline_mode = #tpu.pipeline_mode<synchronous>, transform_indices = @transform_12, window_bounds = array<i64: 1, 32>}, {pipeline_mode = #tpu.pipeline_mode<synchronous>, transform_indices = @transform_13, window_bounds = array<i64: 32, 128>}, {pipeline_mode = #tpu.pipeline_mode<synchronous>, transform_indices = @transform_14, window_bounds = array<i64: 1, 128>}, {pipeline_mode = #tpu.pipeline_mode<synchronous>, transform_indices = @transform_15, window_bounds = array<i64: 128, 32>}, {pipeline_mode = #tpu.pipeline_mode<synchronous>, transform_indices = @transform_16, window_bounds = array<i64: 1, 32>}, {pipeline_mode = #tpu.pipeline_mode<synchronous>, transform_indices = @transform_17, window_bounds = array<i64: 1, 32>}, {pipeline_mode = #tpu.pipeline_mode<synchronous>, transform_indices = @transform_18, window_bounds = array<i64: 1, 32>}, {transform_indices = @transform_19, window_bounds = array<i64: 1, 8, 32>}]} {
    %c0 = arith.constant 0 : index
    %c0_0 = arith.constant 0 : index
    %c0_1 = arith.constant 0 : index
    %0 = vector.load %arg1[%c0, %c0_0, %c0_1] : memref<1x8x32xf32, #tpu.memory_space<vmem>>, vector<1x8x32xf32>
    %1 = vector.shape_cast %0 : vector<1x8x32xf32> to vector<8x32xf32>
    %c0_2 = arith.constant 0 : index
    %c0_3 = arith.constant 0 : index
    %c0_4 = arith.constant 0 : index
    %2 = vector.load %arg2[%c0_2, %c0_3, %c0_4] : memref<1x8x32xf32, #tpu.memory_space<vmem>>, vector<1x8x32xf32>
    %3 = vector.shape_cast %2 : vector<1x8x32xf32> to vector<8x32xf32>
    %c0_5 = arith.constant 0 : index
    %c0_6 = arith.constant 0 : index
    %4 = vector.load %arg18[%c0_5, %c0_6] : memref<1x32xf32, #tpu.memory_space<vmem>>, vector<1x32xf32>
    %c0_7 = arith.constant 0 : index
    %c0_8 = arith.constant 0 : index
    %5 = vector.load %arg19[%c0_7, %c0_8] : memref<1x32xf32, #tpu.memory_space<vmem>>, vector<1x32xf32>
    %c0_9 = arith.constant 0 : index
    %c0_10 = arith.constant 0 : index
    %6 = vector.load %arg4[%c0_9, %c0_10] : memref<32x96xf32, #tpu.memory_space<vmem>>, vector<32x96xf32>
    %cst = arith.constant dense<0.000000e+00> : vector<8x96xf32>
    %7 = tpu.matmul %1, %6, %cst {dimension_numbers = #tpu.dot_dimension_numbers<[1], [0], [0], [1], [0, 0, 1, 1], [], []>} : vector<8x32xf32>, vector<32x96xf32>, vector<8x96xf32> -> vector<8x96xf32>
    %c0_11 = arith.constant 0 : index
    %c0_12 = arith.constant 0 : index
    %8 = vector.load %arg5[%c0_11, %c0_12] : memref<1x96xf32, #tpu.memory_space<vmem>>, vector<1x96xf32>
    %9 = vector.broadcast %8 : vector<1x96xf32> to vector<8x96xf32>
    %10 = arith.addf %7, %9 : vector<8x96xf32>
    %11 = vector.extract_strided_slice %10 {offsets = [0, 0], sizes = [8, 32], strides = [1, 1]} : vector<8x96xf32> to vector<8x32xf32>
    %12 = vector.extract_strided_slice %11 {offsets = [0, 0], sizes = [8, 8], strides = [1, 1]} : vector<8x32xf32> to vector<8x8xf32>
    %13 = vector.extract_strided_slice %11 {offsets = [0, 8], sizes = [8, 8], strides = [1, 1]} : vector<8x32xf32> to vector<8x8xf32>
    %14 = vector.extract_strided_slice %11 {offsets = [0, 16], sizes = [8, 8], strides = [1, 1]} : vector<8x32xf32> to vector<8x8xf32>
    %15 = vector.extract_strided_slice %11 {offsets = [0, 24], sizes = [8, 8], strides = [1, 1]} : vector<8x32xf32> to vector<8x8xf32>
    %16 = vector.shape_cast %12 : vector<8x8xf32> to vector<1x8x8xf32>
    %17 = vector.shape_cast %13 : vector<8x8xf32> to vector<1x8x8xf32>
    %18 = vector.shape_cast %14 : vector<8x8xf32> to vector<1x8x8xf32>
    %19 = vector.shape_cast %15 : vector<8x8xf32> to vector<1x8x8xf32>
    %20 = tpu.concatenate %16, %17, %18, %19 in 0 : vector<1x8x8xf32>, vector<1x8x8xf32>, vector<1x8x8xf32>, vector<1x8x8xf32> -> vector<4x8x8xf32>
    %21 = vector.extract_strided_slice %10 {offsets = [0, 32], sizes = [8, 32], strides = [1, 1]} : vector<8x96xf32> to vector<8x32xf32>
    %22 = vector.extract_strided_slice %21 {offsets = [0, 0], sizes = [8, 8], strides = [1, 1]} : vector<8x32xf32> to vector<8x8xf32>
    %23 = vector.extract_strided_slice %21 {offsets = [0, 8], sizes = [8, 8], strides = [1, 1]} : vector<8x32xf32> to vector<8x8xf32>
    %24 = vector.extract_strided_slice %21 {offsets = [0, 16], sizes = [8, 8], strides = [1, 1]} : vector<8x32xf32> to vector<8x8xf32>
    %25 = vector.extract_strided_slice %21 {offsets = [0, 24], sizes = [8, 8], strides = [1, 1]} : vector<8x32xf32> to vector<8x8xf32>
    %26 = vector.shape_cast %22 : vector<8x8xf32> to vector<1x8x8xf32>
    %27 = vector.shape_cast %23 : vector<8x8xf32> to vector<1x8x8xf32>
    %28 = vector.shape_cast %24 : vector<8x8xf32> to vector<1x8x8xf32>
    %29 = vector.shape_cast %25 : vector<8x8xf32> to vector<1x8x8xf32>
    %30 = tpu.concatenate %26, %27, %28, %29 in 0 : vector<1x8x8xf32>, vector<1x8x8xf32>, vector<1x8x8xf32>, vector<1x8x8xf32> -> vector<4x8x8xf32>
    %31 = vector.extract_strided_slice %10 {offsets = [0, 64], sizes = [8, 32], strides = [1, 1]} : vector<8x96xf32> to vector<8x32xf32>
    %32 = vector.extract_strided_slice %31 {offsets = [0, 0], sizes = [8, 8], strides = [1, 1]} : vector<8x32xf32> to vector<8x8xf32>
    %33 = vector.extract_strided_slice %31 {offsets = [0, 8], sizes = [8, 8], strides = [1, 1]} : vector<8x32xf32> to vector<8x8xf32>
    %34 = vector.extract_strided_slice %31 {offsets = [0, 16], sizes = [8, 8], strides = [1, 1]} : vector<8x32xf32> to vector<8x8xf32>
    %35 = vector.extract_strided_slice %31 {offsets = [0, 24], sizes = [8, 8], strides = [1, 1]} : vector<8x32xf32> to vector<8x8xf32>
    %36 = vector.shape_cast %32 : vector<8x8xf32> to vector<1x8x8xf32>
    %37 = vector.shape_cast %33 : vector<8x8xf32> to vector<1x8x8xf32>
    %38 = vector.shape_cast %34 : vector<8x8xf32> to vector<1x8x8xf32>
    %39 = vector.shape_cast %35 : vector<8x8xf32> to vector<1x8x8xf32>
    %40 = tpu.concatenate %36, %37, %38, %39 in 0 : vector<1x8x8xf32>, vector<1x8x8xf32>, vector<1x8x8xf32>, vector<1x8x8xf32> -> vector<4x8x8xf32>
    %c0_13 = arith.constant 0 : index
    %c0_14 = arith.constant 0 : index
    %c0_15 = arith.constant 0 : index
    %41 = vector.load %arg3[%c0_13, %c0_14, %c0_15] : memref<1x8x8xf32, #tpu.memory_space<vmem>>, vector<1x8x8xf32>
    %42 = vector.shape_cast %41 : vector<1x8x8xf32> to vector<8x8xf32>
    %c0_16 = arith.constant 0 : index
    %c0_17 = arith.constant 0 : index
    %c0_18 = arith.constant 0 : index
    %43 = vector.load %arg6[%c0_16, %c0_17, %c0_18] : memref<4x8x32xf32, #tpu.memory_space<vmem>>, vector<4x8x32xf32>
    %c0_19 = arith.constant 0 : index
    %c0_20 = arith.constant 0 : index
    %44 = vector.load %arg7[%c0_19, %c0_20] : memref<1x32xf32, #tpu.memory_space<vmem>>, vector<1x32xf32>
    %cst_21 = arith.constant dense<0.000000e+00> : vector<4x8x8xf32>
    %45 = tpu.matmul %20, %30, %cst_21 {dimension_numbers = #tpu.dot_dimension_numbers<[2], [2], [1], [1], [0, 0, 0, 1, 1, 1], [0], [0]>} : vector<4x8x8xf32>, vector<4x8x8xf32>, vector<4x8x8xf32> -> vector<4x8x8xf32>
    %46 = vector.shape_cast %42 : vector<8x8xf32> to vector<1x8x8xf32>
    %cst_22 = arith.constant 0.000000e+00 : f32
    %47 = vector.broadcast %cst_22 : f32 to vector<1x8x8xf32>
    %48 = arith.cmpf oeq, %46, %47 : vector<1x8x8xf32>
    %cst_23 = arith.constant -1.000000e+20 : f32
    %49 = vector.shape_cast %48 : vector<1x8x8xi1> to vector<1x8x8xi1>
    %50 = vector.broadcast %49 : vector<1x8x8xi1> to vector<4x8x8xi1>
    %51 = vector.broadcast %cst_23 : f32 to vector<4x8x8xf32>
    %52 = arith.select %50, %51, %45 : vector<4x8x8xi1>, vector<4x8x8xf32>
    %cst_24 = arith.constant 0.353553385 : f32
    %53 = vector.broadcast %cst_24 : f32 to vector<4x8x8xf32>
    %54 = arith.mulf %52, %53 : vector<4x8x8xf32>
    %cst_25 = arith.constant dense<0xFF800000> : vector<4x8xf32>
    %55 = vector.multi_reduction <maximumf>, %54, %cst_25 [2] : vector<4x8x8xf32> to vector<4x8xf32>
    %56 = vector.shape_cast %55 : vector<4x8xf32> to vector<4x8x1xf32>
    %57 = vector.broadcast %56 : vector<4x8x1xf32> to vector<4x8x8xf32>
    %58 = arith.subf %54, %57 : vector<4x8x8xf32>
    %59 = math.exp %58 : vector<4x8x8xf32>
    %cst_26 = arith.constant dense<0.000000e+00> : vector<4x8xf32>
    %60 = vector.multi_reduction <add>, %59, %cst_26 [2] : vector<4x8x8xf32> to vector<4x8xf32>
    %61 = vector.shape_cast %60 : vector<4x8xf32> to vector<4x8x1xf32>
    %cst_27 = arith.constant dense<0.000000e+00> : vector<4x8x8xf32>
    %62 = tpu.matmul %59, %40, %cst_27 {dimension_numbers = #tpu.dot_dimension_numbers<[2], [1], [1], [2], [0, 0, 0, 1, 1, 2], [0], [0]>} : vector<4x8x8xf32>, vector<4x8x8xf32>, vector<4x8x8xf32> -> vector<4x8x8xf32>
    %63 = tpu.reciprocal %61 : vector<4x8x1xf32> -> vector<4x8x1xf32>
    %64 = vector.broadcast %63 : vector<4x8x1xf32> to vector<4x8x8xf32>
    %65 = arith.mulf %62, %64 : vector<4x8x8xf32>
    %cst_28 = arith.constant dense<0.000000e+00> : vector<4x8x32xf32>
    %66 = tpu.matmul %65, %43, %cst_28 {dimension_numbers = #tpu.dot_dimension_numbers<[2], [1], [1], [2], [0, 0, 0, 1, 1, 2], [0], [0]>} : vector<4x8x8xf32>, vector<4x8x32xf32>, vector<4x8x32xf32> -> vector<4x8x32xf32>
    %cst_29 = arith.constant dense<0.000000e+00> : vector<8x32xf32>
    %67 = vector.multi_reduction <add>, %66, %cst_29 [0] : vector<4x8x32xf32> to vector<8x32xf32>
    %68 = vector.broadcast %44 : vector<1x32xf32> to vector<8x32xf32>
    %69 = arith.addf %67, %68 : vector<8x32xf32>
    %70 = arith.addf %1, %69 : vector<8x32xf32>
    %cst_30 = arith.constant dense<0.000000e+00> : vector<8xf32>
    %71 = vector.multi_reduction <add>, %70, %cst_30 [1] : vector<8x32xf32> to vector<8xf32>
    %72 = vector.shape_cast %71 : vector<8xf32> to vector<8x1xf32>
    %cst_31 = arith.constant 3.200000e+01 : f32
    %73 = vector.broadcast %cst_31 : f32 to vector<8x1xf32>
    %74 = arith.divf %72, %73 : vector<8x1xf32>
    %75 = vector.broadcast %74 : vector<8x1xf32> to vector<8x32xf32>
    %76 = arith.subf %70, %75 : vector<8x32xf32>
    %77 = arith.mulf %76, %76 : vector<8x32xf32>
    %cst_32 = arith.constant dense<0.000000e+00> : vector<8xf32>
    %78 = vector.multi_reduction <add>, %77, %cst_32 [1] : vector<8x32xf32> to vector<8xf32>
    %79 = vector.shape_cast %78 : vector<8xf32> to vector<8x1xf32>
    %cst_33 = arith.constant 3.200000e+01 : f32
    %80 = vector.broadcast %cst_33 : f32 to vector<8x1xf32>
    %81 = arith.divf %79, %80 : vector<8x1xf32>
    %cst_34 = arith.constant 9.99999974E-6 : f32
    %82 = vector.broadcast %cst_34 : f32 to vector<8x1xf32>
    %83 = arith.addf %81, %82 : vector<8x1xf32>
    %84 = math.rsqrt %83 : vector<8x1xf32>
    %85 = vector.broadcast %84 : vector<8x1xf32> to vector<8x32xf32>
    %86 = arith.mulf %76, %85 : vector<8x32xf32>
    %87 = vector.broadcast %4 : vector<1x32xf32> to vector<8x32xf32>
    %88 = arith.mulf %86, %87 : vector<8x32xf32>
    %89 = vector.broadcast %5 : vector<1x32xf32> to vector<8x32xf32>
    %90 = arith.addf %88, %89 : vector<8x32xf32>
    %c0_35 = arith.constant 0 : index
    %c0_36 = arith.constant 0 : index
    %91 = vector.load %arg8[%c0_35, %c0_36] : memref<32x32xf32, #tpu.memory_space<vmem>>, vector<32x32xf32>
    %cst_37 = arith.constant dense<0.000000e+00> : vector<8x32xf32>
    %92 = tpu.matmul %90, %91, %cst_37 {dimension_numbers = #tpu.dot_dimension_numbers<[1], [0], [0], [1], [0, 0, 1, 1], [], []>} : vector<8x32xf32>, vector<32x32xf32>, vector<8x32xf32> -> vector<8x32xf32>
    %c0_38 = arith.constant 0 : index
    %c0_39 = arith.constant 0 : index
    %93 = vector.load %arg9[%c0_38, %c0_39] : memref<1x32xf32, #tpu.memory_space<vmem>>, vector<1x32xf32>
    %94 = vector.broadcast %93 : vector<1x32xf32> to vector<8x32xf32>
    %95 = arith.addf %92, %94 : vector<8x32xf32>
    %96 = vector.extract_strided_slice %95 {offsets = [0, 0], sizes = [8, 8], strides = [1, 1]} : vector<8x32xf32> to vector<8x8xf32>
    %97 = vector.extract_strided_slice %95 {offsets = [0, 8], sizes = [8, 8], strides = [1, 1]} : vector<8x32xf32> to vector<8x8xf32>
    %98 = vector.extract_strided_slice %95 {offsets = [0, 16], sizes = [8, 8], strides = [1, 1]} : vector<8x32xf32> to vector<8x8xf32>
    %99 = vector.extract_strided_slice %95 {offsets = [0, 24], sizes = [8, 8], strides = [1, 1]} : vector<8x32xf32> to vector<8x8xf32>
    %100 = vector.shape_cast %96 : vector<8x8xf32> to vector<1x8x8xf32>
    %101 = vector.shape_cast %97 : vector<8x8xf32> to vector<1x8x8xf32>
    %102 = vector.shape_cast %98 : vector<8x8xf32> to vector<1x8x8xf32>
    %103 = vector.shape_cast %99 : vector<8x8xf32> to vector<1x8x8xf32>
    %104 = tpu.concatenate %100, %101, %102, %103 in 0 : vector<1x8x8xf32>, vector<1x8x8xf32>, vector<1x8x8xf32>, vector<1x8x8xf32> -> vector<4x8x8xf32>
    %c0_40 = arith.constant 0 : index
    %c0_41 = arith.constant 0 : index
    %105 = vector.load %arg10[%c0_40, %c0_41] : memref<32x64xf32, #tpu.memory_space<vmem>>, vector<32x64xf32>
    %cst_42 = arith.constant dense<0.000000e+00> : vector<8x64xf32>
    %106 = tpu.matmul %3, %105, %cst_42 {dimension_numbers = #tpu.dot_dimension_numbers<[1], [0], [0], [1], [0, 0, 1, 1], [], []>} : vector<8x32xf32>, vector<32x64xf32>, vector<8x64xf32> -> vector<8x64xf32>
    %c0_43 = arith.constant 0 : index
    %c0_44 = arith.constant 0 : index
    %107 = vector.load %arg11[%c0_43, %c0_44] : memref<1x64xf32, #tpu.memory_space<vmem>>, vector<1x64xf32>
    %108 = vector.broadcast %107 : vector<1x64xf32> to vector<8x64xf32>
    %109 = arith.addf %106, %108 : vector<8x64xf32>
    %110 = vector.extract_strided_slice %109 {offsets = [0, 0], sizes = [8, 32], strides = [1, 1]} : vector<8x64xf32> to vector<8x32xf32>
    %111 = vector.extract_strided_slice %110 {offsets = [0, 0], sizes = [8, 8], strides = [1, 1]} : vector<8x32xf32> to vector<8x8xf32>
    %112 = vector.extract_strided_slice %110 {offsets = [0, 8], sizes = [8, 8], strides = [1, 1]} : vector<8x32xf32> to vector<8x8xf32>
    %113 = vector.extract_strided_slice %110 {offsets = [0, 16], sizes = [8, 8], strides = [1, 1]} : vector<8x32xf32> to vector<8x8xf32>
    %114 = vector.extract_strided_slice %110 {offsets = [0, 24], sizes = [8, 8], strides = [1, 1]} : vector<8x32xf32> to vector<8x8xf32>
    %115 = vector.shape_cast %111 : vector<8x8xf32> to vector<1x8x8xf32>
    %116 = vector.shape_cast %112 : vector<8x8xf32> to vector<1x8x8xf32>
    %117 = vector.shape_cast %113 : vector<8x8xf32> to vector<1x8x8xf32>
    %118 = vector.shape_cast %114 : vector<8x8xf32> to vector<1x8x8xf32>
    %119 = tpu.concatenate %115, %116, %117, %118 in 0 : vector<1x8x8xf32>, vector<1x8x8xf32>, vector<1x8x8xf32>, vector<1x8x8xf32> -> vector<4x8x8xf32>
    %120 = vector.extract_strided_slice %109 {offsets = [0, 32], sizes = [8, 32], strides = [1, 1]} : vector<8x64xf32> to vector<8x32xf32>
    %121 = vector.extract_strided_slice %120 {offsets = [0, 0], sizes = [8, 8], strides = [1, 1]} : vector<8x32xf32> to vector<8x8xf32>
    %122 = vector.extract_strided_slice %120 {offsets = [0, 8], sizes = [8, 8], strides = [1, 1]} : vector<8x32xf32> to vector<8x8xf32>
    %123 = vector.extract_strided_slice %120 {offsets = [0, 16], sizes = [8, 8], strides = [1, 1]} : vector<8x32xf32> to vector<8x8xf32>
    %124 = vector.extract_strided_slice %120 {offsets = [0, 24], sizes = [8, 8], strides = [1, 1]} : vector<8x32xf32> to vector<8x8xf32>
    %125 = vector.shape_cast %121 : vector<8x8xf32> to vector<1x8x8xf32>
    %126 = vector.shape_cast %122 : vector<8x8xf32> to vector<1x8x8xf32>
    %127 = vector.shape_cast %123 : vector<8x8xf32> to vector<1x8x8xf32>
    %128 = vector.shape_cast %124 : vector<8x8xf32> to vector<1x8x8xf32>
    %129 = tpu.concatenate %125, %126, %127, %128 in 0 : vector<1x8x8xf32>, vector<1x8x8xf32>, vector<1x8x8xf32>, vector<1x8x8xf32> -> vector<4x8x8xf32>
    %c0_45 = arith.constant 0 : index
    %c0_46 = arith.constant 0 : index
    %c0_47 = arith.constant 0 : index
    %130 = vector.load %arg12[%c0_45, %c0_46, %c0_47] : memref<4x8x32xf32, #tpu.memory_space<vmem>>, vector<4x8x32xf32>
    %c0_48 = arith.constant 0 : index
    %c0_49 = arith.constant 0 : index
    %131 = vector.load %arg13[%c0_48, %c0_49] : memref<1x32xf32, #tpu.memory_space<vmem>>, vector<1x32xf32>
    %cst_50 = arith.constant dense<0.000000e+00> : vector<4x8x8xf32>
    %132 = tpu.matmul %104, %119, %cst_50 {dimension_numbers = #tpu.dot_dimension_numbers<[2], [2], [1], [1], [0, 0, 0, 1, 1, 1], [0], [0]>} : vector<4x8x8xf32>, vector<4x8x8xf32>, vector<4x8x8xf32> -> vector<4x8x8xf32>
    %cst_51 = arith.constant 0.353553385 : f32
    %133 = vector.broadcast %cst_51 : f32 to vector<4x8x8xf32>
    %134 = arith.mulf %132, %133 : vector<4x8x8xf32>
    %cst_52 = arith.constant dense<0xFF800000> : vector<4x8xf32>
    %135 = vector.multi_reduction <maximumf>, %134, %cst_52 [2] : vector<4x8x8xf32> to vector<4x8xf32>
    %136 = vector.shape_cast %135 : vector<4x8xf32> to vector<4x8x1xf32>
    %137 = vector.broadcast %136 : vector<4x8x1xf32> to vector<4x8x8xf32>
    %138 = arith.subf %134, %137 : vector<4x8x8xf32>
    %139 = math.exp %138 : vector<4x8x8xf32>
    %cst_53 = arith.constant dense<0.000000e+00> : vector<4x8xf32>
    %140 = vector.multi_reduction <add>, %139, %cst_53 [2] : vector<4x8x8xf32> to vector<4x8xf32>
    %141 = vector.shape_cast %140 : vector<4x8xf32> to vector<4x8x1xf32>
    %cst_54 = arith.constant dense<0.000000e+00> : vector<4x8x8xf32>
    %142 = tpu.matmul %139, %129, %cst_54 {dimension_numbers = #tpu.dot_dimension_numbers<[2], [1], [1], [2], [0, 0, 0, 1, 1, 2], [0], [0]>} : vector<4x8x8xf32>, vector<4x8x8xf32>, vector<4x8x8xf32> -> vector<4x8x8xf32>
    %143 = tpu.reciprocal %141 : vector<4x8x1xf32> -> vector<4x8x1xf32>
    %144 = vector.broadcast %143 : vector<4x8x1xf32> to vector<4x8x8xf32>
    %145 = arith.mulf %142, %144 : vector<4x8x8xf32>
    %cst_55 = arith.constant dense<0.000000e+00> : vector<4x8x32xf32>
    %146 = tpu.matmul %145, %130, %cst_55 {dimension_numbers = #tpu.dot_dimension_numbers<[2], [1], [1], [2], [0, 0, 0, 1, 1, 2], [0], [0]>} : vector<4x8x8xf32>, vector<4x8x32xf32>, vector<4x8x32xf32> -> vector<4x8x32xf32>
    %cst_56 = arith.constant dense<0.000000e+00> : vector<8x32xf32>
    %147 = vector.multi_reduction <add>, %146, %cst_56 [0] : vector<4x8x32xf32> to vector<8x32xf32>
    %148 = vector.broadcast %131 : vector<1x32xf32> to vector<8x32xf32>
    %149 = arith.addf %147, %148 : vector<8x32xf32>
    %150 = arith.addf %90, %149 : vector<8x32xf32>
    %cst_57 = arith.constant dense<0.000000e+00> : vector<8xf32>
    %151 = vector.multi_reduction <add>, %150, %cst_57 [1] : vector<8x32xf32> to vector<8xf32>
    %152 = vector.shape_cast %151 : vector<8xf32> to vector<8x1xf32>
    %cst_58 = arith.constant 3.200000e+01 : f32
    %153 = vector.broadcast %cst_58 : f32 to vector<8x1xf32>
    %154 = arith.divf %152, %153 : vector<8x1xf32>
    %155 = vector.broadcast %154 : vector<8x1xf32> to vector<8x32xf32>
    %156 = arith.subf %150, %155 : vector<8x32xf32>
    %157 = arith.mulf %156, %156 : vector<8x32xf32>
    %cst_59 = arith.constant dense<0.000000e+00> : vector<8xf32>
    %158 = vector.multi_reduction <add>, %157, %cst_59 [1] : vector<8x32xf32> to vector<8xf32>
    %159 = vector.shape_cast %158 : vector<8xf32> to vector<8x1xf32>
    %cst_60 = arith.constant 3.200000e+01 : f32
    %160 = vector.broadcast %cst_60 : f32 to vector<8x1xf32>
    %161 = arith.divf %159, %160 : vector<8x1xf32>
    %cst_61 = arith.constant 9.99999974E-6 : f32
    %162 = vector.broadcast %cst_61 : f32 to vector<8x1xf32>
    %163 = arith.addf %161, %162 : vector<8x1xf32>
    %164 = math.rsqrt %163 : vector<8x1xf32>
    %165 = vector.broadcast %164 : vector<8x1xf32> to vector<8x32xf32>
    %166 = arith.mulf %156, %165 : vector<8x32xf32>
    %167 = vector.broadcast %4 : vector<1x32xf32> to vector<8x32xf32>
    %168 = arith.mulf %166, %167 : vector<8x32xf32>
    %169 = vector.broadcast %5 : vector<1x32xf32> to vector<8x32xf32>
    %170 = arith.addf %168, %169 : vector<8x32xf32>
    %c0_62 = arith.constant 0 : index
    %c0_63 = arith.constant 0 : index
    %171 = vector.load %arg14[%c0_62, %c0_63] : memref<32x128xf32, #tpu.memory_space<vmem>>, vector<32x128xf32>
    %cst_64 = arith.constant dense<0.000000e+00> : vector<8x128xf32>
    %172 = tpu.matmul %170, %171, %cst_64 {dimension_numbers = #tpu.dot_dimension_numbers<[1], [0], [0], [1], [0, 0, 1, 1], [], []>} : vector<8x32xf32>, vector<32x128xf32>, vector<8x128xf32> -> vector<8x128xf32>
    %c0_65 = arith.constant 0 : index
    %c0_66 = arith.constant 0 : index
    %173 = vector.load %arg15[%c0_65, %c0_66] : memref<1x128xf32, #tpu.memory_space<vmem>>, vector<1x128xf32>
    %174 = vector.broadcast %173 : vector<1x128xf32> to vector<8x128xf32>
    %175 = arith.addf %172, %174 : vector<8x128xf32>
    %cst_67 = arith.constant 0.000000e+00 : f32
    %176 = vector.broadcast %cst_67 : f32 to vector<8x128xf32>
    %177 = arith.maximumf %175, %176 : vector<8x128xf32>
    %c0_68 = arith.constant 0 : index
    %c0_69 = arith.constant 0 : index
    %178 = vector.load %arg16[%c0_68, %c0_69] : memref<128x32xf32, #tpu.memory_space<vmem>>, vector<128x32xf32>
    %cst_70 = arith.constant dense<0.000000e+00> : vector<8x32xf32>
    %179 = tpu.matmul %177, %178, %cst_70 {dimension_numbers = #tpu.dot_dimension_numbers<[1], [0], [0], [1], [0, 0, 1, 1], [], []>} : vector<8x128xf32>, vector<128x32xf32>, vector<8x32xf32> -> vector<8x32xf32>
    %c0_71 = arith.constant 0 : index
    %c0_72 = arith.constant 0 : index
    %180 = vector.load %arg17[%c0_71, %c0_72] : memref<1x32xf32, #tpu.memory_space<vmem>>, vector<1x32xf32>
    %181 = vector.broadcast %180 : vector<1x32xf32> to vector<8x32xf32>
    %182 = arith.addf %179, %181 : vector<8x32xf32>
    %183 = arith.addf %170, %182 : vector<8x32xf32>
    %cst_73 = arith.constant dense<0.000000e+00> : vector<8xf32>
    %184 = vector.multi_reduction <add>, %183, %cst_73 [1] : vector<8x32xf32> to vector<8xf32>
    %185 = vector.shape_cast %184 : vector<8xf32> to vector<8x1xf32>
    %cst_74 = arith.constant 3.200000e+01 : f32
    %186 = vector.broadcast %cst_74 : f32 to vector<8x1xf32>
    %187 = arith.divf %185, %186 : vector<8x1xf32>
    %188 = vector.broadcast %187 : vector<8x1xf32> to vector<8x32xf32>
    %189 = arith.subf %183, %188 : vector<8x32xf32>
    %190 = arith.mulf %189, %189 : vector<8x32xf32>
    %cst_75 = arith.constant dense<0.000000e+00> : vector<8xf32>
    %191 = vector.multi_reduction <add>, %190, %cst_75 [1] : vector<8x32xf32> to vector<8xf32>
    %192 = vector.shape_cast %191 : vector<8xf32> to vector<8x1xf32>
    %cst_76 = arith.constant 3.200000e+01 : f32
    %193 = vector.broadcast %cst_76 : f32 to vector<8x1xf32>
    %194 = arith.divf %192, %193 : vector<8x1xf32>
    %cst_77 = arith.constant 9.99999974E-6 : f32
    %195 = vector.broadcast %cst_77 : f32 to vector<8x1xf32>
    %196 = arith.addf %194, %195 : vector<8x1xf32>
    %197 = math.rsqrt %196 : vector<8x1xf32>
    %198 = vector.broadcast %197 : vector<8x1xf32> to vector<8x32xf32>
    %199 = arith.mulf %189, %198 : vector<8x32xf32>
    %200 = vector.broadcast %4 : vector<1x32xf32> to vector<8x32xf32>
    %201 = arith.mulf %199, %200 : vector<8x32xf32>
    %202 = vector.broadcast %5 : vector<1x32xf32> to vector<8x32xf32>
    %203 = arith.addf %201, %202 : vector<8x32xf32>
    %c0_78 = arith.constant 0 : index
    %c0_79 = arith.constant 0 : index
    %c0_80 = arith.constant 0 : index
    %204 = vector.load %arg20[%c0_78, %c0_79, %c0_80] : memref<1x8x32xf32, #tpu.memory_space<vmem>>, vector<1x8x32xf32>
    %205 = vector.shape_cast %204 : vector<1x8x32xf32> to vector<8x32xf32>
    %206 = vector.shape_cast %203 : vector<8x32xf32> to vector<1x8x32xf32>
    tpu.vector_store %arg20[%c0_78, %c0_79, %c0_80], %206 {strides = array<i32>} : memref<1x8x32xf32, #tpu.memory_space<vmem>>, vector<1x8x32xf32>,
    return
  }
  func.func @transform_0(%arg0: i32) -> (i32, i32, i32) {
    %c0_i32 = arith.constant 0 : i32
    %c0_i32_0 = arith.constant 0 : i32
    %c0_i32_1 = arith.constant 0 : i32
    return %arg0, %c0_i32, %c0_i32_0 : i32, i32, i32
  }
  func.func @transform_1(%arg0: i32) -> (i32, i32, i32) {
    %c0_i32 = arith.constant 0 : i32
    %c0_i32_0 = arith.constant 0 : i32
    %c0_i32_1 = arith.constant 0 : i32
    return %arg0, %c0_i32, %c0_i32_0 : i32, i32, i32
  }
  func.func @transform_2(%arg0: i32) -> (i32, i32, i32) {
    %c0_i32 = arith.constant 0 : i32
    %c0_i32_0 = arith.constant 0 : i32
    %c0_i32_1 = arith.constant 0 : i32
    return %arg0, %c0_i32, %c0_i32_0 : i32, i32, i32
  }
  func.func @transform_3(%arg0: i32) -> (i32, i32) {
    %c0_i32 = arith.constant 0 : i32
    %c0_i32_0 = arith.constant 0 : i32
    %c0_i32_1 = arith.constant 0 : i32
    return %c0_i32, %c0_i32_0 : i32, i32
  }
  func.func @transform_4(%arg0: i32) -> (i32, i32) {
    %c0_i32 = arith.constant 0 : i32
    %c0_i32_0 = arith.constant 0 : i32
    %c0_i32_1 = arith.constant 0 : i32
    return %c0_i32, %c0_i32_0 : i32, i32
  }
  func.func @transform_5(%arg0: i32) -> (i32, i32, i32) {
    %c0_i32 = arith.constant 0 : i32
    %c0_i32_0 = arith.constant 0 : i32
    %c0_i32_1 = arith.constant 0 : i32
    %c0_i32_2 = arith.constant 0 : i32
    return %c0_i32, %c0_i32_0, %c0_i32_1 : i32, i32, i32
  }
  func.func @transform_6(%arg0: i32) -> (i32, i32) {
    %c0_i32 = arith.constant 0 : i32
    %c0_i32_0 = arith.constant 0 : i32
    %c0_i32_1 = arith.constant 0 : i32
    return %c0_i32, %c0_i32_0 : i32, i32
  }
  func.func @transform_7(%arg0: i32) -> (i32, i32) {
    %c0_i32 = arith.constant 0 : i32
    %c0_i32_0 = arith.constant 0 : i32
    %c0_i32_1 = arith.constant 0 : i32
    return %c0_i32, %c0_i32_0 : i32, i32
  }
  func.func @transform_8(%arg0: i32) -> (i32, i32) {
    %c0_i32 = arith.constant 0 : i32
    %c0_i32_0 = arith.constant 0 : i32
    %c0_i32_1 = arith.constant 0 : i32
    return %c0_i32, %c0_i32_0 : i32, i32
  }
  func.func @transform_9(%arg0: i32) -> (i32, i32) {
    %c0_i32 = arith.constant 0 : i32
    %c0_i32_0 = arith.constant 0 : i32
    %c0_i32_1 = arith.constant 0 : i32
    return %c0_i32, %c0_i32_0 : i32, i32
  }
  func.func @transform_10(%arg0: i32) -> (i32, i32) {
    %c0_i32 = arith.constant 0 : i32
    %c0_i32_0 = arith.constant 0 : i32
    %c0_i32_1 = arith.constant 0 : i32
    return %c0_i32, %c0_i32_0 : i32, i32
  }
  func.func @transform_11(%arg0: i32) -> (i32, i32, i32) {
    %c0_i32 = arith.constant 0 : i32
    %c0_i32_0 = arith.constant 0 : i32
    %c0_i32_1 = arith.constant 0 : i32
    %c0_i32_2 = arith.constant 0 : i32
    return %c0_i32, %c0_i32_0, %c0_i32_1 : i32, i32, i32
  }
  func.func @transform_12(%arg0: i32) -> (i32, i32) {
    %c0_i32 = arith.constant 0 : i32
    %c0_i32_0 = arith.constant 0 : i32
    %c0_i32_1 = arith.constant 0 : i32
    return %c0_i32, %c0_i32_0 : i32, i32
  }
  func.func @transform_13(%arg0: i32) -> (i32, i32) {
    %c0_i32 = arith.constant 0 : i32
    %c0_i32_0 = arith.constant 0 : i32
    %c0_i32_1 = arith.constant 0 : i32
    return %c0_i32, %c0_i32_0 : i32, i32
  }
  func.func @transform_14(%arg0: i32) -> (i32, i32) {
    %c0_i32 = arith.constant 0 : i32
    %c0_i32_0 = arith.constant 0 : i32
    %c0_i32_1 = arith.constant 0 : i32
    return %c0_i32, %c0_i32_0 : i32, i32
  }
  func.func @transform_15(%arg0: i32) -> (i32, i32) {
    %c0_i32 = arith.constant 0 : i32
    %c0_i32_0 = arith.constant 0 : i32
    %c0_i32_1 = arith.constant 0 : i32
    return %c0_i32, %c0_i32_0 : i32, i32
  }
  func.func @transform_16(%arg0: i32) -> (i32, i32) {
    %c0_i32 = arith.constant 0 : i32
    %c0_i32_0 = arith.constant 0 : i32
    %c0_i32_1 = arith.constant 0 : i32
    return %c0_i32, %c0_i32_0 : i32, i32
  }
  func.func @transform_17(%arg0: i32) -> (i32, i32) {
    %c0_i32 = arith.constant 0 : i32
    %c0_i32_0 = arith.constant 0 : i32
    %c0_i32_1 = arith.constant 0 : i32
    return %c0_i32, %c0_i32_0 : i32, i32
  }
  func.func @transform_18(%arg0: i32) -> (i32, i32) {
    %c0_i32 = arith.constant 0 : i32
    %c0_i32_0 = arith.constant 0 : i32
    %c0_i32_1 = arith.constant 0 : i32
    return %c0_i32, %c0_i32_0 : i32, i32
  }
  func.func @transform_19(%arg0: i32) -> (i32, i32, i32) {
    %c0_i32 = arith.constant 0 : i32
    %c0_i32_0 = arith.constant 0 : i32
    %c0_i32_1 = arith.constant 0 : i32
    return %arg0, %c0_i32, %c0_i32_0 : i32, i32, i32
  }
}

</mosaic_0001>

<llo_original>
// kernel: tpu_custom_call.1
$region0: #{tpu_custom_call.1}
  #allocation0 [shape = 'u32[]', space=smem, size = 0x4, offset = 0x4, fixed_abs, tag = 'smem constant byte address 0x4 - core index']
  #allocation1 [shape = 'u32[144,128]{1,0:T(1,128)}', space=vmem, size = 0x12000, scoped, tag = 'internal scratch']
  %s0 = inlined_call_operand.hbm [shape: f32[2,8,32], index: 0, kind: input, shape index: {}]
  %s1 = inlined_call_operand.hbm [shape: f32[2,8,32], index: 1, kind: input, shape index: {}]
  %s2 = inlined_call_operand.hbm [shape: f32[2,8,8], index: 2, kind: input, shape index: {}]
  %s3 = inlined_call_operand.vmem [shape: f32[32,96], index: 3, kind: input, shape index: {}]
  %s4 = inlined_call_operand.vmem [shape: f32[1,96], index: 4, kind: input, shape index: {}]
  %s5 = inlined_call_operand.vmem [shape: f32[4,8,32], index: 5, kind: input, shape index: {}]
  %s6 = inlined_call_operand.vmem [shape: f32[1,32], index: 6, kind: input, shape index: {}]
  %s7 = inlined_call_operand.vmem [shape: f32[32,32], index: 7, kind: input, shape index: {}]
  %s8 = inlined_call_operand.vmem [shape: f32[1,32], index: 8, kind: input, shape index: {}]
  %s9 = inlined_call_operand.vmem [shape: f32[32,64], index: 9, kind: input, shape index: {}]
  %s10 = inlined_call_operand.vmem [shape: f32[1,64], index: 10, kind: input, shape index: {}]
  %s11 = inlined_call_operand.vmem [shape: f32[4,8,32], index: 11, kind: input, shape index: {}]
  %s12 = inlined_call_operand.vmem [shape: f32[1,32], index: 12, kind: input, shape index: {}]
  %s13 = inlined_call_operand.hbm [shape: f32[32,128], index: 13, kind: input, shape index: {}]
  %s14 = inlined_call_operand.vmem [shape: f32[1,128], index: 14, kind: input, shape index: {}]
  %s15 = inlined_call_operand.vmem [shape: f32[128,32], index: 15, kind: input, shape index: {}]
  %s16 = inlined_call_operand.vmem [shape: f32[1,32], index: 16, kind: input, shape index: {}]
  %s17 = inlined_call_operand.vmem [shape: f32[1,32], index: 17, kind: input, shape index: {}]
  %s18 = inlined_call_operand.vmem [shape: f32[1,32], index: 18, kind: input, shape index: {}]
  %s19 = inlined_call_operand.hbm [shape: f32[2,8,32], index: 19, kind: output, shape index: {}]
  %s20 = sld [smem:[#allocation0]]
  $region125: #{tpu_custom_call.1} parent=0
    _
  %s22 = ssub.s32 1, %s20
  %s23 = scalar_select 0, %s22, %s20
  $region1: #{tpu_custom_call.1} parent=0
    #allocation2 [shape = 'u8[8192]{0}', space=vmem, size = 0x2000, scoped, tag = 'input window, operand 0']
    #allocation3 [shape = 's32[2]{0}', space=sflag, size = 0x8, scoped, tag = 'scoped memory for tpu_custom_call.1']
    #allocation4 [shape = 's32[2]{0}', space=sflag, size = 0x8, scoped, tag = 'scoped memory for tpu_custom_call.1']
    #allocation5 [shape = 'u8[8192]{0}', space=vmem, size = 0x2000, scoped, tag = 'input window, operand 1']
    #allocation6 [shape = 's32[2]{0}', space=sflag, size = 0x8, scoped, tag = 'scoped memory for tpu_custom_call.1']
    #allocation7 [shape = 'u8[8192]{0}', space=vmem, size = 0x2000, scoped, tag = 'input window, operand 2']
    #allocation8 [shape = 'u8[16384]{0}', space=vmem, size = 0x4000, scoped, tag = 'input window, operand 13, single buffered']
    #allocation9 [shape = 's32[1]{0}', space=sflag, size = 0x4, scoped, tag = 'scoped memory for tpu_custom_call.1']
    #allocation10 [shape = 'u8[8192]{0}', space=vmem, size = 0x2000, scoped, tag = 'output window, operand 0']
    %24 = vsyncpa [#allocation3], 0
    %s25 = scalar_lea.sflag [#allocation3], 1
    %26 = vsyncpa %s25, 0
    %27 = vsyncpa [#allocation6], 0
    %s28 = scalar_lea.sflag [#allocation6], 1
    %29 = vsyncpa %s28, 0
    %30 = vsyncpa [#allocation9], 0
    %31 = vsyncpa [#allocation4], 0
    %s32 = scalar_lea.sflag [#allocation4], 1
    %33 = vsyncpa %s32, 0
    loop: start=0, step=1, limit=4
    $region2: #{tpu_custom_call.1} parent=1 // loop_pre_header
      _
    $region3: #{tpu_custom_call.1} parent=1 // loop_header
      %s35 = sphi 0, %s39
      %p36 = scmp.ge.s32.totalorder %s35, 4
      %s45 = sphi 0, %s47
      %s48 = sphi 0, %s45
      %s49 = sphi 0, %s48
      %s65 = sphi 0, %s49
      %s71 = sphi 0, %s73
      %s74 = sphi 0, %s71
      %s75 = sphi 0, %s74
      %s91 = sphi 0, %s75
      %s97 = sphi 0, %s99
      %s100 = sphi 0, %s97
      %s101 = sphi 0, %s100
      %s117 = sphi 0, %s101
      %s121 = sphi 0, %s121
      %s123 = sphi 0, %s121
      %s124 = sphi 0, %s123
      %s138 = sphi 0, %s124
      %s142 = sphi 0, %s142
      %s144 = sphi 0, %s142
      %s145 = sphi 0, %s144
      %s159 = sphi 0, %s145
      %s163 = sphi 0, %s163
      %s165 = sphi 0, %s163
      %s166 = sphi 0, %s165
      %s180 = sphi 0, %s166
      %s184 = sphi 0, %s184
      %s186 = sphi 0, %s184
      %s187 = sphi 0, %s186
      %s201 = sphi 0, %s187
      %s205 = sphi 0, %s205
      %s207 = sphi 0, %s205
      %s208 = sphi 0, %s207
      %s222 = sphi 0, %s208
      %s226 = sphi 0, %s226
      %s228 = sphi 0, %s226
      %s229 = sphi 0, %s228
      %s243 = sphi 0, %s229
      %s247 = sphi 0, %s247
      %s249 = sphi 0, %s247
      %s250 = sphi 0, %s249
      %s264 = sphi 0, %s250
      %s268 = sphi 0, %s268
      %s270 = sphi 0, %s268
      %s271 = sphi 0, %s270
      %s285 = sphi 0, %s271
      %s289 = sphi 0, %s289
      %s291 = sphi 0, %s289
      %s292 = sphi 0, %s291
      %s306 = sphi 0, %s292
      %s310 = sphi 0, %s310
      %s312 = sphi 0, %s310
      %s313 = sphi 0, %s312
      %s327 = sphi 0, %s313
      %s331 = sphi 0, %s331
      %s333 = sphi 0, %s331
      %s334 = sphi 0, %s333
      %s348 = sphi 0, %s334
      %s352 = sphi 0, %s352
      %s354 = sphi 0, %s352
      %s355 = sphi 0, %s354
      %s369 = sphi 0, %s355
      %s373 = sphi 0, %s373
      %s375 = sphi 0, %s373
      %s376 = sphi 0, %s375
      %s390 = sphi 0, %s376
      %s394 = sphi 0, %s394
      %s396 = sphi 0, %s394
      %s397 = sphi 0, %s396
      %s411 = sphi 0, %s397
      %s415 = sphi 0, %s415
      %s417 = sphi 0, %s415
      %s418 = sphi 0, %s417
      %s432 = sphi 0, %s418
      %s436 = sphi 0, %s436
      %s438 = sphi 0, %s436
      %s439 = sphi 0, %s438
      %s453 = sphi 0, %s439
      %s459 = sphi 0, %s461
      %s462 = sphi 0, %s459
      %s463 = sphi 0, %s462
      %s479 = sphi 0, %s463
    $region4: #{tpu_custom_call.1} parent=1 // loop_header_branch
      %38 = sbr.rel (%p36) target = $region8
    $region5: #{tpu_custom_call.1} parent=1 // loop_body
      %s40 = ssub.s32 %s35, 1
      %s41 = ssub.s32 %s35, 2
      %s42 = sadd.s32 %s35, 1
      %s43 = ssub.s32 %s35, %s42
      %p44 = scmp.eq.s32.totalorder %s43, 0
      %s46 = sadd.s32 %s45, 1
      %s47 = scalar_select %p44, %s45, %s46
      %p50 = pneg %p44
      %p51 = scmp.eq.s32.totalorder %s35, 1
      %p52 = por %p50, %p51
      %p53 = scmp.ne.s32.totalorder %s45, %s48
      %p54 = scmp.eq.s32.totalorder %s35, 0
      %p55 = por %p53, %p54
      %p56 = scmp.ne.s32.totalorder %s45, %s48
      %p57 = scmp.eq.s32.totalorder %s40, 1
      %p58 = por %p56, %p57
      %p59 = scmp.ne.s32.totalorder %s48, %s49
      %p60 = scmp.eq.s32.totalorder %s40, 0
      %p61 = por %p59, %p60
      %p62 = scmp.ne.s32.totalorder %s48, %s49
      %p63 = scmp.eq.s32.totalorder %s41, 1
      %p64 = por %p62, %p63
      %p66 = scmp.ne.s32.totalorder %s49, %s65
      %p67 = scmp.eq.s32.totalorder %s41, 0
      %p68 = por %p66, %p67
      %s69 = ssub.s32 %s35, %s42
      %p70 = scmp.eq.s32.totalorder %s69, 0
      %s72 = sadd.s32 %s71, 1
      %s73 = scalar_select %p70, %s71, %s72
      %p76 = pneg %p70
      %p77 = scmp.eq.s32.totalorder %s35, 1
      %p78 = por %p76, %p77
      %p79 = scmp.ne.s32.totalorder %s71, %s74
      %p80 = scmp.eq.s32.totalorder %s35, 0
      %p81 = por %p79, %p80
      %p82 = scmp.ne.s32.totalorder %s71, %s74
      %p83 = scmp.eq.s32.totalorder %s40, 1
      %p84 = por %p82, %p83
      %p85 = scmp.ne.s32.totalorder %s74, %s75
      %p86 = scmp.eq.s32.totalorder %s40, 0
      %p87 = por %p85, %p86
      %p88 = scmp.ne.s32.totalorder %s74, %s75
      %p89 = scmp.eq.s32.totalorder %s41, 1
      %p90 = por %p88, %p89
      %p92 = scmp.ne.s32.totalorder %s75, %s91
      %p93 = scmp.eq.s32.totalorder %s41, 0
      %p94 = por %p92, %p93
      %s95 = ssub.s32 %s35, %s42
      %p96 = scmp.eq.s32.totalorder %s95, 0
      %s98 = sadd.s32 %s97, 1
      %s99 = scalar_select %p96, %s97, %s98
      %p102 = pneg %p96
      %p103 = scmp.eq.s32.totalorder %s35, 1
      %p104 = por %p102, %p103
      %p105 = scmp.ne.s32.totalorder %s97, %s100
      %p106 = scmp.eq.s32.totalorder %s35, 0
      %p107 = por %p105, %p106
      %p108 = scmp.ne.s32.totalorder %s97, %s100
      %p109 = scmp.eq.s32.totalorder %s40, 1
      %p110 = por %p108, %p109
      %p111 = scmp.ne.s32.totalorder %s100, %s101
      %p112 = scmp.eq.s32.totalorder %s40, 0
      %p113 = por %p111, %p112
      %p114 = scmp.ne.s32.totalorder %s100, %s101
      %p115 = scmp.eq.s32.totalorder %s41, 1
      %p116 = por %p114, %p115
      %p118 = scmp.ne.s32.totalorder %s101, %s117
      %p119 = scmp.eq.s32.totalorder %s41, 0
      %p120 = por %p118, %p119
      %s122 = sadd.s32 %s121, 1
      %p125 = scmp.eq.s32.totalorder %s35, 1
      %p126 = scmp.ne.s32.totalorder %s121, %s123
      %p127 = scmp.eq.s32.totalorder %s35, 0
      %p128 = por %p126, %p127
      %p129 = scmp.ne.s32.totalorder %s121, %s123
      %p130 = scmp.eq.s32.totalorder %s40, 1
      %p131 = por %p129, %p130
      %p132 = scmp.ne.s32.totalorder %s123, %s124
      %p133 = scmp.eq.s32.totalorder %s40, 0
      %p134 = por %p132, %p133
      %p135 = scmp.ne.s32.totalorder %s123, %s124
      %p136 = scmp.eq.s32.totalorder %s41, 1
      %p137 = por %p135, %p136
      %p139 = scmp.ne.s32.totalorder %s124, %s138
      %p140 = scmp.eq.s32.totalorder %s41, 0
      %p141 = por %p139, %p140
      %s143 = sadd.s32 %s142, 1
      %p146 = scmp.eq.s32.totalorder %s35, 1
      %p147 = scmp.ne.s32.totalorder %s142, %s144
      %p148 = scmp.eq.s32.totalorder %s35, 0
      %p149 = por %p147, %p148
      %p150 = scmp.ne.s32.totalorder %s142, %s144
      %p151 = scmp.eq.s32.totalorder %s40, 1
      %p152 = por %p150, %p151
      %p153 = scmp.ne.s32.totalorder %s144, %s145
      %p154 = scmp.eq.s32.totalorder %s40, 0
      %p155 = por %p153, %p154
      %p156 = scmp.ne.s32.totalorder %s144, %s145
      %p157 = scmp.eq.s32.totalorder %s41, 1
      %p158 = por %p156, %p157
      %p160 = scmp.ne.s32.totalorder %s145, %s159
      %p161 = scmp.eq.s32.totalorder %s41, 0
      %p162 = por %p160, %p161
      %s164 = sadd.s32 %s163, 1
      %p167 = scmp.eq.s32.totalorder %s35, 1
      %p168 = scmp.ne.s32.totalorder %s163, %s165
      %p169 = scmp.eq.s32.totalorder %s35, 0
      %p170 = por %p168, %p169
      %p171 = scmp.ne.s32.totalorder %s163, %s165
      %p172 = scmp.eq.s32.totalorder %s40, 1
      %p173 = por %p171, %p172
      %p174 = scmp.ne.s32.totalorder %s165, %s166
      %p175 = scmp.eq.s32.totalorder %s40, 0
      %p176 = por %p174, %p175
      %p177 = scmp.ne.s32.totalorder %s165, %s166
      %p178 = scmp.eq.s32.totalorder %s41, 1
      %p179 = por %p177, %p178
      %p181 = scmp.ne.s32.totalorder %s166, %s180
      %p182 = scmp.eq.s32.totalorder %s41, 0
      %p183 = por %p181, %p182
      %s185 = sadd.s32 %s184, 1
      %p188 = scmp.eq.s32.totalorder %s35, 1
      %p189 = scmp.ne.s32.totalorder %s184, %s186
      %p190 = scmp.eq.s32.totalorder %s35, 0
      %p191 = por %p189, %p190
      %p192 = scmp.ne.s32.totalorder %s184, %s186
      %p193 = scmp.eq.s32.totalorder %s40, 1
      %p194 = por %p192, %p193
      %p195 = scmp.ne.s32.totalorder %s186, %s187
      %p196 = scmp.eq.s32.totalorder %s40, 0
      %p197 = por %p195, %p196
      %p198 = scmp.ne.s32.totalorder %s186, %s187
      %p199 = scmp.eq.s32.totalorder %s41, 1
      %p200 = por %p198, %p199
      %p202 = scmp.ne.s32.totalorder %s187, %s201
      %p203 = scmp.eq.s32.totalorder %s41, 0
      %p204 = por %p202, %p203
      %s206 = sadd.s32 %s205, 1
      %p209 = scmp.eq.s32.totalorder %s35, 1
      %p210 = scmp.ne.s32.totalorder %s205, %s207
      %p211 = scmp.eq.s32.totalorder %s35, 0
      %p212 = por %p210, %p211
      %p213 = scmp.ne.s32.totalorder %s205, %s207
      %p214 = scmp.eq.s32.totalorder %s40, 1
      %p215 = por %p213, %p214
      %p216 = scmp.ne.s32.totalorder %s207, %s208
      %p217 = scmp.eq.s32.totalorder %s40, 0
      %p218 = por %p216, %p217
      %p219 = scmp.ne.s32.totalorder %s207, %s208
      %p220 = scmp.eq.s32.totalorder %s41, 1
      %p221 = por %p219, %p220
      %p223 = scmp.ne.s32.totalorder %s208, %s222
      %p224 = scmp.eq.s32.totalorder %s41, 0
      %p225 = por %p223, %p224
      %s227 = sadd.s32 %s226, 1
      %p230 = scmp.eq.s32.totalorder %s35, 1
      %p231 = scmp.ne.s32.totalorder %s226, %s228
      %p232 = scmp.eq.s32.totalorder %s35, 0
      %p233 = por %p231, %p232
      %p234 = scmp.ne.s32.totalorder %s226, %s228
      %p235 = scmp.eq.s32.totalorder %s40, 1
      %p236 = por %p234, %p235
      %p237 = scmp.ne.s32.totalorder %s228, %s229
      %p238 = scmp.eq.s32.totalorder %s40, 0
      %p239 = por %p237, %p238
      %p240 = scmp.ne.s32.totalorder %s228, %s229
      %p241 = scmp.eq.s32.totalorder %s41, 1
      %p242 = por %p240, %p241
      %p244 = scmp.ne.s32.totalorder %s229, %s243
      %p245 = scmp.eq.s32.totalorder %s41, 0
      %p246 = por %p244, %p245
      %s248 = sadd.s32 %s247, 1
      %p251 = scmp.eq.s32.totalorder %s35, 1
      %p252 = scmp.ne.s32.totalorder %s247, %s249
      %p253 = scmp.eq.s32.totalorder %s35, 0
      %p254 = por %p252, %p253
      %p255 = scmp.ne.s32.totalorder %s247, %s249
      %p256 = scmp.eq.s32.totalorder %s40, 1
      %p257 = por %p255, %p256
      %p258 = scmp.ne.s32.totalorder %s249, %s250
      %p259 = scmp.eq.s32.totalorder %s40, 0
      %p260 = por %p258, %p259
      %p261 = scmp.ne.s32.totalorder %s249, %s250
      %p262 = scmp.eq.s32.totalorder %s41, 1
      %p263 = por %p261, %p262
      %p265 = scmp.ne.s32.totalorder %s250, %s264
      %p266 = scmp.eq.s32.totalorder %s41, 0
      %p267 = por %p265, %p266
      %s269 = sadd.s32 %s268, 1
      %p272 = scmp.eq.s32.totalorder %s35, 1
      %p273 = scmp.ne.s32.totalorder %s268, %s270
      %p274 = scmp.eq.s32.totalorder %s35, 0
      %p275 = por %p273, %p274
      %p276 = scmp.ne.s32.totalorder %s268, %s270
      %p277 = scmp.eq.s32.totalorder %s40, 1
      %p278 = por %p276, %p277
      %p279 = scmp.ne.s32.totalorder %s270, %s271
      %p280 = scmp.eq.s32.totalorder %s40, 0
      %p281 = por %p279, %p280
      %p282 = scmp.ne.s32.totalorder %s270, %s271
      %p283 = scmp.eq.s32.totalorder %s41, 1
      %p284 = por %p282, %p283
      %p286 = scmp.ne.s32.totalorder %s271, %s285
      %p287 = scmp.eq.s32.totalorder %s41, 0
      %p288 = por %p286, %p287
      %s290 = sadd.s32 %s289, 1
      %p293 = scmp.eq.s32.totalorder %s35, 1
      %p294 = scmp.ne.s32.totalorder %s289, %s291
      %p295 = scmp.eq.s32.totalorder %s35, 0
      %p296 = por %p294, %p295
      %p297 = scmp.ne.s32.totalorder %s289, %s291
      %p298 = scmp.eq.s32.totalorder %s40, 1
      %p299 = por %p297, %p298
      %p300 = scmp.ne.s32.totalorder %s291, %s292
      %p301 = scmp.eq.s32.totalorder %s40, 0
      %p302 = por %p300, %p301
      %p303 = scmp.ne.s32.totalorder %s291, %s292
      %p304 = scmp.eq.s32.totalorder %s41, 1
      %p305 = por %p303, %p304
      %p307 = scmp.ne.s32.totalorder %s292, %s306
      %p308 = scmp.eq.s32.totalorder %s41, 0
      %p309 = por %p307, %p308
      %s311 = sadd.s32 %s310, 1
      %p314 = scmp.eq.s32.totalorder %s35, 1
      %p315 = scmp.ne.s32.totalorder %s310, %s312
      %p316 = scmp.eq.s32.totalorder %s35, 0
      %p317 = por %p315, %p316
      %p318 = scmp.ne.s32.totalorder %s310, %s312
      %p319 = scmp.eq.s32.totalorder %s40, 1
      %p320 = por %p318, %p319
      %p321 = scmp.ne.s32.totalorder %s312, %s313
      %p322 = scmp.eq.s32.totalorder %s40, 0
      %p323 = por %p321, %p322
      %p324 = scmp.ne.s32.totalorder %s312, %s313
      %p325 = scmp.eq.s32.totalorder %s41, 1
      %p326 = por %p324, %p325
      %p328 = scmp.ne.s32.totalorder %s313, %s327
      %p329 = scmp.eq.s32.totalorder %s41, 0
      %p330 = por %p328, %p329
      %s332 = sadd.s32 %s331, 1
      %p335 = scmp.eq.s32.totalorder %s35, 1
      %p336 = scmp.ne.s32.totalorder %s331, %s333
      %p337 = scmp.eq.s32.totalorder %s35, 0
      %p338 = por %p336, %p337
      %p339 = scmp.ne.s32.totalorder %s331, %s333
      %p340 = scmp.eq.s32.totalorder %s40, 1
      %p341 = por %p339, %p340
      %p342 = scmp.ne.s32.totalorder %s333, %s334
      %p343 = scmp.eq.s32.totalorder %s40, 0
      %p344 = por %p342, %p343
      %p345 = scmp.ne.s32.totalorder %s333, %s334
      %p346 = scmp.eq.s32.totalorder %s41, 1
      %p347 = por %p345, %p346
      %p349 = scmp.ne.s32.totalorder %s334, %s348
      %p350 = scmp.eq.s32.totalorder %s41, 0
      %p351 = por %p349, %p350
      %s353 = sadd.s32 %s352, 1
      %p356 = scmp.eq.s32.totalorder %s35, 1
      %p357 = scmp.ne.s32.totalorder %s352, %s354
      %p358 = scmp.eq.s32.totalorder %s35, 0
      %p359 = por %p357, %p358
      %p360 = scmp.ne.s32.totalorder %s352, %s354
      %p361 = scmp.eq.s32.totalorder %s40, 1
      %p362 = por %p360, %p361
      %p363 = scmp.ne.s32.totalorder %s354, %s355
      %p364 = scmp.eq.s32.totalorder %s40, 0
      %p365 = por %p363, %p364
      %p366 = scmp.ne.s32.totalorder %s354, %s355
      %p367 = scmp.eq.s32.totalorder %s41, 1
      %p368 = por %p366, %p367
      %p370 = scmp.ne.s32.totalorder %s355, %s369
      %p371 = scmp.eq.s32.totalorder %s41, 0
      %p372 = por %p370, %p371
      %s374 = sadd.s32 %s373, 1
      %p377 = scmp.eq.s32.totalorder %s35, 1
      %p378 = scmp.ne.s32.totalorder %s373, %s375
      %p379 = scmp.eq.s32.totalorder %s35, 0
      %p380 = por %p378, %p379
      %p381 = scmp.ne.s32.totalorder %s373, %s375
      %p382 = scmp.eq.s32.totalorder %s40, 1
      %p383 = por %p381, %p382
      %p384 = scmp.ne.s32.totalorder %s375, %s376
      %p385 = scmp.eq.s32.totalorder %s40, 0
      %p386 = por %p384, %p385
      %p387 = scmp.ne.s32.totalorder %s375, %s376
      %p388 = scmp.eq.s32.totalorder %s41, 1
      %p389 = por %p387, %p388
      %p391 = scmp.ne.s32.totalorder %s376, %s390
      %p392 = scmp.eq.s32.totalorder %s41, 0
      %p393 = por %p391, %p392
      %s395 = sadd.s32 %s394, 1
      %p398 = scmp.eq.s32.totalorder %s35, 1
      %p399 = scmp.ne.s32.totalorder %s394, %s396
      %p400 = scmp.eq.s32.totalorder %s35, 0
      %p401 = por %p399, %p400
      %p402 = scmp.ne.s32.totalorder %s394, %s396
      %p403 = scmp.eq.s32.totalorder %s40, 1
      %p404 = por %p402, %p403
      %p405 = scmp.ne.s32.totalorder %s396, %s397
      %p406 = scmp.eq.s32.totalorder %s40, 0
      %p407 = por %p405, %p406
      %p408 = scmp.ne.s32.totalorder %s396, %s397
      %p409 = scmp.eq.s32.totalorder %s41, 1
      %p410 = por %p408, %p409
      %p412 = scmp.ne.s32.totalorder %s397, %s411
      %p413 = scmp.eq.s32.totalorder %s41, 0
      %p414 = por %p412, %p413
      %s416 = sadd.s32 %s415, 1
      %p419 = scmp.eq.s32.totalorder %s35, 1
      %p420 = scmp.ne.s32.totalorder %s415, %s417
      %p421 = scmp.eq.s32.totalorder %s35, 0
      %p422 = por %p420, %p421
      %p423 = scmp.ne.s32.totalorder %s415, %s417
      %p424 = scmp.eq.s32.totalorder %s40, 1
      %p425 = por %p423, %p424
      %p426 = scmp.ne.s32.totalorder %s417, %s418
      %p427 = scmp.eq.s32.totalorder %s40, 0
      %p428 = por %p426, %p427
      %p429 = scmp.ne.s32.totalorder %s417, %s418
      %p430 = scmp.eq.s32.totalorder %s41, 1
      %p431 = por %p429, %p430
      %p433 = scmp.ne.s32.totalorder %s418, %s432
      %p434 = scmp.eq.s32.totalorder %s41, 0
      %p435 = por %p433, %p434
      %s437 = sadd.s32 %s436, 1
      %p440 = scmp.eq.s32.totalorder %s35, 1
      %p441 = scmp.ne.s32.totalorder %s436, %s438
      %p442 = scmp.eq.s32.totalorder %s35, 0
      %p443 = por %p441, %p442
      %p444 = scmp.ne.s32.totalorder %s436, %s438
      %p445 = scmp.eq.s32.totalorder %s40, 1
      %p446 = por %p444, %p445
      %p447 = scmp.ne.s32.totalorder %s438, %s439
      %p448 = scmp.eq.s32.totalorder %s40, 0
      %p449 = por %p447, %p448
      %p450 = scmp.ne.s32.totalorder %s438, %s439
      %p451 = scmp.eq.s32.totalorder %s41, 1
      %p452 = por %p450, %p451
      %p454 = scmp.ne.s32.totalorder %s439, %s453
      %p455 = scmp.eq.s32.totalorder %s41, 0
      %p456 = por %p454, %p455
      %s457 = ssub.s32 %s35, %s42
      %p458 = scmp.eq.s32.totalorder %s457, 0
      %s460 = sadd.s32 %s459, 1
      %s461 = scalar_select %p458, %s459, %s460
      %p464 = pneg %p458
      %p465 = scmp.eq.s32.totalorder %s35, 1
      %p466 = por %p464, %p465
      %p467 = scmp.ne.s32.totalorder %s459, %s462
      %p468 = scmp.eq.s32.totalorder %s35, 0
      %p469 = por %p467, %p468
      %p470 = scmp.ne.s32.totalorder %s459, %s462
      %p471 = scmp.eq.s32.totalorder %s40, 1
      %p472 = por %p470, %p471
      %p473 = scmp.ne.s32.totalorder %s462, %s463
      %p474 = scmp.eq.s32.totalorder %s40, 0
      %p475 = por %p473, %p474
      %p476 = scmp.ne.s32.totalorder %s462, %s463
      %p477 = scmp.eq.s32.totalorder %s41, 1
      %p478 = por %p476, %p477
      %p480 = scmp.ne.s32.totalorder %s463, %s479
      %p481 = scmp.eq.s32.totalorder %s41, 0
      %p482 = por %p480, %p481
      %p483 = scmp.le.s32.totalorder 1, %s35
      %p484 = scmp.lt.s32.totalorder %s35, 3
      %p485 = pnand %p483, %p484
      %p486 = pneg %p485
      // Predicated region
      $region9: #{tpu_custom_call.1} parent=5 // pred_check
        _
      $region10: #{tpu_custom_call.1} parent=5 // pred_check_branch
        %488 = sbr.rel (%p485) target = $region12
      $region11: #{tpu_custom_call.1} parent=5 // pred_region
        %s489 = ssub.s32 %s35, 1
        // Predicated region
        $region13: #{tpu_custom_call.1} parent=11 // pred_check
          %p490 = pneg %p134
        $region14: #{tpu_custom_call.1} parent=11 // pred_check_branch
          %492 = sbr.rel (%p490) target = $region16
        $region15: #{tpu_custom_call.1} parent=11 // pred_region
          _
        $region16: #{tpu_custom_call.1} parent=11 // pred_fallthru
          _
        // Predicated region
        $region17: #{tpu_custom_call.1} parent=11 // pred_check
          %p493 = pneg %p155
        $region18: #{tpu_custom_call.1} parent=11 // pred_check_branch
          %495 = sbr.rel (%p493) target = $region20
        $region19: #{tpu_custom_call.1} parent=11 // pred_region
          _
        $region20: #{tpu_custom_call.1} parent=11 // pred_fallthru
          _
        // Predicated region
        $region21: #{tpu_custom_call.1} parent=11 // pred_check
          %p496 = pneg %p176
        $region22: #{tpu_custom_call.1} parent=11 // pred_check_branch
          %498 = sbr.rel (%p496) target = $region24
        $region23: #{tpu_custom_call.1} parent=11 // pred_region
          _
        $region24: #{tpu_custom_call.1} parent=11 // pred_fallthru
          _
        // Predicated region
        $region25: #{tpu_custom_call.1} parent=11 // pred_check
          %p499 = pneg %p197
        $region26: #{tpu_custom_call.1} parent=11 // pred_check_branch
          %501 = sbr.rel (%p499) target = $region28
        $region27: #{tpu_custom_call.1} parent=11 // pred_region
          _
        $region28: #{tpu_custom_call.1} parent=11 // pred_fallthru
          _
        // Predicated region
        $region29: #{tpu_custom_call.1} parent=11 // pred_check
          %p502 = pneg %p218
        $region30: #{tpu_custom_call.1} parent=11 // pred_check_branch
          %504 = sbr.rel (%p502) target = $region32
        $region31: #{tpu_custom_call.1} parent=11 // pred_region
          _
        $region32: #{tpu_custom_call.1} parent=11 // pred_fallthru
          _
        // Predicated region
        $region33: #{tpu_custom_call.1} parent=11 // pred_check
          %p505 = pneg %p239
        $region34: #{tpu_custom_call.1} parent=11 // pred_check_branch
          %507 = sbr.rel (%p505) target = $region36
        $region35: #{tpu_custom_call.1} parent=11 // pred_region
          _
        $region36: #{tpu_custom_call.1} parent=11 // pred_fallthru
          _
        // Predicated region
        $region37: #{tpu_custom_call.1} parent=11 // pred_check
          %p508 = pneg %p260
        $region38: #{tpu_custom_call.1} parent=11 // pred_check_branch
          %510 = sbr.rel (%p508) target = $region40
        $region39: #{tpu_custom_call.1} parent=11 // pred_region
          _
        $region40: #{tpu_custom_call.1} parent=11 // pred_fallthru
          _
        // Predicated region
        $region41: #{tpu_custom_call.1} parent=11 // pred_check
          %p511 = pneg %p281
        $region42: #{tpu_custom_call.1} parent=11 // pred_check_branch
          %513 = sbr.rel (%p511) target = $region44
        $region43: #{tpu_custom_call.1} parent=11 // pred_region
          _
        $region44: #{tpu_custom_call.1} parent=11 // pred_fallthru
          _
        // Predicated region
        $region45: #{tpu_custom_call.1} parent=11 // pred_check
          %p514 = pneg %p302
        $region46: #{tpu_custom_call.1} parent=11 // pred_check_branch
          %516 = sbr.rel (%p514) target = $region48
        $region47: #{tpu_custom_call.1} parent=11 // pred_region
          _
        $region48: #{tpu_custom_call.1} parent=11 // pred_fallthru
          _
        // Predicated region
        $region49: #{tpu_custom_call.1} parent=11 // pred_check
          %p517 = pneg %p323
        $region50: #{tpu_custom_call.1} parent=11 // pred_check_branch
          %519 = sbr.rel (%p517) target = $region52
        $region51: #{tpu_custom_call.1} parent=11 // pred_region
          _
        $region52: #{tpu_custom_call.1} parent=11 // pred_fallthru
          _
        // Predicated region
        $region53: #{tpu_custom_call.1} parent=11 // pred_check
          %p520 = pneg %p344
        $region54: #{tpu_custom_call.1} parent=11 // pred_check_branch
          %522 = sbr.rel (%p520) target = $region56
        $region55: #{tpu_custom_call.1} parent=11 // pred_region
          %s524 = ssub.s32 512, 512
          %525 = vsyncadd [#allocation9], %s524
          %s526 = sshll.u32 [#allocation8], 4
          %s527 = int_to_ptr.vmem [resolvable:$true] %s526
          %532 = dma.hbm_to_vmem [thread:$0]  %s13, 512, %s527, [#allocation9], 128, 128, 8
        $region56: #{tpu_custom_call.1} parent=11 // pred_fallthru
          _
        // Predicated region
        $region57: #{tpu_custom_call.1} parent=11 // pred_check
          %p533 = pneg %p365
        $region58: #{tpu_custom_call.1} parent=11 // pred_check_branch
          %535 = sbr.rel (%p533) target = $region60
        $region59: #{tpu_custom_call.1} parent=11 // pred_region
          _
        $region60: #{tpu_custom_call.1} parent=11 // pred_fallthru
          _
        // Predicated region
        $region61: #{tpu_custom_call.1} parent=11 // pred_check
          %p536 = pneg %p386
        $region62: #{tpu_custom_call.1} parent=11 // pred_check_branch
          %538 = sbr.rel (%p536) target = $region64
        $region63: #{tpu_custom_call.1} parent=11 // pred_region
          _
        $region64: #{tpu_custom_call.1} parent=11 // pred_fallthru
          _
        // Predicated region
        $region65: #{tpu_custom_call.1} parent=11 // pred_check
          %p539 = pneg %p407
        $region66: #{tpu_custom_call.1} parent=11 // pred_check_branch
          %541 = sbr.rel (%p539) target = $region68
        $region67: #{tpu_custom_call.1} parent=11 // pred_region
          _
        $region68: #{tpu_custom_call.1} parent=11 // pred_fallthru
          _
        // Predicated region
        $region69: #{tpu_custom_call.1} parent=11 // pred_check
          %p542 = pneg %p428
        $region70: #{tpu_custom_call.1} parent=11 // pred_check_branch
          %544 = sbr.rel (%p542) target = $region72
        $region71: #{tpu_custom_call.1} parent=11 // pred_region
          _
        $region72: #{tpu_custom_call.1} parent=11 // pred_fallthru
          _
        // Predicated region
        $region73: #{tpu_custom_call.1} parent=11 // pred_check
          %p545 = pneg %p449
        $region74: #{tpu_custom_call.1} parent=11 // pred_check_branch
          %547 = sbr.rel (%p545) target = $region76
        $region75: #{tpu_custom_call.1} parent=11 // pred_region
          _
        $region76: #{tpu_custom_call.1} parent=11 // pred_fallthru
          _
      $region12: #{tpu_custom_call.1} parent=5 // pred_fallthru
        _
      %p548 = scmp.lt.s32.totalorder %s35, 2
      // Predicated region
      $region77: #{tpu_custom_call.1} parent=5 // pred_check
        %p549 = pneg %p548
      $region78: #{tpu_custom_call.1} parent=5 // pred_check_branch
        %551 = sbr.rel (%p549) target = $region80
      $region79: #{tpu_custom_call.1} parent=5 // pred_region
        // Predicated region
        $region81: #{tpu_custom_call.1} parent=79 // pred_check
          %p552 = pneg %p55
        $region82: #{tpu_custom_call.1} parent=79 // pred_check_branch
          %554 = sbr.rel (%p552) target = $region84
        $region83: #{tpu_custom_call.1} parent=79 // pred_region
          %s555 = sand.u32 %s45, 1
          %s556 = scalar_lea.sflag [#allocation3], %s555
          %s557 = sand.u32 %s45, 1
          %s558 = smul.addr %s557, 8
          %s559 = scalar_lea.vmem [#allocation2], %s558
          %s561 = ssub.s32 128, 128
          %562 = vsyncadd %s556, %s561
          %s563 = smul.addr %s35, 128
          %s564 = scalar_lea.hbm %s0, %s563
          %s566 = sshll.u32 %s559, 4
          %s567 = int_to_ptr.vmem [resolvable:$true] %s566
          %569 = dma.hbm_to_vmem [thread:$0]  %s564, 128, %s567, %s556
        $region84: #{tpu_custom_call.1} parent=79 // pred_fallthru
          _
        // Predicated region
        $region85: #{tpu_custom_call.1} parent=79 // pred_check
          %p570 = pneg %p81
        $region86: #{tpu_custom_call.1} parent=79 // pred_check_branch
          %572 = sbr.rel (%p570) target = $region88
        $region87: #{tpu_custom_call.1} parent=79 // pred_region
          %s573 = sand.u32 %s35, 1
          %s574 = scalar_lea.sflag [#allocation6], %s573
          %s575 = sand.u32 %s71, 1
          %s576 = smul.addr %s575, 8
          %s577 = scalar_lea.vmem [#allocation5], %s576
          %s579 = ssub.s32 128, 128
          %580 = vsyncadd %s574, %s579
          %s581 = smul.addr %s35, 128
          %s582 = scalar_lea.hbm %s1, %s581
          %s584 = sshll.u32 %s577, 4
          %s585 = int_to_ptr.vmem [resolvable:$true] %s584
          %587 = dma.hbm_to_vmem [thread:$0]  %s582, 128, %s585, %s574
        $region88: #{tpu_custom_call.1} parent=79 // pred_fallthru
          _
        // Predicated region
        $region89: #{tpu_custom_call.1} parent=79 // pred_check
          %p588 = pneg %p107
        $region90: #{tpu_custom_call.1} parent=79 // pred_check_branch
          %590 = sbr.rel (%p588) target = $region92
        $region91: #{tpu_custom_call.1} parent=79 // pred_region
          %s591 = sand.u32 %s35, 1
          %s592 = scalar_lea.sflag [#allocation6], %s591
          %s593 = sand.u32 %s97, 1
          %s594 = smul.addr %s593, 8
          %s595 = scalar_lea.vmem [#allocation7], %s594
          %s597 = ssub.s32 128, 128
          %598 = vsyncadd %s592, %s597
          %s599 = smul.addr %s35, 128
          %s600 = scalar_lea.hbm %s2, %s599
          %s602 = sshll.u32 %s595, 4
          %s603 = int_to_ptr.vmem [resolvable:$true] %s602
          %605 = dma.hbm_to_vmem [thread:$0]  %s600, 128, %s603, %s592
        $region92: #{tpu_custom_call.1} parent=79 // pred_fallthru
          _
      $region80: #{tpu_custom_call.1} parent=5 // pred_fallthru
        _
      %p606 = scmp.le.s32.totalorder 1, %s35
      %p607 = scmp.lt.s32.totalorder %s35, 3
      %p608 = pnand %p606, %p607
      %p609 = pneg %p608
      // Predicated region
      $region93: #{tpu_custom_call.1} parent=5 // pred_check
        _
      $region94: #{tpu_custom_call.1} parent=5 // pred_check_branch
        %611 = sbr.rel (%p608) target = $region96
      $region95: #{tpu_custom_call.1} parent=5 // pred_region
        %s612 = ssub.s32 %s35, 1
        %s613 = sand.u32 %s48, 1
        %s614 = scalar_lea.sflag [#allocation3], %s613
        %s615 = sand.u32 %s48, 1
        %s616 = smul.addr %s615, 8
        %s617 = scalar_lea.vmem [#allocation2], %s616
        // Predicated region
        $region97: #{tpu_custom_call.1} parent=95 // pred_check
          %p618 = pneg %p61
        $region98: #{tpu_custom_call.1} parent=95 // pred_check_branch
          %620 = sbr.rel (%p618) target = $region100
        $region99: #{tpu_custom_call.1} parent=95 // pred_region
          %621 = dma.done %s614, 128
        $region100: #{tpu_custom_call.1} parent=95 // pred_fallthru
          _
        %s622 = sand.u32 %s40, 1
        %s623 = scalar_lea.sflag [#allocation6], %s622
        %s624 = sand.u32 %s74, 1
        %s625 = smul.addr %s624, 8
        %s626 = scalar_lea.vmem [#allocation5], %s625
        // Predicated region
        $region101: #{tpu_custom_call.1} parent=95 // pred_check
          %p627 = pneg %p87
        $region102: #{tpu_custom_call.1} parent=95 // pred_check_branch
          %629 = sbr.rel (%p627) target = $region104
        $region103: #{tpu_custom_call.1} parent=95 // pred_region
          %630 = dma.done %s623, 128
        $region104: #{tpu_custom_call.1} parent=95 // pred_fallthru
          _
        %s631 = sand.u32 %s40, 1
        %s632 = scalar_lea.sflag [#allocation6], %s631
        %s633 = sand.u32 %s100, 1
        %s634 = smul.addr %s633, 8
        %s635 = scalar_lea.vmem [#allocation7], %s634
        // Predicated region
        $region105: #{tpu_custom_call.1} parent=95 // pred_check
          %p636 = pneg %p113
        $region106: #{tpu_custom_call.1} parent=95 // pred_check_branch
          %638 = sbr.rel (%p636) target = $region108
        $region107: #{tpu_custom_call.1} parent=95 // pred_region
          %639 = dma.done %s632, 128
        $region108: #{tpu_custom_call.1} parent=95 // pred_fallthru
          _
        // Predicated region
        $region109: #{tpu_custom_call.1} parent=95 // pred_check
          %p640 = pneg %p344
        $region110: #{tpu_custom_call.1} parent=95 // pred_check_branch
          %642 = sbr.rel (%p640) target = $region112
        $region111: #{tpu_custom_call.1} parent=95 // pred_region
          %643 = dma.done [#allocation9], 512
        $region112: #{tpu_custom_call.1} parent=95 // pred_fallthru
          _
        %s644 = sand.u32 %s48, 1
        %s645 = scalar_lea.sflag [#allocation3], %s644
        %s646 = sand.u32 %s48, 1
        %s647 = smul.addr %s646, 8
        %s648 = scalar_lea.vmem [#allocation2], %s647
        %p649 = pneg %p61
        %p650 = pneg %p58
        %s651 = sand.u32 %s40, 1
        %s652 = scalar_lea.sflag [#allocation6], %s651
        %s653 = sand.u32 %s74, 1
        %s654 = smul.addr %s653, 8
        %s655 = scalar_lea.vmem [#allocation5], %s654
        %p656 = pneg %p87
        %p657 = pneg %p84
        %s658 = sand.u32 %s40, 1
        %s659 = scalar_lea.sflag [#allocation6], %s658
        %s660 = sand.u32 %s100, 1
        %s661 = smul.addr %s660, 8
        %s662 = scalar_lea.vmem [#allocation7], %s661
        %p663 = pneg %p113
        %p664 = pneg %p110
        %p665 = pneg %p134
        %p666 = pneg %p131
        %p667 = pneg %p155
        %p668 = pneg %p152
        %p669 = pneg %p176
        %p670 = pneg %p173
        %p671 = pneg %p197
        %p672 = pneg %p194
        %p673 = pneg %p218
        %p674 = pneg %p215
        %p675 = pneg %p239
        %p676 = pneg %p236
        %p677 = pneg %p260
        %p678 = pneg %p257
        %p679 = pneg %p281
        %p680 = pneg %p278
        %p681 = pneg %p302
        %p682 = pneg %p299
        %p683 = pneg %p323
        %p684 = pneg %p320
        %p685 = pneg %p344
        %p686 = pneg %p341
        %p687 = pneg %p365
        %p688 = pneg %p362
        %p689 = pneg %p386
        %p690 = pneg %p383
        %p691 = pneg %p407
        %p692 = pneg %p404
        %p693 = pneg %p428
        %p694 = pneg %p425
        %p695 = pneg %p449
        %p696 = pneg %p446
        %p697 = pneg %p475
        %p698 = pneg %p472
        %s699 = sand.u32 %s462, 1
        %s700 = scalar_lea.sflag [#allocation4], %s699
        %s701 = sand.u32 %s462, 1
        %s702 = smul.addr %s701, 8
        %s703 = scalar_lea.vmem [#allocation10], %s702
        %v704 = vld [vmem:[%s617] sm:$0xff]
        %v705 = vld [vmem:[%s626] sm:$0xff]
        %v706 = vld [vmem:[%s17] sm:$0x1]
        %v707 = vld [vmem:[%s18] sm:$0x1]
        %v708 = vld [vmem:[%s3] sm:$0xff]
        %v709 = vld [vmem:[%s3 + $0x8] sm:$0xff]
        %v710 = vld [vmem:[%s3 + $0x10] sm:$0xff]
        %v711 = vld [vmem:[%s3 + $0x18] sm:$0xff]
        %v712 = vld [vmem:[%s4] sm:$0x1]
        %v714 = vlaneseq
        %v715 = vshrl.u32 %v714, 7
        %v716 = vsub.s32 0, %v715
        %v717 = vrot.slane %v712, %v716
        %vm719 = vcmask 261120
        %v721 = vsel %vm719, %v704, 0
        %723 = vmatprep.subr.mxu0 0.0
        %724 = vmatpush1.msra.mxu0 0.0
        %725 = vmatprep.subr.mxu0 0.0
        %726 = vmatpush1.msra.mxu0 0.0
        %727 = vmatprep.subr.mxu0 0.0
        %728 = vmatpush1.msra.mxu0 0.0
        %729 = vmatprep.subr.mxu0 0.0
        %730 = vmatpush1.msra.mxu0 0.0
        %731 = vmatprep.subr.mxu0 0.0
        %732 = vmatpush1.msra.mxu0 0.0
        %733 = vmatprep.subr.mxu0 0.0
        %734 = vmatpush1.msra.mxu0 0.0
        %735 = vmatprep.subr.mxu0 0.0
        %736 = vmatpush1.msra.mxu0 0.0
        %737 = vmatprep.subr.mxu0 0.0
        %738 = vmatpush1.msra.mxu0 0.0
        %739 = vmatprep.subr.mxu0 0.0
        %740 = vmatpush1.msra.mxu0 0.0
        %741 = vmatprep.subr.mxu0 0.0
        %742 = vmatpush1.msra.mxu0 0.0
        %743 = vmatprep.subr.mxu0 0.0
        %744 = vmatpush1.msra.mxu0 0.0
        %745 = vmatprep.subr.mxu0 0.0
        %746 = vmatpush1.msra.mxu0 0.0
        %747 = vmatprep.subr.mxu0 0.0
        %748 = vmatpush1.msra.mxu0 %v711
        %749 = vmatprep.subr.mxu0 0.0
        %750 = vmatpush1.msra.mxu0 %v710
        %751 = vmatprep.subr.mxu0 0.0
        %752 = vmatpush1.msra.mxu0 %v709
        %753 = vmatprep.subr.mxu0 0.0
        %754 = vmatpush1.msra.mxu0 %v708
        %755 = vmatprep.subr.mxu0 0.0
        %756 = vmatpush2.msra.mxu0 0.0
        %757 = vmatprep.subr.mxu0 0.0
        %758 = vmatpush2.msra.mxu0 0.0
        %759 = vmatprep.subr.mxu0 0.0
        %760 = vmatpush2.msra.mxu0 0.0
        %761 = vmatprep.subr.mxu0 0.0
        %762 = vmatpush2.msra.mxu0 0.0
        %763 = vmatprep.subr.mxu0 0.0
        %764 = vmatpush2.msra.mxu0 0.0
        %765 = vmatprep.subr.mxu0 0.0
        %766 = vmatpush2.msra.mxu0 0.0
        %767 = vmatprep.subr.mxu0 0.0
        %768 = vmatpush2.msra.mxu0 0.0
        %769 = vmatprep.subr.mxu0 0.0
        %770 = vmatpush2.msra.mxu0 0.0
        %771 = vmatprep.subr.mxu0 0.0
        %772 = vmatpush2.msra.mxu0 0.0
        %773 = vmatprep.subr.mxu0 0.0
        %774 = vmatpush2.msra.mxu0 0.0
        %775 = vmatprep.subr.mxu0 0.0
        %776 = vmatpush2.msra.mxu0 0.0
        %777 = vmatprep.subr.mxu0 0.0
        %778 = vmatpush2.msra.mxu0 0.0
        %779 = vmatprep.subr.mxu0 0.0
        %780 = vmatpush2.msra.mxu0 0.0
        %781 = vmatprep.subr.mxu0 0.0
        %782 = vmatpush2.msra.mxu0 0.0
        %783 = vmatprep.subr.mxu0 0.0
        %784 = vmatpush2.msra.mxu0 0.0
        %785 = vmatprep.subr.mxu0 0.0
        %786 = vmatpush2.msra.mxu0 0.0
        %787 = vmatprep.mubr.f32.mxu0 0.0
        %788 = vmatmul.mubr.f32.gmra.mxu0 %v721
        %v789 = vpop.f32.mrf.mxu0
        %v790 = vadd.f32 %v717, %v789
        %v791 = vpop.f32.mrf.mxu0
        %792 = vdwg.mxu0
        %794 = vrot.lane.b32.xlu0 %v790, 120
        %v795 = vpop.permute.xlu0 %794
        %796 = vrot.lane.b32.xlu0 %v790, 112
        %v797 = vpop.permute.xlu0 %796
        %798 = vrot.lane.b32.xlu0 %v790, 104
        %v799 = vpop.permute.xlu0 %798
        %v800 = vld [vmem:[%s635] sm:$0xff]
        %v801 = vld [vmem:[%s5] sm:$0xff]
        %v802 = vld [vmem:[%s5 + $0x8] sm:$0xff]
        %v803 = vld [vmem:[%s5 + $0x10] sm:$0xff]
        %v804 = vld [vmem:[%s5 + $0x18] sm:$0xff]
        %v805 = vld [vmem:[%s6] sm:$0x1]
        %806 = vrot.lane.b32.xlu0 %v790, 96
        %v807 = vpop.permute.xlu0 %806
        %vm808 = vcmask 64512
        %v809 = vsel %vm808, %v790, 0
        %v811 = vsel %vm808, %v807, 0
        %813 = vmatprep.subr.mxu0 0.0
        %814 = vmatpush1.xpose.msra.mxu0 0.0
        %815 = vmatprep.subr.mxu0 0.0
        %816 = vmatpush1.xpose.msra.mxu0 0.0
        %817 = vmatprep.subr.mxu0 0.0
        %818 = vmatpush1.xpose.msra.mxu0 0.0
        %819 = vmatprep.subr.mxu0 0.0
        %820 = vmatpush1.xpose.msra.mxu0 0.0
        %821 = vmatprep.subr.mxu0 0.0
        %822 = vmatpush1.xpose.msra.mxu0 0.0
        %823 = vmatprep.subr.mxu0 0.0
        %824 = vmatpush1.xpose.msra.mxu0 0.0
        %825 = vmatprep.subr.mxu0 0.0
        %826 = vmatpush1.xpose.msra.mxu0 0.0
        %827 = vmatprep.subr.mxu0 0.0
        %828 = vmatpush1.xpose.msra.mxu0 0.0
        %829 = vmatprep.subr.mxu0 0.0
        %830 = vmatpush1.xpose.msra.mxu0 0.0
        %831 = vmatprep.subr.mxu0 0.0
        %832 = vmatpush1.xpose.msra.mxu0 0.0
        %833 = vmatprep.subr.mxu0 0.0
        %834 = vmatpush1.xpose.msra.mxu0 0.0
        %835 = vmatprep.subr.mxu0 0.0
        %836 = vmatpush1.xpose.msra.mxu0 0.0
        %837 = vmatprep.subr.mxu0 0.0
        %838 = vmatpush1.xpose.msra.mxu0 0.0
        %839 = vmatprep.subr.mxu0 0.0
        %840 = vmatpush1.xpose.msra.mxu0 0.0
        %841 = vmatprep.subr.mxu0 0.0
        %842 = vmatpush1.xpose.msra.mxu0 0.0
        %843 = vmatprep.subr.mxu0 0.0
        %844 = vmatpush1.xpose.msra.mxu0 %v811
        %845 = vmatprep.subr.mxu0 0.0
        %846 = vmatpush2.xpose.msra.mxu0 0.0
        %847 = vmatprep.subr.mxu0 0.0
        %848 = vmatpush2.xpose.msra.mxu0 0.0
        %849 = vmatprep.subr.mxu0 0.0
        %850 = vmatpush2.xpose.msra.mxu0 0.0
        %851 = vmatprep.subr.mxu0 0.0
        %852 = vmatpush2.xpose.msra.mxu0 0.0
        %853 = vmatprep.subr.mxu0 0.0
        %854 = vmatpush2.xpose.msra.mxu0 0.0
        %855 = vmatprep.subr.mxu0 0.0
        %856 = vmatpush2.xpose.msra.mxu0 0.0
        %857 = vmatprep.subr.mxu0 0.0
        %858 = vmatpush2.xpose.msra.mxu0 0.0
        %859 = vmatprep.subr.mxu0 0.0
        %860 = vmatpush2.xpose.msra.mxu0 0.0
        %861 = vmatprep.subr.mxu0 0.0
        %862 = vmatpush2.xpose.msra.mxu0 0.0
        %863 = vmatprep.subr.mxu0 0.0
        %864 = vmatpush2.xpose.msra.mxu0 0.0
        %865 = vmatprep.subr.mxu0 0.0
        %866 = vmatpush2.xpose.msra.mxu0 0.0
        %867 = vmatprep.subr.mxu0 0.0
        %868 = vmatpush2.xpose.msra.mxu0 0.0
        %869 = vmatprep.subr.mxu0 0.0
        %870 = vmatpush2.xpose.msra.mxu0 0.0
        %871 = vmatprep.subr.mxu0 0.0
        %872 = vmatpush2.xpose.msra.mxu0 0.0
        %873 = vmatprep.subr.mxu0 0.0
        %874 = vmatpush2.xpose.msra.mxu0 0.0
        %875 = vmatprep.subr.mxu0 0.0
        %876 = vmatpush2.xpose.msra.mxu0 0.0
        %877 = vmatprep.mubr.f32.mxu0 0.0
        %878 = vmatmul.mubr.f32.gmra.mxu0 %v809
        %v879 = vpop.f32.mrf.mxu0
        %v880 = vadd.f32 0.0, %v879
        %v881 = vpop.f32.mrf.mxu0
        %882 = vdwg.mxu0
        %883 = vrot.lane.b32.xlu0 %v795, 96
        %v884 = vpop.permute.xlu0 %883
        %v885 = vsel %vm808, %v795, 0
        %v887 = vsel %vm808, %v884, 0
        %889 = vmatprep.subr.mxu0 0.0
        %890 = vmatpush1.xpose.msra.mxu0 0.0
        %891 = vmatprep.subr.mxu0 0.0
        %892 = vmatpush1.xpose.msra.mxu0 0.0
        %893 = vmatprep.subr.mxu0 0.0
        %894 = vmatpush1.xpose.msra.mxu0 0.0
        %895 = vmatprep.subr.mxu0 0.0
        %896 = vmatpush1.xpose.msra.mxu0 0.0
        %897 = vmatprep.subr.mxu0 0.0
        %898 = vmatpush1.xpose.msra.mxu0 0.0
        %899 = vmatprep.subr.mxu0 0.0
        %900 = vmatpush1.xpose.msra.mxu0 0.0
        %901 = vmatprep.subr.mxu0 0.0
        %902 = vmatpush1.xpose.msra.mxu0 0.0
        %903 = vmatprep.subr.mxu0 0.0
        %904 = vmatpush1.xpose.msra.mxu0 0.0
        %905 = vmatprep.subr.mxu0 0.0
        %906 = vmatpush1.xpose.msra.mxu0 0.0
        %907 = vmatprep.subr.mxu0 0.0
        %908 = vmatpush1.xpose.msra.mxu0 0.0
        %909 = vmatprep.subr.mxu0 0.0
        %910 = vmatpush1.xpose.msra.mxu0 0.0
        %911 = vmatprep.subr.mxu0 0.0
        %912 = vmatpush1.xpose.msra.mxu0 0.0
        %913 = vmatprep.subr.mxu0 0.0
        %914 = vmatpush1.xpose.msra.mxu0 0.0
        %915 = vmatprep.subr.mxu0 0.0
        %916 = vmatpush1.xpose.msra.mxu0 0.0
        %917 = vmatprep.subr.mxu0 0.0
        %918 = vmatpush1.xpose.msra.mxu0 0.0
        %919 = vmatprep.subr.mxu0 0.0
        %920 = vmatpush1.xpose.msra.mxu0 %v887
        %921 = vmatprep.subr.mxu0 0.0
        %922 = vmatpush2.xpose.msra.mxu0 0.0
        %923 = vmatprep.subr.mxu0 0.0
        %924 = vmatpush2.xpose.msra.mxu0 0.0
        %925 = vmatprep.subr.mxu0 0.0
        %926 = vmatpush2.xpose.msra.mxu0 0.0
        %927 = vmatprep.subr.mxu0 0.0
        %928 = vmatpush2.xpose.msra.mxu0 0.0
        %929 = vmatprep.subr.mxu0 0.0
        %930 = vmatpush2.xpose.msra.mxu0 0.0
        %931 = vmatprep.subr.mxu0 0.0
        %932 = vmatpush2.xpose.msra.mxu0 0.0
        %933 = vmatprep.subr.mxu0 0.0
        %934 = vmatpush2.xpose.msra.mxu0 0.0
        %935 = vmatprep.subr.mxu0 0.0
        %936 = vmatpush2.xpose.msra.mxu0 0.0
        %937 = vmatprep.subr.mxu0 0.0
        %938 = vmatpush2.xpose.msra.mxu0 0.0
        %939 = vmatprep.subr.mxu0 0.0
        %940 = vmatpush2.xpose.msra.mxu0 0.0
        %941 = vmatprep.subr.mxu0 0.0
        %942 = vmatpush2.xpose.msra.mxu0 0.0
        %943 = vmatprep.subr.mxu0 0.0
        %944 = vmatpush2.xpose.msra.mxu0 0.0
        %945 = vmatprep.subr.mxu0 0.0
        %946 = vmatpush2.xpose.msra.mxu0 0.0
        %947 = vmatprep.subr.mxu0 0.0
        %948 = vmatpush2.xpose.msra.mxu0 0.0
        %949 = vmatprep.subr.mxu0 0.0
        %950 = vmatpush2.xpose.msra.mxu0 0.0
        %951 = vmatprep.subr.mxu0 0.0
        %952 = vmatpush2.xpose.msra.mxu0 0.0
        %953 = vmatprep.mubr.f32.mxu0 0.0
        %954 = vmatmul.mubr.f32.gmra.mxu0 %v885
        %v955 = vpop.f32.mrf.mxu0
        %v956 = vadd.f32 0.0, %v955
        %v957 = vpop.f32.mrf.mxu0
        %958 = vdwg.mxu0
        %959 = vrot.lane.b32.xlu0 %v797, 96
        %v960 = vpop.permute.xlu0 %959
        %v961 = vsel %vm808, %v797, 0
        %v963 = vsel %vm808, %v960, 0
        %965 = vmatprep.subr.mxu0 0.0
        %966 = vmatpush1.xpose.msra.mxu0 0.0
        %967 = vmatprep.subr.mxu0 0.0
        %968 = vmatpush1.xpose.msra.mxu0 0.0
        %969 = vmatprep.subr.mxu0 0.0
        %970 = vmatpush1.xpose.msra.mxu0 0.0
        %971 = vmatprep.subr.mxu0 0.0
        %972 = vmatpush1.xpose.msra.mxu0 0.0
        %973 = vmatprep.subr.mxu0 0.0
        %974 = vmatpush1.xpose.msra.mxu0 0.0
        %975 = vmatprep.subr.mxu0 0.0
        %976 = vmatpush1.xpose.msra.mxu0 0.0
        %977 = vmatprep.subr.mxu0 0.0
        %978 = vmatpush1.xpose.msra.mxu0 0.0
        %979 = vmatprep.subr.mxu0 0.0
        %980 = vmatpush1.xpose.msra.mxu0 0.0
        %981 = vmatprep.subr.mxu0 0.0
        %982 = vmatpush1.xpose.msra.mxu0 0.0
        %983 = vmatprep.subr.mxu0 0.0
        %984 = vmatpush1.xpose.msra.mxu0 0.0
        %985 = vmatprep.subr.mxu0 0.0
        %986 = vmatpush1.xpose.msra.mxu0 0.0
        %987 = vmatprep.subr.mxu0 0.0
        %988 = vmatpush1.xpose.msra.mxu0 0.0
        %989 = vmatprep.subr.mxu0 0.0
        %990 = vmatpush1.xpose.msra.mxu0 0.0
        %991 = vmatprep.subr.mxu0 0.0
        %992 = vmatpush1.xpose.msra.mxu0 0.0
        %993 = vmatprep.subr.mxu0 0.0
        %994 = vmatpush1.xpose.msra.mxu0 0.0
        %995 = vmatprep.subr.mxu0 0.0
        %996 = vmatpush1.xpose.msra.mxu0 %v963
        %997 = vmatprep.subr.mxu0 0.0
        %998 = vmatpush2.xpose.msra.mxu0 0.0
        %999 = vmatprep.subr.mxu0 0.0
        %1000 = vmatpush2.xpose.msra.mxu0 0.0
        %1001 = vmatprep.subr.mxu0 0.0
        %1002 = vmatpush2.xpose.msra.mxu0 0.0
        %1003 = vmatprep.subr.mxu0 0.0
        %1004 = vmatpush2.xpose.msra.mxu0 0.0
        %1005 = vmatprep.subr.mxu0 0.0
        %1006 = vmatpush2.xpose.msra.mxu0 0.0
        %1007 = vmatprep.subr.mxu0 0.0
        %1008 = vmatpush2.xpose.msra.mxu0 0.0
        %1009 = vmatprep.subr.mxu0 0.0
        %1010 = vmatpush2.xpose.msra.mxu0 0.0
        %1011 = vmatprep.subr.mxu0 0.0
        %1012 = vmatpush2.xpose.msra.mxu0 0.0
        %1013 = vmatprep.subr.mxu0 0.0
        %1014 = vmatpush2.xpose.msra.mxu0 0.0
        %1015 = vmatprep.subr.mxu0 0.0
        %1016 = vmatpush2.xpose.msra.mxu0 0.0
        %1017 = vmatprep.subr.mxu0 0.0
        %1018 = vmatpush2.xpose.msra.mxu0 0.0
        %1019 = vmatprep.subr.mxu0 0.0
        %1020 = vmatpush2.xpose.msra.mxu0 0.0
        %1021 = vmatprep.subr.mxu0 0.0
        %1022 = vmatpush2.xpose.msra.mxu0 0.0
        %1023 = vmatprep.subr.mxu0 0.0
        %1024 = vmatpush2.xpose.msra.mxu0 0.0
        %1025 = vmatprep.subr.mxu0 0.0
        %1026 = vmatpush2.xpose.msra.mxu0 0.0
        %1027 = vmatprep.subr.mxu0 0.0
        %1028 = vmatpush2.xpose.msra.mxu0 0.0
        %1029 = vmatprep.mubr.f32.mxu0 0.0
        %1030 = vmatmul.mubr.f32.gmra.mxu0 %v961
        %v1031 = vpop.f32.mrf.mxu0
        %v1032 = vadd.f32 0.0, %v1031
        %v1033 = vpop.f32.mrf.mxu0
        %1034 = vdwg.mxu0
        %1035 = vrot.lane.b32.xlu0 %v799, 96
        %v1036 = vpop.permute.xlu0 %1035
        %v1037 = vsel %vm808, %v799, 0
        %v1039 = vsel %vm808, %v1036, 0
        %1041 = vmatprep.subr.mxu0 0.0
        %1042 = vmatpush1.xpose.msra.mxu0 0.0
        %1043 = vmatprep.subr.mxu0 0.0
        %1044 = vmatpush1.xpose.msra.mxu0 0.0
        %1045 = vmatprep.subr.mxu0 0.0
        %1046 = vmatpush1.xpose.msra.mxu0 0.0
        %1047 = vmatprep.subr.mxu0 0.0
        %1048 = vmatpush1.xpose.msra.mxu0 0.0
        %1049 = vmatprep.subr.mxu0 0.0
        %1050 = vmatpush1.xpose.msra.mxu0 0.0
        %1051 = vmatprep.subr.mxu0 0.0
        %1052 = vmatpush1.xpose.msra.mxu0 0.0
        %1053 = vmatprep.subr.mxu0 0.0
        %1054 = vmatpush1.xpose.msra.mxu0 0.0
        %1055 = vmatprep.subr.mxu0 0.0
        %1056 = vmatpush1.xpose.msra.mxu0 0.0
        %1057 = vmatprep.subr.mxu0 0.0
        %1058 = vmatpush1.xpose.msra.mxu0 0.0
        %1059 = vmatprep.subr.mxu0 0.0
        %1060 = vmatpush1.xpose.msra.mxu0 0.0
        %1061 = vmatprep.subr.mxu0 0.0
        %1062 = vmatpush1.xpose.msra.mxu0 0.0
        %1063 = vmatprep.subr.mxu0 0.0
        %1064 = vmatpush1.xpose.msra.mxu0 0.0
        %1065 = vmatprep.subr.mxu0 0.0
        %1066 = vmatpush1.xpose.msra.mxu0 0.0
        %1067 = vmatprep.subr.mxu0 0.0
        %1068 = vmatpush1.xpose.msra.mxu0 0.0
        %1069 = vmatprep.subr.mxu0 0.0
        %1070 = vmatpush1.xpose.msra.mxu0 0.0
        %1071 = vmatprep.subr.mxu0 0.0
        %1072 = vmatpush1.xpose.msra.mxu0 %v1039
        %1073 = vmatprep.subr.mxu0 0.0
        %1074 = vmatpush2.xpose.msra.mxu0 0.0
        %1075 = vmatprep.subr.mxu0 0.0
        %1076 = vmatpush2.xpose.msra.mxu0 0.0
        %1077 = vmatprep.subr.mxu0 0.0
        %1078 = vmatpush2.xpose.msra.mxu0 0.0
        %1079 = vmatprep.subr.mxu0 0.0
        %1080 = vmatpush2.xpose.msra.mxu0 0.0
        %1081 = vmatprep.subr.mxu0 0.0
        %1082 = vmatpush2.xpose.msra.mxu0 0.0
        %1083 = vmatprep.subr.mxu0 0.0
        %1084 = vmatpush2.xpose.msra.mxu0 0.0
        %1085 = vmatprep.subr.mxu0 0.0
        %1086 = vmatpush2.xpose.msra.mxu0 0.0
        %1087 = vmatprep.subr.mxu0 0.0
        %1088 = vmatpush2.xpose.msra.mxu0 0.0
        %1089 = vmatprep.subr.mxu0 0.0
        %1090 = vmatpush2.xpose.msra.mxu0 0.0
        %1091 = vmatprep.subr.mxu0 0.0
        %1092 = vmatpush2.xpose.msra.mxu0 0.0
        %1093 = vmatprep.subr.mxu0 0.0
        %1094 = vmatpush2.xpose.msra.mxu0 0.0
        %1095 = vmatprep.subr.mxu0 0.0
        %1096 = vmatpush2.xpose.msra.mxu0 0.0
        %1097 = vmatprep.subr.mxu0 0.0
        %1098 = vmatpush2.xpose.msra.mxu0 0.0
        %1099 = vmatprep.subr.mxu0 0.0
        %1100 = vmatpush2.xpose.msra.mxu0 0.0
        %1101 = vmatprep.subr.mxu0 0.0
        %1102 = vmatpush2.xpose.msra.mxu0 0.0
        %1103 = vmatprep.subr.mxu0 0.0
        %1104 = vmatpush2.xpose.msra.mxu0 0.0
        %1105 = vmatprep.mubr.f32.mxu0 0.0
        %1106 = vmatmul.mubr.f32.gmra.mxu0 %v1037
        %v1107 = vpop.f32.mrf.mxu0
        %v1108 = vadd.f32 0.0, %v1107
        %v1109 = vpop.f32.mrf.mxu0
        %1110 = vdwg.mxu0
        %vm1111 = vcmp.eq.f32.partialorder %v800, 0.0
        %v1112 = vsel %vm1111, 1, 0
        %vm1113 = vcmp.eq.s32.totalorder %v1112, 1
        %v1114 = vsel %vm1113, -1e+20, %v880
        %v1115 = vsel %vm1113, -1e+20, %v956
        %v1116 = vsel %vm1113, -1e+20, %v1032
        %v1117 = vsel %vm1113, -1e+20, %v1108
        %v1118 = vmul.f32 %v1114, 0.35355338
        %v1119 = vmul.f32 %v1115, 0.35355338
        %v1120 = vmul.f32 %v1116, 0.35355338
        %v1121 = vmul.f32 %v1117, 0.35355338
        %v1122 = vsel %vm808, %v1118, -inf
        %1123 = vmax.xlane.f32.xlu0 %v1122
        %v1124 = vpop.xlane.xlu0 %1123
        %v1125 = vsel %vm808, %v1119, -inf
        %1126 = vmax.xlane.f32.xlu0 %v1125
        %v1127 = vpop.xlane.xlu0 %1126
        %v1128 = vsel %vm808, %v1120, -inf
        %1129 = vmax.xlane.f32.xlu0 %v1128
        %v1130 = vpop.xlane.xlu0 %1129
        %v1131 = vsel %vm808, %v1121, -inf
        %1132 = vmax.xlane.f32.xlu0 %v1131
        %v1133 = vpop.xlane.xlu0 %1132
        %v1134 = vsub.f32 %v1118, %v1124
        %v1135 = vsub.f32 %v1119, %v1127
        %v1136 = vsub.f32 %v1120, %v1130
        %v1137 = vsub.f32 %v1121, %v1133
        %v1138 = vmul.f32 %v1134, 1.442695
        %v1139 = vpow.pop %v1138
        %v1140 = vmul.f32 %v1135, 1.442695
        %v1141 = vpow.pop %v1140
        %v1142 = vmul.f32 %v1136, 1.442695
        %v1143 = vpow.pop %v1142
        %v1144 = vmul.f32 %v1137, 1.442695
        %v1145 = vpow.pop %v1144
        %v1146 = vsel %vm808, %v1139, 0.0
        %1147 = vadd.xlane.f32.xlu0 %v1146
        %v1148 = vpop.xlane.xlu0 %1147
        %v1149 = vsel %vm808, %v1141, 0.0
        %1150 = vadd.xlane.f32.xlu0 %v1149
        %v1151 = vpop.xlane.xlu0 %1150
        %v1152 = vsel %vm808, %v1143, 0.0
        %1153 = vadd.xlane.f32.xlu0 %v1152
        %v1154 = vpop.xlane.xlu0 %1153
        %v1155 = vsel %vm808, %v1145, 0.0
        %1156 = vadd.xlane.f32.xlu0 %v1155
        %v1157 = vpop.xlane.xlu0 %1156
        %1158 = vrot.lane.b32.xlu0 %v790, 64
        %v1159 = vpop.permute.xlu0 %1158
        %v1162 = vsel %vm808, %v1139, 0
        %1164 = vmatprep.subr.mxu0 0.0
        %1165 = vmatpush1.msra.mxu0 0.0
        %1166 = vmatprep.subr.mxu0 0.0
        %1167 = vmatpush1.msra.mxu0 0.0
        %1168 = vmatprep.subr.mxu0 0.0
        %1169 = vmatpush1.msra.mxu0 0.0
        %1170 = vmatprep.subr.mxu0 0.0
        %1171 = vmatpush1.msra.mxu0 0.0
        %1172 = vmatprep.subr.mxu0 0.0
        %1173 = vmatpush1.msra.mxu0 0.0
        %1174 = vmatprep.subr.mxu0 0.0
        %1175 = vmatpush1.msra.mxu0 0.0
        %1176 = vmatprep.subr.mxu0 0.0
        %1177 = vmatpush1.msra.mxu0 0.0
        %1178 = vmatprep.subr.mxu0 0.0
        %1179 = vmatpush1.msra.mxu0 0.0
        %1180 = vmatprep.subr.mxu0 0.0
        %1181 = vmatpush1.msra.mxu0 0.0
        %1182 = vmatprep.subr.mxu0 0.0
        %1183 = vmatpush1.msra.mxu0 0.0
        %1184 = vmatprep.subr.mxu0 0.0
        %1185 = vmatpush1.msra.mxu0 0.0
        %1186 = vmatprep.subr.mxu0 0.0
        %1187 = vmatpush1.msra.mxu0 0.0
        %1188 = vmatprep.subr.mxu0 0.0
        %1189 = vmatpush1.msra.mxu0 0.0
        %1190 = vmatprep.subr.mxu0 0.0
        %1191 = vmatpush1.msra.mxu0 0.0
        %1192 = vmatprep.subr.mxu0 0.0
        %1193 = vmatpush1.msra.mxu0 0.0
        %1194 = vmatprep.subr.mxu0 0.0
        %1195 = vmatpush1.msra.mxu0 %v1159
        %1196 = vmatprep.subr.mxu0 0.0
        %1197 = vmatpush2.msra.mxu0 0.0
        %1198 = vmatprep.subr.mxu0 0.0
        %1199 = vmatpush2.msra.mxu0 0.0
        %1200 = vmatprep.subr.mxu0 0.0
        %1201 = vmatpush2.msra.mxu0 0.0
        %1202 = vmatprep.subr.mxu0 0.0
        %1203 = vmatpush2.msra.mxu0 0.0
        %1204 = vmatprep.subr.mxu0 0.0
        %1205 = vmatpush2.msra.mxu0 0.0
        %1206 = vmatprep.subr.mxu0 0.0
        %1207 = vmatpush2.msra.mxu0 0.0
        %1208 = vmatprep.subr.mxu0 0.0
        %1209 = vmatpush2.msra.mxu0 0.0
        %1210 = vmatprep.subr.mxu0 0.0
        %1211 = vmatpush2.msra.mxu0 0.0
        %1212 = vmatprep.subr.mxu0 0.0
        %1213 = vmatpush2.msra.mxu0 0.0
        %1214 = vmatprep.subr.mxu0 0.0
        %1215 = vmatpush2.msra.mxu0 0.0
        %1216 = vmatprep.subr.mxu0 0.0
        %1217 = vmatpush2.msra.mxu0 0.0
        %1218 = vmatprep.subr.mxu0 0.0
        %1219 = vmatpush2.msra.mxu0 0.0
        %1220 = vmatprep.subr.mxu0 0.0
        %1221 = vmatpush2.msra.mxu0 0.0
        %1222 = vmatprep.subr.mxu0 0.0
        %1223 = vmatpush2.msra.mxu0 0.0
        %1224 = vmatprep.subr.mxu0 0.0
        %1225 = vmatpush2.msra.mxu0 0.0
        %1226 = vmatprep.subr.mxu0 0.0
        %1227 = vmatpush2.msra.mxu0 0.0
        %1228 = vmatprep.mubr.f32.mxu0 0.0
        %1229 = vmatmul.mubr.f32.gmra.mxu0 %v1162
        %v1230 = vpop.f32.mrf.mxu0
        %v1231 = vadd.f32 0.0, %v1230
        %v1232 = vpop.f32.mrf.mxu0
        %1233 = vdwg.mxu0
        %1234 = vrot.lane.b32.xlu0 %v795, 64
        %v1235 = vpop.permute.xlu0 %1234
        %v1238 = vsel %vm808, %v1141, 0
        %1240 = vmatprep.subr.mxu0 0.0
        %1241 = vmatpush1.msra.mxu0 0.0
        %1242 = vmatprep.subr.mxu0 0.0
        %1243 = vmatpush1.msra.mxu0 0.0
        %1244 = vmatprep.subr.mxu0 0.0
        %1245 = vmatpush1.msra.mxu0 0.0
        %1246 = vmatprep.subr.mxu0 0.0
        %1247 = vmatpush1.msra.mxu0 0.0
        %1248 = vmatprep.subr.mxu0 0.0
        %1249 = vmatpush1.msra.mxu0 0.0
        %1250 = vmatprep.subr.mxu0 0.0
        %1251 = vmatpush1.msra.mxu0 0.0
        %1252 = vmatprep.subr.mxu0 0.0
        %1253 = vmatpush1.msra.mxu0 0.0
        %1254 = vmatprep.subr.mxu0 0.0
        %1255 = vmatpush1.msra.mxu0 0.0
        %1256 = vmatprep.subr.mxu0 0.0
        %1257 = vmatpush1.msra.mxu0 0.0
        %1258 = vmatprep.subr.mxu0 0.0
        %1259 = vmatpush1.msra.mxu0 0.0
        %1260 = vmatprep.subr.mxu0 0.0
        %1261 = vmatpush1.msra.mxu0 0.0
        %1262 = vmatprep.subr.mxu0 0.0
        %1263 = vmatpush1.msra.mxu0 0.0
        %1264 = vmatprep.subr.mxu0 0.0
        %1265 = vmatpush1.msra.mxu0 0.0
        %1266 = vmatprep.subr.mxu0 0.0
        %1267 = vmatpush1.msra.mxu0 0.0
        %1268 = vmatprep.subr.mxu0 0.0
        %1269 = vmatpush1.msra.mxu0 0.0
        %1270 = vmatprep.subr.mxu0 0.0
        %1271 = vmatpush1.msra.mxu0 %v1235
        %1272 = vmatprep.subr.mxu0 0.0
        %1273 = vmatpush2.msra.mxu0 0.0
        %1274 = vmatprep.subr.mxu0 0.0
        %1275 = vmatpush2.msra.mxu0 0.0
        %1276 = vmatprep.subr.mxu0 0.0
        %1277 = vmatpush2.msra.mxu0 0.0
        %1278 = vmatprep.subr.mxu0 0.0
        %1279 = vmatpush2.msra.mxu0 0.0
        %1280 = vmatprep.subr.mxu0 0.0
        %1281 = vmatpush2.msra.mxu0 0.0
        %1282 = vmatprep.subr.mxu0 0.0
        %1283 = vmatpush2.msra.mxu0 0.0
        %1284 = vmatprep.subr.mxu0 0.0
        %1285 = vmatpush2.msra.mxu0 0.0
        %1286 = vmatprep.subr.mxu0 0.0
        %1287 = vmatpush2.msra.mxu0 0.0
        %1288 = vmatprep.subr.mxu0 0.0
        %1289 = vmatpush2.msra.mxu0 0.0
        %1290 = vmatprep.subr.mxu0 0.0
        %1291 = vmatpush2.msra.mxu0 0.0
        %1292 = vmatprep.subr.mxu0 0.0
        %1293 = vmatpush2.msra.mxu0 0.0
        %1294 = vmatprep.subr.mxu0 0.0
        %1295 = vmatpush2.msra.mxu0 0.0
        %1296 = vmatprep.subr.mxu0 0.0
        %1297 = vmatpush2.msra.mxu0 0.0
        %1298 = vmatprep.subr.mxu0 0.0
        %1299 = vmatpush2.msra.mxu0 0.0
        %1300 = vmatprep.subr.mxu0 0.0
        %1301 = vmatpush2.msra.mxu0 0.0
        %1302 = vmatprep.subr.mxu0 0.0
        %1303 = vmatpush2.msra.mxu0 0.0
        %1304 = vmatprep.mubr.f32.mxu0 0.0
        %1305 = vmatmul.mubr.f32.gmra.mxu0 %v1238
        %v1306 = vpop.f32.mrf.mxu0
        %v1307 = vadd.f32 0.0, %v1306
        %v1308 = vpop.f32.mrf.mxu0
        %1309 = vdwg.mxu0
        %1310 = vrot.lane.b32.xlu0 %v797, 64
        %v1311 = vpop.permute.xlu0 %1310
        %v1314 = vsel %vm808, %v1143, 0
        %1316 = vmatprep.subr.mxu0 0.0
        %1317 = vmatpush1.msra.mxu0 0.0
        %1318 = vmatprep.subr.mxu0 0.0
        %1319 = vmatpush1.msra.mxu0 0.0
        %1320 = vmatprep.subr.mxu0 0.0
        %1321 = vmatpush1.msra.mxu0 0.0
        %1322 = vmatprep.subr.mxu0 0.0
        %1323 = vmatpush1.msra.mxu0 0.0
        %1324 = vmatprep.subr.mxu0 0.0
        %1325 = vmatpush1.msra.mxu0 0.0
        %1326 = vmatprep.subr.mxu0 0.0
        %1327 = vmatpush1.msra.mxu0 0.0
        %1328 = vmatprep.subr.mxu0 0.0
        %1329 = vmatpush1.msra.mxu0 0.0
        %1330 = vmatprep.subr.mxu0 0.0
        %1331 = vmatpush1.msra.mxu0 0.0
        %1332 = vmatprep.subr.mxu0 0.0
        %1333 = vmatpush1.msra.mxu0 0.0
        %1334 = vmatprep.subr.mxu0 0.0
        %1335 = vmatpush1.msra.mxu0 0.0
        %1336 = vmatprep.subr.mxu0 0.0
        %1337 = vmatpush1.msra.mxu0 0.0
        %1338 = vmatprep.subr.mxu0 0.0
        %1339 = vmatpush1.msra.mxu0 0.0
        %1340 = vmatprep.subr.mxu0 0.0
        %1341 = vmatpush1.msra.mxu0 0.0
        %1342 = vmatprep.subr.mxu0 0.0
        %1343 = vmatpush1.msra.mxu0 0.0
        %1344 = vmatprep.subr.mxu0 0.0
        %1345 = vmatpush1.msra.mxu0 0.0
        %1346 = vmatprep.subr.mxu0 0.0
        %1347 = vmatpush1.msra.mxu0 %v1311
        %1348 = vmatprep.subr.mxu0 0.0
        %1349 = vmatpush2.msra.mxu0 0.0
        %1350 = vmatprep.subr.mxu0 0.0
        %1351 = vmatpush2.msra.mxu0 0.0
        %1352 = vmatprep.subr.mxu0 0.0
        %1353 = vmatpush2.msra.mxu0 0.0
        %1354 = vmatprep.subr.mxu0 0.0
        %1355 = vmatpush2.msra.mxu0 0.0
        %1356 = vmatprep.subr.mxu0 0.0
        %1357 = vmatpush2.msra.mxu0 0.0
        %1358 = vmatprep.subr.mxu0 0.0
        %1359 = vmatpush2.msra.mxu0 0.0
        %1360 = vmatprep.subr.mxu0 0.0
        %1361 = vmatpush2.msra.mxu0 0.0
        %1362 = vmatprep.subr.mxu0 0.0
        %1363 = vmatpush2.msra.mxu0 0.0
        %1364 = vmatprep.subr.mxu0 0.0
        %1365 = vmatpush2.msra.mxu0 0.0
        %1366 = vmatprep.subr.mxu0 0.0
        %1367 = vmatpush2.msra.mxu0 0.0
        %1368 = vmatprep.subr.mxu0 0.0
        %1369 = vmatpush2.msra.mxu0 0.0
        %1370 = vmatprep.subr.mxu0 0.0
        %1371 = vmatpush2.msra.mxu0 0.0
        %1372 = vmatprep.subr.mxu0 0.0
        %1373 = vmatpush2.msra.mxu0 0.0
        %1374 = vmatprep.subr.mxu0 0.0
        %1375 = vmatpush2.msra.mxu0 0.0
        %1376 = vmatprep.subr.mxu0 0.0
        %1377 = vmatpush2.msra.mxu0 0.0
        %1378 = vmatprep.subr.mxu0 0.0
        %1379 = vmatpush2.msra.mxu0 0.0
        %1380 = vmatprep.mubr.f32.mxu0 0.0
        %1381 = vmatmul.mubr.f32.gmra.mxu0 %v1314
        %v1382 = vpop.f32.mrf.mxu0
        %v1383 = vadd.f32 0.0, %v1382
        %v1384 = vpop.f32.mrf.mxu0
        %1385 = vdwg.mxu0
        %1386 = vrot.lane.b32.xlu0 %v799, 64
        %v1387 = vpop.permute.xlu0 %1386
        %v1390 = vsel %vm808, %v1145, 0
        %1392 = vmatprep.subr.mxu0 0.0
        %1393 = vmatpush1.msra.mxu0 0.0
        %1394 = vmatprep.subr.mxu0 0.0
        %1395 = vmatpush1.msra.mxu0 0.0
        %1396 = vmatprep.subr.mxu0 0.0
        %1397 = vmatpush1.msra.mxu0 0.0
        %1398 = vmatprep.subr.mxu0 0.0
        %1399 = vmatpush1.msra.mxu0 0.0
        %1400 = vmatprep.subr.mxu0 0.0
        %1401 = vmatpush1.msra.mxu0 0.0
        %1402 = vmatprep.subr.mxu0 0.0
        %1403 = vmatpush1.msra.mxu0 0.0
        %1404 = vmatprep.subr.mxu0 0.0
        %1405 = vmatpush1.msra.mxu0 0.0
        %1406 = vmatprep.subr.mxu0 0.0
        %1407 = vmatpush1.msra.mxu0 0.0
        %1408 = vmatprep.subr.mxu0 0.0
        %1409 = vmatpush1.msra.mxu0 0.0
        %1410 = vmatprep.subr.mxu0 0.0
        %1411 = vmatpush1.msra.mxu0 0.0
        %1412 = vmatprep.subr.mxu0 0.0
        %1413 = vmatpush1.msra.mxu0 0.0
        %1414 = vmatprep.subr.mxu0 0.0
        %1415 = vmatpush1.msra.mxu0 0.0
        %1416 = vmatprep.subr.mxu0 0.0
        %1417 = vmatpush1.msra.mxu0 0.0
        %1418 = vmatprep.subr.mxu0 0.0
        %1419 = vmatpush1.msra.mxu0 0.0
        %1420 = vmatprep.subr.mxu0 0.0
        %1421 = vmatpush1.msra.mxu0 0.0
        %1422 = vmatprep.subr.mxu0 0.0
        %1423 = vmatpush1.msra.mxu0 %v1387
        %1424 = vmatprep.subr.mxu0 0.0
        %1425 = vmatpush2.msra.mxu0 0.0
        %1426 = vmatprep.subr.mxu0 0.0
        %1427 = vmatpush2.msra.mxu0 0.0
        %1428 = vmatprep.subr.mxu0 0.0
        %1429 = vmatpush2.msra.mxu0 0.0
        %1430 = vmatprep.subr.mxu0 0.0
        %1431 = vmatpush2.msra.mxu0 0.0
        %1432 = vmatprep.subr.mxu0 0.0
        %1433 = vmatpush2.msra.mxu0 0.0
        %1434 = vmatprep.subr.mxu0 0.0
        %1435 = vmatpush2.msra.mxu0 0.0
        %1436 = vmatprep.subr.mxu0 0.0
        %1437 = vmatpush2.msra.mxu0 0.0
        %1438 = vmatprep.subr.mxu0 0.0
        %1439 = vmatpush2.msra.mxu0 0.0
        %1440 = vmatprep.subr.mxu0 0.0
        %1441 = vmatpush2.msra.mxu0 0.0
        %1442 = vmatprep.subr.mxu0 0.0
        %1443 = vmatpush2.msra.mxu0 0.0
        %1444 = vmatprep.subr.mxu0 0.0
        %1445 = vmatpush2.msra.mxu0 0.0
        %1446 = vmatprep.subr.mxu0 0.0
        %1447 = vmatpush2.msra.mxu0 0.0
        %1448 = vmatprep.subr.mxu0 0.0
        %1449 = vmatpush2.msra.mxu0 0.0
        %1450 = vmatprep.subr.mxu0 0.0
        %1451 = vmatpush2.msra.mxu0 0.0
        %1452 = vmatprep.subr.mxu0 0.0
        %1453 = vmatpush2.msra.mxu0 0.0
        %1454 = vmatprep.subr.mxu0 0.0
        %1455 = vmatpush2.msra.mxu0 0.0
        %1456 = vmatprep.mubr.f32.mxu0 0.0
        %1457 = vmatmul.mubr.f32.gmra.mxu0 %v1390
        %v1458 = vpop.f32.mrf.mxu0
        %v1459 = vadd.f32 0.0, %v1458
        %v1460 = vpop.f32.mrf.mxu0
        %1461 = vdwg.mxu0
        %v1462 = vrcp.pop %v1148
        %v1463 = vrcp.pop %v1151
        %v1464 = vrcp.pop %v1154
        %v1465 = vrcp.pop %v1157
        %v1466 = vmul.f32 %v1231, %v1462
        %v1467 = vmul.f32 %v1307, %v1463
        %v1468 = vmul.f32 %v1383, %v1464
        %v1469 = vmul.f32 %v1459, %v1465
        %v1471 = vsel %vm808, %v1466, 0
        %1473 = vmatprep.subr.mxu0 0.0
        %1474 = vmatpush1.msra.mxu0 0.0
        %1475 = vmatprep.subr.mxu0 0.0
        %1476 = vmatpush1.msra.mxu0 0.0
        %1477 = vmatprep.subr.mxu0 0.0
        %1478 = vmatpush1.msra.mxu0 0.0
        %1479 = vmatprep.subr.mxu0 0.0
        %1480 = vmatpush1.msra.mxu0 0.0
        %1481 = vmatprep.subr.mxu0 0.0
        %1482 = vmatpush1.msra.mxu0 0.0
        %1483 = vmatprep.subr.mxu0 0.0
        %1484 = vmatpush1.msra.mxu0 0.0
        %1485 = vmatprep.subr.mxu0 0.0
        %1486 = vmatpush1.msra.mxu0 0.0
        %1487 = vmatprep.subr.mxu0 0.0
        %1488 = vmatpush1.msra.mxu0 0.0
        %1489 = vmatprep.subr.mxu0 0.0
        %1490 = vmatpush1.msra.mxu0 0.0
        %1491 = vmatprep.subr.mxu0 0.0
        %1492 = vmatpush1.msra.mxu0 0.0
        %1493 = vmatprep.subr.mxu0 0.0
        %1494 = vmatpush1.msra.mxu0 0.0
        %1495 = vmatprep.subr.mxu0 0.0
        %1496 = vmatpush1.msra.mxu0 0.0
        %1497 = vmatprep.subr.mxu0 0.0
        %1498 = vmatpush1.msra.mxu0 0.0
        %1499 = vmatprep.subr.mxu0 0.0
        %1500 = vmatpush1.msra.mxu0 0.0
        %1501 = vmatprep.subr.mxu0 0.0
        %1502 = vmatpush1.msra.mxu0 0.0
        %1503 = vmatprep.subr.mxu0 0.0
        %1504 = vmatpush1.msra.mxu0 %v801
        %1505 = vmatprep.subr.mxu0 0.0
        %1506 = vmatpush2.msra.mxu0 0.0
        %1507 = vmatprep.subr.mxu0 0.0
        %1508 = vmatpush2.msra.mxu0 0.0
        %1509 = vmatprep.subr.mxu0 0.0
        %1510 = vmatpush2.msra.mxu0 0.0
        %1511 = vmatprep.subr.mxu0 0.0
        %1512 = vmatpush2.msra.mxu0 0.0
        %1513 = vmatprep.subr.mxu0 0.0
        %1514 = vmatpush2.msra.mxu0 0.0
        %1515 = vmatprep.subr.mxu0 0.0
        %1516 = vmatpush2.msra.mxu0 0.0
        %1517 = vmatprep.subr.mxu0 0.0
        %1518 = vmatpush2.msra.mxu0 0.0
        %1519 = vmatprep.subr.mxu0 0.0
        %1520 = vmatpush2.msra.mxu0 0.0
        %1521 = vmatprep.subr.mxu0 0.0
        %1522 = vmatpush2.msra.mxu0 0.0
        %1523 = vmatprep.subr.mxu0 0.0
        %1524 = vmatpush2.msra.mxu0 0.0
        %1525 = vmatprep.subr.mxu0 0.0
        %1526 = vmatpush2.msra.mxu0 0.0
        %1527 = vmatprep.subr.mxu0 0.0
        %1528 = vmatpush2.msra.mxu0 0.0
        %1529 = vmatprep.subr.mxu0 0.0
        %1530 = vmatpush2.msra.mxu0 0.0
        %1531 = vmatprep.subr.mxu0 0.0
        %1532 = vmatpush2.msra.mxu0 0.0
        %1533 = vmatprep.subr.mxu0 0.0
        %1534 = vmatpush2.msra.mxu0 0.0
        %1535 = vmatprep.subr.mxu0 0.0
        %1536 = vmatpush2.msra.mxu0 0.0
        %1537 = vmatprep.mubr.f32.mxu0 0.0
        %1538 = vmatmul.mubr.f32.gmra.mxu0 %v1471
        %v1539 = vpop.f32.mrf.mxu0
        %v1540 = vadd.f32 0.0, %v1539
        %v1541 = vpop.f32.mrf.mxu0
        %1542 = vdwg.mxu0
        %v1544 = vsel %vm808, %v1467, 0
        %1546 = vmatprep.subr.mxu0 0.0
        %1547 = vmatpush1.msra.mxu0 0.0
        %1548 = vmatprep.subr.mxu0 0.0
        %1549 = vmatpush1.msra.mxu0 0.0
        %1550 = vmatprep.subr.mxu0 0.0
        %1551 = vmatpush1.msra.mxu0 0.0
        %1552 = vmatprep.subr.mxu0 0.0
        %1553 = vmatpush1.msra.mxu0 0.0
        %1554 = vmatprep.subr.mxu0 0.0
        %1555 = vmatpush1.msra.mxu0 0.0
        %1556 = vmatprep.subr.mxu0 0.0
        %1557 = vmatpush1.msra.mxu0 0.0
        %1558 = vmatprep.subr.mxu0 0.0
        %1559 = vmatpush1.msra.mxu0 0.0
        %1560 = vmatprep.subr.mxu0 0.0
        %1561 = vmatpush1.msra.mxu0 0.0
        %1562 = vmatprep.subr.mxu0 0.0
        %1563 = vmatpush1.msra.mxu0 0.0
        %1564 = vmatprep.subr.mxu0 0.0
        %1565 = vmatpush1.msra.mxu0 0.0
        %1566 = vmatprep.subr.mxu0 0.0
        %1567 = vmatpush1.msra.mxu0 0.0
        %1568 = vmatprep.subr.mxu0 0.0
        %1569 = vmatpush1.msra.mxu0 0.0
        %1570 = vmatprep.subr.mxu0 0.0
        %1571 = vmatpush1.msra.mxu0 0.0
        %1572 = vmatprep.subr.mxu0 0.0
        %1573 = vmatpush1.msra.mxu0 0.0
        %1574 = vmatprep.subr.mxu0 0.0
        %1575 = vmatpush1.msra.mxu0 0.0
        %1576 = vmatprep.subr.mxu0 0.0
        %1577 = vmatpush1.msra.mxu0 %v802
        %1578 = vmatprep.subr.mxu0 0.0
        %1579 = vmatpush2.msra.mxu0 0.0
        %1580 = vmatprep.subr.mxu0 0.0
        %1581 = vmatpush2.msra.mxu0 0.0
        %1582 = vmatprep.subr.mxu0 0.0
        %1583 = vmatpush2.msra.mxu0 0.0
        %1584 = vmatprep.subr.mxu0 0.0
        %1585 = vmatpush2.msra.mxu0 0.0
        %1586 = vmatprep.subr.mxu0 0.0
        %1587 = vmatpush2.msra.mxu0 0.0
        %1588 = vmatprep.subr.mxu0 0.0
        %1589 = vmatpush2.msra.mxu0 0.0
        %1590 = vmatprep.subr.mxu0 0.0
        %1591 = vmatpush2.msra.mxu0 0.0
        %1592 = vmatprep.subr.mxu0 0.0
        %1593 = vmatpush2.msra.mxu0 0.0
        %1594 = vmatprep.subr.mxu0 0.0
        %1595 = vmatpush2.msra.mxu0 0.0
        %1596 = vmatprep.subr.mxu0 0.0
        %1597 = vmatpush2.msra.mxu0 0.0
        %1598 = vmatprep.subr.mxu0 0.0
        %1599 = vmatpush2.msra.mxu0 0.0
        %1600 = vmatprep.subr.mxu0 0.0
        %1601 = vmatpush2.msra.mxu0 0.0
        %1602 = vmatprep.subr.mxu0 0.0
        %1603 = vmatpush2.msra.mxu0 0.0
        %1604 = vmatprep.subr.mxu0 0.0
        %1605 = vmatpush2.msra.mxu0 0.0
        %1606 = vmatprep.subr.mxu0 0.0
        %1607 = vmatpush2.msra.mxu0 0.0
        %1608 = vmatprep.subr.mxu0 0.0
        %1609 = vmatpush2.msra.mxu0 0.0
        %1610 = vmatprep.mubr.f32.mxu0 0.0
        %1611 = vmatmul.mubr.f32.gmra.mxu0 %v1544
        %v1612 = vpop.f32.mrf.mxu0
        %v1613 = vadd.f32 0.0, %v1612
        %v1614 = vpop.f32.mrf.mxu0
        %1615 = vdwg.mxu0
        %v1617 = vsel %vm808, %v1468, 0
        %1619 = vmatprep.subr.mxu0 0.0
        %1620 = vmatpush1.msra.mxu0 0.0
        %1621 = vmatprep.subr.mxu0 0.0
        %1622 = vmatpush1.msra.mxu0 0.0
        %1623 = vmatprep.subr.mxu0 0.0
        %1624 = vmatpush1.msra.mxu0 0.0
        %1625 = vmatprep.subr.mxu0 0.0
        %1626 = vmatpush1.msra.mxu0 0.0
        %1627 = vmatprep.subr.mxu0 0.0
        %1628 = vmatpush1.msra.mxu0 0.0
        %1629 = vmatprep.subr.mxu0 0.0
        %1630 = vmatpush1.msra.mxu0 0.0
        %1631 = vmatprep.subr.mxu0 0.0
        %1632 = vmatpush1.msra.mxu0 0.0
        %1633 = vmatprep.subr.mxu0 0.0
        %1634 = vmatpush1.msra.mxu0 0.0
        %1635 = vmatprep.subr.mxu0 0.0
        %1636 = vmatpush1.msra.mxu0 0.0
        %1637 = vmatprep.subr.mxu0 0.0
        %1638 = vmatpush1.msra.mxu0 0.0
        %1639 = vmatprep.subr.mxu0 0.0
        %1640 = vmatpush1.msra.mxu0 0.0
        %1641 = vmatprep.subr.mxu0 0.0
        %1642 = vmatpush1.msra.mxu0 0.0
        %1643 = vmatprep.subr.mxu0 0.0
        %1644 = vmatpush1.msra.mxu0 0.0
        %1645 = vmatprep.subr.mxu0 0.0
        %1646 = vmatpush1.msra.mxu0 0.0
        %1647 = vmatprep.subr.mxu0 0.0
        %1648 = vmatpush1.msra.mxu0 0.0
        %1649 = vmatprep.subr.mxu0 0.0
        %1650 = vmatpush1.msra.mxu0 %v803
        %1651 = vmatprep.subr.mxu0 0.0
        %1652 = vmatpush2.msra.mxu0 0.0
        %1653 = vmatprep.subr.mxu0 0.0
        %1654 = vmatpush2.msra.mxu0 0.0
        %1655 = vmatprep.subr.mxu0 0.0
        %1656 = vmatpush2.msra.mxu0 0.0
        %1657 = vmatprep.subr.mxu0 0.0
        %1658 = vmatpush2.msra.mxu0 0.0
        %1659 = vmatprep.subr.mxu0 0.0
        %1660 = vmatpush2.msra.mxu0 0.0
        %1661 = vmatprep.subr.mxu0 0.0
        %1662 = vmatpush2.msra.mxu0 0.0
        %1663 = vmatprep.subr.mxu0 0.0
        %1664 = vmatpush2.msra.mxu0 0.0
        %1665 = vmatprep.subr.mxu0 0.0
        %1666 = vmatpush2.msra.mxu0 0.0
        %1667 = vmatprep.subr.mxu0 0.0
        %1668 = vmatpush2.msra.mxu0 0.0
        %1669 = vmatprep.subr.mxu0 0.0
        %1670 = vmatpush2.msra.mxu0 0.0
        %1671 = vmatprep.subr.mxu0 0.0
        %1672 = vmatpush2.msra.mxu0 0.0
        %1673 = vmatprep.subr.mxu0 0.0
        %1674 = vmatpush2.msra.mxu0 0.0
        %1675 = vmatprep.subr.mxu0 0.0
        %1676 = vmatpush2.msra.mxu0 0.0
        %1677 = vmatprep.subr.mxu0 0.0
        %1678 = vmatpush2.msra.mxu0 0.0
        %1679 = vmatprep.subr.mxu0 0.0
        %1680 = vmatpush2.msra.mxu0 0.0
        %1681 = vmatprep.subr.mxu0 0.0
        %1682 = vmatpush2.msra.mxu0 0.0
        %1683 = vmatprep.mubr.f32.mxu0 0.0
        %1684 = vmatmul.mubr.f32.gmra.mxu0 %v1617
        %v1685 = vpop.f32.mrf.mxu0
        %v1686 = vadd.f32 0.0, %v1685
        %v1687 = vpop.f32.mrf.mxu0
        %1688 = vdwg.mxu0
        %v1690 = vsel %vm808, %v1469, 0
        %1692 = vmatprep.subr.mxu0 0.0
        %1693 = vmatpush1.msra.mxu0 0.0
        %1694 = vmatprep.subr.mxu0 0.0
        %1695 = vmatpush1.msra.mxu0 0.0
        %1696 = vmatprep.subr.mxu0 0.0
        %1697 = vmatpush1.msra.mxu0 0.0
        %1698 = vmatprep.subr.mxu0 0.0
        %1699 = vmatpush1.msra.mxu0 0.0
        %1700 = vmatprep.subr.mxu0 0.0
        %1701 = vmatpush1.msra.mxu0 0.0
        %1702 = vmatprep.subr.mxu0 0.0
        %1703 = vmatpush1.msra.mxu0 0.0
        %1704 = vmatprep.subr.mxu0 0.0
        %1705 = vmatpush1.msra.mxu0 0.0
        %1706 = vmatprep.subr.mxu0 0.0
        %1707 = vmatpush1.msra.mxu0 0.0
        %1708 = vmatprep.subr.mxu0 0.0
        %1709 = vmatpush1.msra.mxu0 0.0
        %1710 = vmatprep.subr.mxu0 0.0
        %1711 = vmatpush1.msra.mxu0 0.0
        %1712 = vmatprep.subr.mxu0 0.0
        %1713 = vmatpush1.msra.mxu0 0.0
        %1714 = vmatprep.subr.mxu0 0.0
        %1715 = vmatpush1.msra.mxu0 0.0
        %1716 = vmatprep.subr.mxu0 0.0
        %1717 = vmatpush1.msra.mxu0 0.0
        %1718 = vmatprep.subr.mxu0 0.0
        %1719 = vmatpush1.msra.mxu0 0.0
        %1720 = vmatprep.subr.mxu0 0.0
        %1721 = vmatpush1.msra.mxu0 0.0
        %1722 = vmatprep.subr.mxu0 0.0
        %1723 = vmatpush1.msra.mxu0 %v804
        %1724 = vmatprep.subr.mxu0 0.0
        %1725 = vmatpush2.msra.mxu0 0.0
        %1726 = vmatprep.subr.mxu0 0.0
        %1727 = vmatpush2.msra.mxu0 0.0
        %1728 = vmatprep.subr.mxu0 0.0
        %1729 = vmatpush2.msra.mxu0 0.0
        %1730 = vmatprep.subr.mxu0 0.0
        %1731 = vmatpush2.msra.mxu0 0.0
        %1732 = vmatprep.subr.mxu0 0.0
        %1733 = vmatpush2.msra.mxu0 0.0
        %1734 = vmatprep.subr.mxu0 0.0
        %1735 = vmatpush2.msra.mxu0 0.0
        %1736 = vmatprep.subr.mxu0 0.0
        %1737 = vmatpush2.msra.mxu0 0.0
        %1738 = vmatprep.subr.mxu0 0.0
        %1739 = vmatpush2.msra.mxu0 0.0
        %1740 = vmatprep.subr.mxu0 0.0
        %1741 = vmatpush2.msra.mxu0 0.0
        %1742 = vmatprep.subr.mxu0 0.0
        %1743 = vmatpush2.msra.mxu0 0.0
        %1744 = vmatprep.subr.mxu0 0.0
        %1745 = vmatpush2.msra.mxu0 0.0
        %1746 = vmatprep.subr.mxu0 0.0
        %1747 = vmatpush2.msra.mxu0 0.0
        %1748 = vmatprep.subr.mxu0 0.0
        %1749 = vmatpush2.msra.mxu0 0.0
        %1750 = vmatprep.subr.mxu0 0.0
        %1751 = vmatpush2.msra.mxu0 0.0
        %1752 = vmatprep.subr.mxu0 0.0
        %1753 = vmatpush2.msra.mxu0 0.0
        %1754 = vmatprep.subr.mxu0 0.0
        %1755 = vmatpush2.msra.mxu0 0.0
        %1756 = vmatprep.mubr.f32.mxu0 0.0
        %1757 = vmatmul.mubr.f32.gmra.mxu0 %v1690
        %v1758 = vpop.f32.mrf.mxu0
        %v1759 = vadd.f32 0.0, %v1758
        %v1760 = vpop.f32.mrf.mxu0
        %1761 = vdwg.mxu0
        %v1762 = vsel %vm719, %v1540, 0.0
        %v1763 = vsel %vm719, %v1613, 0.0
        %v1764 = vadd.f32 %v1762, %v1763
        %v1765 = vsel %vm719, %v1686, 0.0
        %v1766 = vadd.f32 %v1764, %v1765
        %v1767 = vsel %vm719, %v1759, 0.0
        %v1768 = vadd.f32 %v1766, %v1767
        %v1770 = vlaneseq
        %v1771 = vshrl.u32 %v1770, 7
        %v1772 = vsub.s32 0, %v1771
        %v1773 = vrot.slane %v805, %v1772
        %v1775 = vadd.f32 %v1768, %v1773
        %v1776 = vadd.f32 %v704, %v1775
        %v1777 = vsel %vm719, %v1776, 0.0
        %1778 = vadd.xlane.f32.xlu0 %v1777
        %v1779 = vpop.xlane.xlu0 %1778
        %v1780 = vrcp.pop 32.0
        %v1781 = vmul.f32 %v1779, %v1780
        %v1782 = vsub.f32 %v1776, %v1781
        %v1783 = vmul.f32 %v1782, %v1782
        %v1784 = vsel %vm719, %v1783, 0.0
        %1785 = vadd.xlane.f32.xlu0 %v1784
        %v1786 = vpop.xlane.xlu0 %1785
        %v1787 = vmul.f32 %v1786, %v1780
        %v1788 = vadd.f32 %v1787, 1e-05
        %v1789 = vrsqrt.pop %v1788
        %v1790 = vmul.f32 %v1782, %v1789
        %v1792 = vlaneseq
        %v1793 = vshrl.u32 %v1792, 7
        %v1794 = vsub.s32 0, %v1793
        %v1795 = vrot.slane %v706, %v1794
        %v1797 = vmul.f32 %v1790, %v1795
        %v1799 = vlaneseq
        %v1800 = vshrl.u32 %v1799, 7
        %v1801 = vsub.s32 0, %v1800
        %v1802 = vrot.slane %v707, %v1801
        %v1804 = vadd.f32 %v1797, %v1802
        %v1805 = vld [vmem:[%s7] sm:$0xff]
        %v1806 = vld [vmem:[%s7 + $0x8] sm:$0xff]
        %v1807 = vld [vmem:[%s7 + $0x10] sm:$0xff]
        %v1808 = vld [vmem:[%s7 + $0x18] sm:$0xff]
        %v1809 = vld [vmem:[%s8] sm:$0x1]
        %v1811 = vlaneseq
        %v1812 = vshrl.u32 %v1811, 7
        %v1813 = vsub.s32 0, %v1812
        %v1814 = vrot.slane %v1809, %v1813
        %v1817 = vsel %vm719, %v1804, 0
        %1819 = vmatprep.subr.mxu0 0.0
        %1820 = vmatpush1.msra.mxu0 0.0
        %1821 = vmatprep.subr.mxu0 0.0
        %1822 = vmatpush1.msra.mxu0 0.0
        %1823 = vmatprep.subr.mxu0 0.0
        %1824 = vmatpush1.msra.mxu0 0.0
        %1825 = vmatprep.subr.mxu0 0.0
        %1826 = vmatpush1.msra.mxu0 0.0
        %1827 = vmatprep.subr.mxu0 0.0
        %1828 = vmatpush1.msra.mxu0 0.0
        %1829 = vmatprep.subr.mxu0 0.0
        %1830 = vmatpush1.msra.mxu0 0.0
        %1831 = vmatprep.subr.mxu0 0.0
        %1832 = vmatpush1.msra.mxu0 0.0
        %1833 = vmatprep.subr.mxu0 0.0
        %1834 = vmatpush1.msra.mxu0 0.0
        %1835 = vmatprep.subr.mxu0 0.0
        %1836 = vmatpush1.msra.mxu0 0.0
        %1837 = vmatprep.subr.mxu0 0.0
        %1838 = vmatpush1.msra.mxu0 0.0
        %1839 = vmatprep.subr.mxu0 0.0
        %1840 = vmatpush1.msra.mxu0 0.0
        %1841 = vmatprep.subr.mxu0 0.0
        %1842 = vmatpush1.msra.mxu0 0.0
        %1843 = vmatprep.subr.mxu0 0.0
        %1844 = vmatpush1.msra.mxu0 %v1808
        %1845 = vmatprep.subr.mxu0 0.0
        %1846 = vmatpush1.msra.mxu0 %v1807
        %1847 = vmatprep.subr.mxu0 0.0
        %1848 = vmatpush1.msra.mxu0 %v1806
        %1849 = vmatprep.subr.mxu0 0.0
        %1850 = vmatpush1.msra.mxu0 %v1805
        %1851 = vmatprep.subr.mxu0 0.0
        %1852 = vmatpush2.msra.mxu0 0.0
        %1853 = vmatprep.subr.mxu0 0.0
        %1854 = vmatpush2.msra.mxu0 0.0
        %1855 = vmatprep.subr.mxu0 0.0
        %1856 = vmatpush2.msra.mxu0 0.0
        %1857 = vmatprep.subr.mxu0 0.0
        %1858 = vmatpush2.msra.mxu0 0.0
        %1859 = vmatprep.subr.mxu0 0.0
        %1860 = vmatpush2.msra.mxu0 0.0
        %1861 = vmatprep.subr.mxu0 0.0
        %1862 = vmatpush2.msra.mxu0 0.0
        %1863 = vmatprep.subr.mxu0 0.0
        %1864 = vmatpush2.msra.mxu0 0.0
        %1865 = vmatprep.subr.mxu0 0.0
        %1866 = vmatpush2.msra.mxu0 0.0
        %1867 = vmatprep.subr.mxu0 0.0
        %1868 = vmatpush2.msra.mxu0 0.0
        %1869 = vmatprep.subr.mxu0 0.0
        %1870 = vmatpush2.msra.mxu0 0.0
        %1871 = vmatprep.subr.mxu0 0.0
        %1872 = vmatpush2.msra.mxu0 0.0
        %1873 = vmatprep.subr.mxu0 0.0
        %1874 = vmatpush2.msra.mxu0 0.0
        %1875 = vmatprep.subr.mxu0 0.0
        %1876 = vmatpush2.msra.mxu0 0.0
        %1877 = vmatprep.subr.mxu0 0.0
        %1878 = vmatpush2.msra.mxu0 0.0
        %1879 = vmatprep.subr.mxu0 0.0
        %1880 = vmatpush2.msra.mxu0 0.0
        %1881 = vmatprep.subr.mxu0 0.0
        %1882 = vmatpush2.msra.mxu0 0.0
        %1883 = vmatprep.mubr.f32.mxu0 0.0
        %1884 = vmatmul.mubr.f32.gmra.mxu0 %v1817
        %v1885 = vpop.f32.mrf.mxu0
        %v1886 = vadd.f32 %v1814, %v1885
        %v1887 = vpop.f32.mrf.mxu0
        %1888 = vdwg.mxu0
        %1890 = vrot.lane.b32.xlu0 %v1886, 120
        %v1891 = vpop.permute.xlu0 %1890
        %1892 = vrot.lane.b32.xlu0 %v1886, 112
        %v1893 = vpop.permute.xlu0 %1892
        %1894 = vrot.lane.b32.xlu0 %v1886, 104
        %v1895 = vpop.permute.xlu0 %1894
        %v1896 = vld [vmem:[%s9] sm:$0xff]
        %v1897 = vld [vmem:[%s9 + $0x8] sm:$0xff]
        %v1898 = vld [vmem:[%s9 + $0x10] sm:$0xff]
        %v1899 = vld [vmem:[%s9 + $0x18] sm:$0xff]
        %v1900 = vld [vmem:[%s10] sm:$0x1]
        %v1902 = vlaneseq
        %v1903 = vshrl.u32 %v1902, 7
        %v1904 = vsub.s32 0, %v1903
        %v1905 = vrot.slane %v1900, %v1904
        %v1908 = vsel %vm719, %v705, 0
        %1910 = vmatprep.subr.mxu0 0.0
        %1911 = vmatpush1.msra.mxu0 0.0
        %1912 = vmatprep.subr.mxu0 0.0
        %1913 = vmatpush1.msra.mxu0 0.0
        %1914 = vmatprep.subr.mxu0 0.0
        %1915 = vmatpush1.msra.mxu0 0.0
        %1916 = vmatprep.subr.mxu0 0.0
        %1917 = vmatpush1.msra.mxu0 0.0
        %1918 = vmatprep.subr.mxu0 0.0
        %1919 = vmatpush1.msra.mxu0 0.0
        %1920 = vmatprep.subr.mxu0 0.0
        %1921 = vmatpush1.msra.mxu0 0.0
        %1922 = vmatprep.subr.mxu0 0.0
        %1923 = vmatpush1.msra.mxu0 0.0
        %1924 = vmatprep.subr.mxu0 0.0
        %1925 = vmatpush1.msra.mxu0 0.0
        %1926 = vmatprep.subr.mxu0 0.0
        %1927 = vmatpush1.msra.mxu0 0.0
        %1928 = vmatprep.subr.mxu0 0.0
        %1929 = vmatpush1.msra.mxu0 0.0
        %1930 = vmatprep.subr.mxu0 0.0
        %1931 = vmatpush1.msra.mxu0 0.0
        %1932 = vmatprep.subr.mxu0 0.0
        %1933 = vmatpush1.msra.mxu0 0.0
        %1934 = vmatprep.subr.mxu0 0.0
        %1935 = vmatpush1.msra.mxu0 %v1899
        %1936 = vmatprep.subr.mxu0 0.0
        %1937 = vmatpush1.msra.mxu0 %v1898
        %1938 = vmatprep.subr.mxu0 0.0
        %1939 = vmatpush1.msra.mxu0 %v1897
        %1940 = vmatprep.subr.mxu0 0.0
        %1941 = vmatpush1.msra.mxu0 %v1896
        %1942 = vmatprep.subr.mxu0 0.0
        %1943 = vmatpush2.msra.mxu0 0.0
        %1944 = vmatprep.subr.mxu0 0.0
        %1945 = vmatpush2.msra.mxu0 0.0
        %1946 = vmatprep.subr.mxu0 0.0
        %1947 = vmatpush2.msra.mxu0 0.0
        %1948 = vmatprep.subr.mxu0 0.0
        %1949 = vmatpush2.msra.mxu0 0.0
        %1950 = vmatprep.subr.mxu0 0.0
        %1951 = vmatpush2.msra.mxu0 0.0
        %1952 = vmatprep.subr.mxu0 0.0
        %1953 = vmatpush2.msra.mxu0 0.0
        %1954 = vmatprep.subr.mxu0 0.0
        %1955 = vmatpush2.msra.mxu0 0.0
        %1956 = vmatprep.subr.mxu0 0.0
        %1957 = vmatpush2.msra.mxu0 0.0
        %1958 = vmatprep.subr.mxu0 0.0
        %1959 = vmatpush2.msra.mxu0 0.0
        %1960 = vmatprep.subr.mxu0 0.0
        %1961 = vmatpush2.msra.mxu0 0.0
        %1962 = vmatprep.subr.mxu0 0.0
        %1963 = vmatpush2.msra.mxu0 0.0
        %1964 = vmatprep.subr.mxu0 0.0
        %1965 = vmatpush2.msra.mxu0 0.0
        %1966 = vmatprep.subr.mxu0 0.0
        %1967 = vmatpush2.msra.mxu0 0.0
        %1968 = vmatprep.subr.mxu0 0.0
        %1969 = vmatpush2.msra.mxu0 0.0
        %1970 = vmatprep.subr.mxu0 0.0
        %1971 = vmatpush2.msra.mxu0 0.0
        %1972 = vmatprep.subr.mxu0 0.0
        %1973 = vmatpush2.msra.mxu0 0.0
        %1974 = vmatprep.mubr.f32.mxu0 0.0
        %1975 = vmatmul.mubr.f32.gmra.mxu0 %v1908
        %v1976 = vpop.f32.mrf.mxu0
        %v1977 = vadd.f32 %v1905, %v1976
        %v1978 = vpop.f32.mrf.mxu0
        %1979 = vdwg.mxu0
        %1981 = vrot.lane.b32.xlu0 %v1977, 120
        %v1982 = vpop.permute.xlu0 %1981
        %1983 = vrot.lane.b32.xlu0 %v1977, 112
        %v1984 = vpop.permute.xlu0 %1983
        %1985 = vrot.lane.b32.xlu0 %v1977, 104
        %v1986 = vpop.permute.xlu0 %1985
        %v1987 = vld [vmem:[%s11] sm:$0xff]
        %v1988 = vld [vmem:[%s11 + $0x8] sm:$0xff]
        %v1989 = vld [vmem:[%s11 + $0x10] sm:$0xff]
        %v1990 = vld [vmem:[%s11 + $0x18] sm:$0xff]
        %v1991 = vld [vmem:[%s12] sm:$0x1]
        %v1992 = vsel %vm808, %v1886, 0
        %v1994 = vsel %vm808, %v1977, 0
        %1996 = vmatprep.subr.mxu0 0.0
        %1997 = vmatpush1.xpose.msra.mxu0 0.0
        %1998 = vmatprep.subr.mxu0 0.0
        %1999 = vmatpush1.xpose.msra.mxu0 0.0
        %2000 = vmatprep.subr.mxu0 0.0
        %2001 = vmatpush1.xpose.msra.mxu0 0.0
        %2002 = vmatprep.subr.mxu0 0.0
        %2003 = vmatpush1.xpose.msra.mxu0 0.0
        %2004 = vmatprep.subr.mxu0 0.0
        %2005 = vmatpush1.xpose.msra.mxu0 0.0
        %2006 = vmatprep.subr.mxu0 0.0
        %2007 = vmatpush1.xpose.msra.mxu0 0.0
        %2008 = vmatprep.subr.mxu0 0.0
        %2009 = vmatpush1.xpose.msra.mxu0 0.0
        %2010 = vmatprep.subr.mxu0 0.0
        %2011 = vmatpush1.xpose.msra.mxu0 0.0
        %2012 = vmatprep.subr.mxu0 0.0
        %2013 = vmatpush1.xpose.msra.mxu0 0.0
        %2014 = vmatprep.subr.mxu0 0.0
        %2015 = vmatpush1.xpose.msra.mxu0 0.0
        %2016 = vmatprep.subr.mxu0 0.0
        %2017 = vmatpush1.xpose.msra.mxu0 0.0
        %2018 = vmatprep.subr.mxu0 0.0
        %2019 = vmatpush1.xpose.msra.mxu0 0.0
        %2020 = vmatprep.subr.mxu0 0.0
        %2021 = vmatpush1.xpose.msra.mxu0 0.0
        %2022 = vmatprep.subr.mxu0 0.0
        %2023 = vmatpush1.xpose.msra.mxu0 0.0
        %2024 = vmatprep.subr.mxu0 0.0
        %2025 = vmatpush1.xpose.msra.mxu0 0.0
        %2026 = vmatprep.subr.mxu0 0.0
        %2027 = vmatpush1.xpose.msra.mxu0 %v1994
        %2028 = vmatprep.subr.mxu0 0.0
        %2029 = vmatpush2.xpose.msra.mxu0 0.0
        %2030 = vmatprep.subr.mxu0 0.0
        %2031 = vmatpush2.xpose.msra.mxu0 0.0
        %2032 = vmatprep.subr.mxu0 0.0
        %2033 = vmatpush2.xpose.msra.mxu0 0.0
        %2034 = vmatprep.subr.mxu0 0.0
        %2035 = vmatpush2.xpose.msra.mxu0 0.0
        %2036 = vmatprep.subr.mxu0 0.0
        %2037 = vmatpush2.xpose.msra.mxu0 0.0
        %2038 = vmatprep.subr.mxu0 0.0
        %2039 = vmatpush2.xpose.msra.mxu0 0.0
        %2040 = vmatprep.subr.mxu0 0.0
        %2041 = vmatpush2.xpose.msra.mxu0 0.0
        %2042 = vmatprep.subr.mxu0 0.0
        %2043 = vmatpush2.xpose.msra.mxu0 0.0
        %2044 = vmatprep.subr.mxu0 0.0
        %2045 = vmatpush2.xpose.msra.mxu0 0.0
        %2046 = vmatprep.subr.mxu0 0.0
        %2047 = vmatpush2.xpose.msra.mxu0 0.0
        %2048 = vmatprep.subr.mxu0 0.0
        %2049 = vmatpush2.xpose.msra.mxu0 0.0
        %2050 = vmatprep.subr.mxu0 0.0
        %2051 = vmatpush2.xpose.msra.mxu0 0.0
        %2052 = vmatprep.subr.mxu0 0.0
        %2053 = vmatpush2.xpose.msra.mxu0 0.0
        %2054 = vmatprep.subr.mxu0 0.0
        %2055 = vmatpush2.xpose.msra.mxu0 0.0
        %2056 = vmatprep.subr.mxu0 0.0
        %2057 = vmatpush2.xpose.msra.mxu0 0.0
        %2058 = vmatprep.subr.mxu0 0.0
        %2059 = vmatpush2.xpose.msra.mxu0 0.0
        %2060 = vmatprep.mubr.f32.mxu0 0.0
        %2061 = vmatmul.mubr.f32.gmra.mxu0 %v1992
        %v2062 = vpop.f32.mrf.mxu0
        %v2063 = vadd.f32 0.0, %v2062
        %v2064 = vpop.f32.mrf.mxu0
        %2065 = vdwg.mxu0
        %v2066 = vsel %vm808, %v1891, 0
        %v2068 = vsel %vm808, %v1982, 0
        %2070 = vmatprep.subr.mxu0 0.0
        %2071 = vmatpush1.xpose.msra.mxu0 0.0
        %2072 = vmatprep.subr.mxu0 0.0
        %2073 = vmatpush1.xpose.msra.mxu0 0.0
        %2074 = vmatprep.subr.mxu0 0.0
        %2075 = vmatpush1.xpose.msra.mxu0 0.0
        %2076 = vmatprep.subr.mxu0 0.0
        %2077 = vmatpush1.xpose.msra.mxu0 0.0
        %2078 = vmatprep.subr.mxu0 0.0
        %2079 = vmatpush1.xpose.msra.mxu0 0.0
        %2080 = vmatprep.subr.mxu0 0.0
        %2081 = vmatpush1.xpose.msra.mxu0 0.0
        %2082 = vmatprep.subr.mxu0 0.0
        %2083 = vmatpush1.xpose.msra.mxu0 0.0
        %2084 = vmatprep.subr.mxu0 0.0
        %2085 = vmatpush1.xpose.msra.mxu0 0.0
        %2086 = vmatprep.subr.mxu0 0.0
        %2087 = vmatpush1.xpose.msra.mxu0 0.0
        %2088 = vmatprep.subr.mxu0 0.0
        %2089 = vmatpush1.xpose.msra.mxu0 0.0
        %2090 = vmatprep.subr.mxu0 0.0
        %2091 = vmatpush1.xpose.msra.mxu0 0.0
        %2092 = vmatprep.subr.mxu0 0.0
        %2093 = vmatpush1.xpose.msra.mxu0 0.0
        %2094 = vmatprep.subr.mxu0 0.0
        %2095 = vmatpush1.xpose.msra.mxu0 0.0
        %2096 = vmatprep.subr.mxu0 0.0
        %2097 = vmatpush1.xpose.msra.mxu0 0.0
        %2098 = vmatprep.subr.mxu0 0.0
        %2099 = vmatpush1.xpose.msra.mxu0 0.0
        %2100 = vmatprep.subr.mxu0 0.0
        %2101 = vmatpush1.xpose.msra.mxu0 %v2068
        %2102 = vmatprep.subr.mxu0 0.0
        %2103 = vmatpush2.xpose.msra.mxu0 0.0
        %2104 = vmatprep.subr.mxu0 0.0
        %2105 = vmatpush2.xpose.msra.mxu0 0.0
        %2106 = vmatprep.subr.mxu0 0.0
        %2107 = vmatpush2.xpose.msra.mxu0 0.0
        %2108 = vmatprep.subr.mxu0 0.0
        %2109 = vmatpush2.xpose.msra.mxu0 0.0
        %2110 = vmatprep.subr.mxu0 0.0
        %2111 = vmatpush2.xpose.msra.mxu0 0.0
        %2112 = vmatprep.subr.mxu0 0.0
        %2113 = vmatpush2.xpose.msra.mxu0 0.0
        %2114 = vmatprep.subr.mxu0 0.0
        %2115 = vmatpush2.xpose.msra.mxu0 0.0
        %2116 = vmatprep.subr.mxu0 0.0
        %2117 = vmatpush2.xpose.msra.mxu0 0.0
        %2118 = vmatprep.subr.mxu0 0.0
        %2119 = vmatpush2.xpose.msra.mxu0 0.0
        %2120 = vmatprep.subr.mxu0 0.0
        %2121 = vmatpush2.xpose.msra.mxu0 0.0
        %2122 = vmatprep.subr.mxu0 0.0
        %2123 = vmatpush2.xpose.msra.mxu0 0.0
        %2124 = vmatprep.subr.mxu0 0.0
        %2125 = vmatpush2.xpose.msra.mxu0 0.0
        %2126 = vmatprep.subr.mxu0 0.0
        %2127 = vmatpush2.xpose.msra.mxu0 0.0
        %2128 = vmatprep.subr.mxu0 0.0
        %2129 = vmatpush2.xpose.msra.mxu0 0.0
        %2130 = vmatprep.subr.mxu0 0.0
        %2131 = vmatpush2.xpose.msra.mxu0 0.0
        %2132 = vmatprep.subr.mxu0 0.0
        %2133 = vmatpush2.xpose.msra.mxu0 0.0
        %2134 = vmatprep.mubr.f32.mxu0 0.0
        %2135 = vmatmul.mubr.f32.gmra.mxu0 %v2066
        %v2136 = vpop.f32.mrf.mxu0
        %v2137 = vadd.f32 0.0, %v2136
        %v2138 = vpop.f32.mrf.mxu0
        %2139 = vdwg.mxu0
        %v2140 = vsel %vm808, %v1893, 0
        %v2142 = vsel %vm808, %v1984, 0
        %2144 = vmatprep.subr.mxu0 0.0
        %2145 = vmatpush1.xpose.msra.mxu0 0.0
        %2146 = vmatprep.subr.mxu0 0.0
        %2147 = vmatpush1.xpose.msra.mxu0 0.0
        %2148 = vmatprep.subr.mxu0 0.0
        %2149 = vmatpush1.xpose.msra.mxu0 0.0
        %2150 = vmatprep.subr.mxu0 0.0
        %2151 = vmatpush1.xpose.msra.mxu0 0.0
        %2152 = vmatprep.subr.mxu0 0.0
        %2153 = vmatpush1.xpose.msra.mxu0 0.0
        %2154 = vmatprep.subr.mxu0 0.0
        %2155 = vmatpush1.xpose.msra.mxu0 0.0
        %2156 = vmatprep.subr.mxu0 0.0
        %2157 = vmatpush1.xpose.msra.mxu0 0.0
        %2158 = vmatprep.subr.mxu0 0.0
        %2159 = vmatpush1.xpose.msra.mxu0 0.0
        %2160 = vmatprep.subr.mxu0 0.0
        %2161 = vmatpush1.xpose.msra.mxu0 0.0
        %2162 = vmatprep.subr.mxu0 0.0
        %2163 = vmatpush1.xpose.msra.mxu0 0.0
        %2164 = vmatprep.subr.mxu0 0.0
        %2165 = vmatpush1.xpose.msra.mxu0 0.0
        %2166 = vmatprep.subr.mxu0 0.0
        %2167 = vmatpush1.xpose.msra.mxu0 0.0
        %2168 = vmatprep.subr.mxu0 0.0
        %2169 = vmatpush1.xpose.msra.mxu0 0.0
        %2170 = vmatprep.subr.mxu0 0.0
        %2171 = vmatpush1.xpose.msra.mxu0 0.0
        %2172 = vmatprep.subr.mxu0 0.0
        %2173 = vmatpush1.xpose.msra.mxu0 0.0
        %2174 = vmatprep.subr.mxu0 0.0
        %2175 = vmatpush1.xpose.msra.mxu0 %v2142
        %2176 = vmatprep.subr.mxu0 0.0
        %2177 = vmatpush2.xpose.msra.mxu0 0.0
        %2178 = vmatprep.subr.mxu0 0.0
        %2179 = vmatpush2.xpose.msra.mxu0 0.0
        %2180 = vmatprep.subr.mxu0 0.0
        %2181 = vmatpush2.xpose.msra.mxu0 0.0
        %2182 = vmatprep.subr.mxu0 0.0
        %2183 = vmatpush2.xpose.msra.mxu0 0.0
        %2184 = vmatprep.subr.mxu0 0.0
        %2185 = vmatpush2.xpose.msra.mxu0 0.0
        %2186 = vmatprep.subr.mxu0 0.0
        %2187 = vmatpush2.xpose.msra.mxu0 0.0
        %2188 = vmatprep.subr.mxu0 0.0
        %2189 = vmatpush2.xpose.msra.mxu0 0.0
        %2190 = vmatprep.subr.mxu0 0.0
        %2191 = vmatpush2.xpose.msra.mxu0 0.0
        %2192 = vmatprep.subr.mxu0 0.0
        %2193 = vmatpush2.xpose.msra.mxu0 0.0
        %2194 = vmatprep.subr.mxu0 0.0
        %2195 = vmatpush2.xpose.msra.mxu0 0.0
        %2196 = vmatprep.subr.mxu0 0.0
        %2197 = vmatpush2.xpose.msra.mxu0 0.0
        %2198 = vmatprep.subr.mxu0 0.0
        %2199 = vmatpush2.xpose.msra.mxu0 0.0
        %2200 = vmatprep.subr.mxu0 0.0
        %2201 = vmatpush2.xpose.msra.mxu0 0.0
        %2202 = vmatprep.subr.mxu0 0.0
        %2203 = vmatpush2.xpose.msra.mxu0 0.0
        %2204 = vmatprep.subr.mxu0 0.0
        %2205 = vmatpush2.xpose.msra.mxu0 0.0
        %2206 = vmatprep.subr.mxu0 0.0
        %2207 = vmatpush2.xpose.msra.mxu0 0.0
        %2208 = vmatprep.mubr.f32.mxu0 0.0
        %2209 = vmatmul.mubr.f32.gmra.mxu0 %v2140
        %v2210 = vpop.f32.mrf.mxu0
        %v2211 = vadd.f32 0.0, %v2210
        %v2212 = vpop.f32.mrf.mxu0
        %2213 = vdwg.mxu0
        %v2214 = vsel %vm808, %v1895, 0
        %v2216 = vsel %vm808, %v1986, 0
        %2218 = vmatprep.subr.mxu0 0.0
        %2219 = vmatpush1.xpose.msra.mxu0 0.0
        %2220 = vmatprep.subr.mxu0 0.0
        %2221 = vmatpush1.xpose.msra.mxu0 0.0
        %2222 = vmatprep.subr.mxu0 0.0
        %2223 = vmatpush1.xpose.msra.mxu0 0.0
        %2224 = vmatprep.subr.mxu0 0.0
        %2225 = vmatpush1.xpose.msra.mxu0 0.0
        %2226 = vmatprep.subr.mxu0 0.0
        %2227 = vmatpush1.xpose.msra.mxu0 0.0
        %2228 = vmatprep.subr.mxu0 0.0
        %2229 = vmatpush1.xpose.msra.mxu0 0.0
        %2230 = vmatprep.subr.mxu0 0.0
        %2231 = vmatpush1.xpose.msra.mxu0 0.0
        %2232 = vmatprep.subr.mxu0 0.0
        %2233 = vmatpush1.xpose.msra.mxu0 0.0
        %2234 = vmatprep.subr.mxu0 0.0
        %2235 = vmatpush1.xpose.msra.mxu0 0.0
        %2236 = vmatprep.subr.mxu0 0.0
        %2237 = vmatpush1.xpose.msra.mxu0 0.0
        %2238 = vmatprep.subr.mxu0 0.0
        %2239 = vmatpush1.xpose.msra.mxu0 0.0
        %2240 = vmatprep.subr.mxu0 0.0
        %2241 = vmatpush1.xpose.msra.mxu0 0.0
        %2242 = vmatprep.subr.mxu0 0.0
        %2243 = vmatpush1.xpose.msra.mxu0 0.0
        %2244 = vmatprep.subr.mxu0 0.0
        %2245 = vmatpush1.xpose.msra.mxu0 0.0
        %2246 = vmatprep.subr.mxu0 0.0
        %2247 = vmatpush1.xpose.msra.mxu0 0.0
        %2248 = vmatprep.subr.mxu0 0.0
        %2249 = vmatpush1.xpose.msra.mxu0 %v2216
        %2250 = vmatprep.subr.mxu0 0.0
        %2251 = vmatpush2.xpose.msra.mxu0 0.0
        %2252 = vmatprep.subr.mxu0 0.0
        %2253 = vmatpush2.xpose.msra.mxu0 0.0
        %2254 = vmatprep.subr.mxu0 0.0
        %2255 = vmatpush2.xpose.msra.mxu0 0.0
        %2256 = vmatprep.subr.mxu0 0.0
        %2257 = vmatpush2.xpose.msra.mxu0 0.0
        %2258 = vmatprep.subr.mxu0 0.0
        %2259 = vmatpush2.xpose.msra.mxu0 0.0
        %2260 = vmatprep.subr.mxu0 0.0
        %2261 = vmatpush2.xpose.msra.mxu0 0.0
        %2262 = vmatprep.subr.mxu0 0.0
        %2263 = vmatpush2.xpose.msra.mxu0 0.0
        %2264 = vmatprep.subr.mxu0 0.0
        %2265 = vmatpush2.xpose.msra.mxu0 0.0
        %2266 = vmatprep.subr.mxu0 0.0
        %2267 = vmatpush2.xpose.msra.mxu0 0.0
        %2268 = vmatprep.subr.mxu0 0.0
        %2269 = vmatpush2.xpose.msra.mxu0 0.0
        %2270 = vmatprep.subr.mxu0 0.0
        %2271 = vmatpush2.xpose.msra.mxu0 0.0
        %2272 = vmatprep.subr.mxu0 0.0
        %2273 = vmatpush2.xpose.msra.mxu0 0.0
        %2274 = vmatprep.subr.mxu0 0.0
        %2275 = vmatpush2.xpose.msra.mxu0 0.0
        %2276 = vmatprep.subr.mxu0 0.0
        %2277 = vmatpush2.xpose.msra.mxu0 0.0
        %2278 = vmatprep.subr.mxu0 0.0
        %2279 = vmatpush2.xpose.msra.mxu0 0.0
        %2280 = vmatprep.subr.mxu0 0.0
        %2281 = vmatpush2.xpose.msra.mxu0 0.0
        %2282 = vmatprep.mubr.f32.mxu0 0.0
        %2283 = vmatmul.mubr.f32.gmra.mxu0 %v2214
        %v2284 = vpop.f32.mrf.mxu0
        %v2285 = vadd.f32 0.0, %v2284
        %v2286 = vpop.f32.mrf.mxu0
        %2287 = vdwg.mxu0
        %v2288 = vmul.f32 %v2063, 0.35355338
        %v2289 = vmul.f32 %v2137, 0.35355338
        %v2290 = vmul.f32 %v2211, 0.35355338
        %v2291 = vmul.f32 %v2285, 0.35355338
        %v2292 = vsel %vm808, %v2288, -inf
        %2293 = vmax.xlane.f32.xlu0 %v2292
        %v2294 = vpop.xlane.xlu0 %2293
        %v2295 = vsel %vm808, %v2289, -inf
        %2296 = vmax.xlane.f32.xlu0 %v2295
        %v2297 = vpop.xlane.xlu0 %2296
        %v2298 = vsel %vm808, %v2290, -inf
        %2299 = vmax.xlane.f32.xlu0 %v2298
        %v2300 = vpop.xlane.xlu0 %2299
        %v2301 = vsel %vm808, %v2291, -inf
        %2302 = vmax.xlane.f32.xlu0 %v2301
        %v2303 = vpop.xlane.xlu0 %2302
        %v2304 = vsub.f32 %v2288, %v2294
        %v2305 = vsub.f32 %v2289, %v2297
        %v2306 = vsub.f32 %v2290, %v2300
        %v2307 = vsub.f32 %v2291, %v2303
        %v2308 = vmul.f32 %v2304, 1.442695
        %v2309 = vpow.pop %v2308
        %v2310 = vmul.f32 %v2305, 1.442695
        %v2311 = vpow.pop %v2310
        %v2312 = vmul.f32 %v2306, 1.442695
        %v2313 = vpow.pop %v2312
        %v2314 = vmul.f32 %v2307, 1.442695
        %v2315 = vpow.pop %v2314
        %v2316 = vsel %vm808, %v2309, 0.0
        %2317 = vadd.xlane.f32.xlu0 %v2316
        %v2318 = vpop.xlane.xlu0 %2317
        %v2319 = vsel %vm808, %v2311, 0.0
        %2320 = vadd.xlane.f32.xlu0 %v2319
        %v2321 = vpop.xlane.xlu0 %2320
        %v2322 = vsel %vm808, %v2313, 0.0
        %2323 = vadd.xlane.f32.xlu0 %v2322
        %v2324 = vpop.xlane.xlu0 %2323
        %v2325 = vsel %vm808, %v2315, 0.0
        %2326 = vadd.xlane.f32.xlu0 %v2325
        %v2327 = vpop.xlane.xlu0 %2326
        %2328 = vrot.lane.b32.xlu0 %v1977, 96
        %v2329 = vpop.permute.xlu0 %2328
        %v2332 = vsel %vm808, %v2309, 0
        %2334 = vmatprep.subr.mxu0 0.0
        %2335 = vmatpush1.msra.mxu0 0.0
        %2336 = vmatprep.subr.mxu0 0.0
        %2337 = vmatpush1.msra.mxu0 0.0
        %2338 = vmatprep.subr.mxu0 0.0
        %2339 = vmatpush1.msra.mxu0 0.0
        %2340 = vmatprep.subr.mxu0 0.0
        %2341 = vmatpush1.msra.mxu0 0.0
        %2342 = vmatprep.subr.mxu0 0.0
        %2343 = vmatpush1.msra.mxu0 0.0
        %2344 = vmatprep.subr.mxu0 0.0
        %2345 = vmatpush1.msra.mxu0 0.0
        %2346 = vmatprep.subr.mxu0 0.0
        %2347 = vmatpush1.msra.mxu0 0.0
        %2348 = vmatprep.subr.mxu0 0.0
        %2349 = vmatpush1.msra.mxu0 0.0
        %2350 = vmatprep.subr.mxu0 0.0
        %2351 = vmatpush1.msra.mxu0 0.0
        %2352 = vmatprep.subr.mxu0 0.0
        %2353 = vmatpush1.msra.mxu0 0.0
        %2354 = vmatprep.subr.mxu0 0.0
        %2355 = vmatpush1.msra.mxu0 0.0
        %2356 = vmatprep.subr.mxu0 0.0
        %2357 = vmatpush1.msra.mxu0 0.0
        %2358 = vmatprep.subr.mxu0 0.0
        %2359 = vmatpush1.msra.mxu0 0.0
        %2360 = vmatprep.subr.mxu0 0.0
        %2361 = vmatpush1.msra.mxu0 0.0
        %2362 = vmatprep.subr.mxu0 0.0
        %2363 = vmatpush1.msra.mxu0 0.0
        %2364 = vmatprep.subr.mxu0 0.0
        %2365 = vmatpush1.msra.mxu0 %v2329
        %2366 = vmatprep.subr.mxu0 0.0
        %2367 = vmatpush2.msra.mxu0 0.0
        %2368 = vmatprep.subr.mxu0 0.0
        %2369 = vmatpush2.msra.mxu0 0.0
        %2370 = vmatprep.subr.mxu0 0.0
        %2371 = vmatpush2.msra.mxu0 0.0
        %2372 = vmatprep.subr.mxu0 0.0
        %2373 = vmatpush2.msra.mxu0 0.0
        %2374 = vmatprep.subr.mxu0 0.0
        %2375 = vmatpush2.msra.mxu0 0.0
        %2376 = vmatprep.subr.mxu0 0.0
        %2377 = vmatpush2.msra.mxu0 0.0
        %2378 = vmatprep.subr.mxu0 0.0
        %2379 = vmatpush2.msra.mxu0 0.0
        %2380 = vmatprep.subr.mxu0 0.0
        %2381 = vmatpush2.msra.mxu0 0.0
        %2382 = vmatprep.subr.mxu0 0.0
        %2383 = vmatpush2.msra.mxu0 0.0
        %2384 = vmatprep.subr.mxu0 0.0
        %2385 = vmatpush2.msra.mxu0 0.0
        %2386 = vmatprep.subr.mxu0 0.0
        %2387 = vmatpush2.msra.mxu0 0.0
        %2388 = vmatprep.subr.mxu0 0.0
        %2389 = vmatpush2.msra.mxu0 0.0
        %2390 = vmatprep.subr.mxu0 0.0
        %2391 = vmatpush2.msra.mxu0 0.0
        %2392 = vmatprep.subr.mxu0 0.0
        %2393 = vmatpush2.msra.mxu0 0.0
        %2394 = vmatprep.subr.mxu0 0.0
        %2395 = vmatpush2.msra.mxu0 0.0
        %2396 = vmatprep.subr.mxu0 0.0
        %2397 = vmatpush2.msra.mxu0 0.0
        %2398 = vmatprep.mubr.f32.mxu0 0.0
        %2399 = vmatmul.mubr.f32.gmra.mxu0 %v2332
        %v2400 = vpop.f32.mrf.mxu0
        %v2401 = vadd.f32 0.0, %v2400
        %v2402 = vpop.f32.mrf.mxu0
        %2403 = vdwg.mxu0
        %2404 = vrot.lane.b32.xlu0 %v1982, 96
        %v2405 = vpop.permute.xlu0 %2404
        %v2408 = vsel %vm808, %v2311, 0
        %2410 = vmatprep.subr.mxu0 0.0
        %2411 = vmatpush1.msra.mxu0 0.0
        %2412 = vmatprep.subr.mxu0 0.0
        %2413 = vmatpush1.msra.mxu0 0.0
        %2414 = vmatprep.subr.mxu0 0.0
        %2415 = vmatpush1.msra.mxu0 0.0
        %2416 = vmatprep.subr.mxu0 0.0
        %2417 = vmatpush1.msra.mxu0 0.0
        %2418 = vmatprep.subr.mxu0 0.0
        %2419 = vmatpush1.msra.mxu0 0.0
        %2420 = vmatprep.subr.mxu0 0.0
        %2421 = vmatpush1.msra.mxu0 0.0
        %2422 = vmatprep.subr.mxu0 0.0
        %2423 = vmatpush1.msra.mxu0 0.0
        %2424 = vmatprep.subr.mxu0 0.0
        %2425 = vmatpush1.msra.mxu0 0.0
        %2426 = vmatprep.subr.mxu0 0.0
        %2427 = vmatpush1.msra.mxu0 0.0
        %2428 = vmatprep.subr.mxu0 0.0
        %2429 = vmatpush1.msra.mxu0 0.0
        %2430 = vmatprep.subr.mxu0 0.0
        %2431 = vmatpush1.msra.mxu0 0.0
        %2432 = vmatprep.subr.mxu0 0.0
        %2433 = vmatpush1.msra.mxu0 0.0
        %2434 = vmatprep.subr.mxu0 0.0
        %2435 = vmatpush1.msra.mxu0 0.0
        %2436 = vmatprep.subr.mxu0 0.0
        %2437 = vmatpush1.msra.mxu0 0.0
        %2438 = vmatprep.subr.mxu0 0.0
        %2439 = vmatpush1.msra.mxu0 0.0
        %2440 = vmatprep.subr.mxu0 0.0
        %2441 = vmatpush1.msra.mxu0 %v2405
        %2442 = vmatprep.subr.mxu0 0.0
        %2443 = vmatpush2.msra.mxu0 0.0
        %2444 = vmatprep.subr.mxu0 0.0
        %2445 = vmatpush2.msra.mxu0 0.0
        %2446 = vmatprep.subr.mxu0 0.0
        %2447 = vmatpush2.msra.mxu0 0.0
        %2448 = vmatprep.subr.mxu0 0.0
        %2449 = vmatpush2.msra.mxu0 0.0
        %2450 = vmatprep.subr.mxu0 0.0
        %2451 = vmatpush2.msra.mxu0 0.0
        %2452 = vmatprep.subr.mxu0 0.0
        %2453 = vmatpush2.msra.mxu0 0.0
        %2454 = vmatprep.subr.mxu0 0.0
        %2455 = vmatpush2.msra.mxu0 0.0
        %2456 = vmatprep.subr.mxu0 0.0
        %2457 = vmatpush2.msra.mxu0 0.0
        %2458 = vmatprep.subr.mxu0 0.0
        %2459 = vmatpush2.msra.mxu0 0.0
        %2460 = vmatprep.subr.mxu0 0.0
        %2461 = vmatpush2.msra.mxu0 0.0
        %2462 = vmatprep.subr.mxu0 0.0
        %2463 = vmatpush2.msra.mxu0 0.0
        %2464 = vmatprep.subr.mxu0 0.0
        %2465 = vmatpush2.msra.mxu0 0.0
        %2466 = vmatprep.subr.mxu0 0.0
        %2467 = vmatpush2.msra.mxu0 0.0
        %2468 = vmatprep.subr.mxu0 0.0
        %2469 = vmatpush2.msra.mxu0 0.0
        %2470 = vmatprep.subr.mxu0 0.0
        %2471 = vmatpush2.msra.mxu0 0.0
        %2472 = vmatprep.subr.mxu0 0.0
        %2473 = vmatpush2.msra.mxu0 0.0
        %2474 = vmatprep.mubr.f32.mxu0 0.0
        %2475 = vmatmul.mubr.f32.gmra.mxu0 %v2408
        %v2476 = vpop.f32.mrf.mxu0
        %v2477 = vadd.f32 0.0, %v2476
        %v2478 = vpop.f32.mrf.mxu0
        %2479 = vdwg.mxu0
        %2480 = vrot.lane.b32.xlu0 %v1984, 96
        %v2481 = vpop.permute.xlu0 %2480
        %v2484 = vsel %vm808, %v2313, 0
        %2486 = vmatprep.subr.mxu0 0.0
        %2487 = vmatpush1.msra.mxu0 0.0
        %2488 = vmatprep.subr.mxu0 0.0
        %2489 = vmatpush1.msra.mxu0 0.0
        %2490 = vmatprep.subr.mxu0 0.0
        %2491 = vmatpush1.msra.mxu0 0.0
        %2492 = vmatprep.subr.mxu0 0.0
        %2493 = vmatpush1.msra.mxu0 0.0
        %2494 = vmatprep.subr.mxu0 0.0
        %2495 = vmatpush1.msra.mxu0 0.0
        %2496 = vmatprep.subr.mxu0 0.0
        %2497 = vmatpush1.msra.mxu0 0.0
        %2498 = vmatprep.subr.mxu0 0.0
        %2499 = vmatpush1.msra.mxu0 0.0
        %2500 = vmatprep.subr.mxu0 0.0
        %2501 = vmatpush1.msra.mxu0 0.0
        %2502 = vmatprep.subr.mxu0 0.0
        %2503 = vmatpush1.msra.mxu0 0.0
        %2504 = vmatprep.subr.mxu0 0.0
        %2505 = vmatpush1.msra.mxu0 0.0
        %2506 = vmatprep.subr.mxu0 0.0
        %2507 = vmatpush1.msra.mxu0 0.0
        %2508 = vmatprep.subr.mxu0 0.0
        %2509 = vmatpush1.msra.mxu0 0.0
        %2510 = vmatprep.subr.mxu0 0.0
        %2511 = vmatpush1.msra.mxu0 0.0
        %2512 = vmatprep.subr.mxu0 0.0
        %2513 = vmatpush1.msra.mxu0 0.0
        %2514 = vmatprep.subr.mxu0 0.0
        %2515 = vmatpush1.msra.mxu0 0.0
        %2516 = vmatprep.subr.mxu0 0.0
        %2517 = vmatpush1.msra.mxu0 %v2481
        %2518 = vmatprep.subr.mxu0 0.0
        %2519 = vmatpush2.msra.mxu0 0.0
        %2520 = vmatprep.subr.mxu0 0.0
        %2521 = vmatpush2.msra.mxu0 0.0
        %2522 = vmatprep.subr.mxu0 0.0
        %2523 = vmatpush2.msra.mxu0 0.0
        %2524 = vmatprep.subr.mxu0 0.0
        %2525 = vmatpush2.msra.mxu0 0.0
        %2526 = vmatprep.subr.mxu0 0.0
        %2527 = vmatpush2.msra.mxu0 0.0
        %2528 = vmatprep.subr.mxu0 0.0
        %2529 = vmatpush2.msra.mxu0 0.0
        %2530 = vmatprep.subr.mxu0 0.0
        %2531 = vmatpush2.msra.mxu0 0.0
        %2532 = vmatprep.subr.mxu0 0.0
        %2533 = vmatpush2.msra.mxu0 0.0
        %2534 = vmatprep.subr.mxu0 0.0
        %2535 = vmatpush2.msra.mxu0 0.0
        %2536 = vmatprep.subr.mxu0 0.0
        %2537 = vmatpush2.msra.mxu0 0.0
        %2538 = vmatprep.subr.mxu0 0.0
        %2539 = vmatpush2.msra.mxu0 0.0
        %2540 = vmatprep.subr.mxu0 0.0
        %2541 = vmatpush2.msra.mxu0 0.0
        %2542 = vmatprep.subr.mxu0 0.0
        %2543 = vmatpush2.msra.mxu0 0.0
        %2544 = vmatprep.subr.mxu0 0.0
        %2545 = vmatpush2.msra.mxu0 0.0
        %2546 = vmatprep.subr.mxu0 0.0
        %2547 = vmatpush2.msra.mxu0 0.0
        %2548 = vmatprep.subr.mxu0 0.0
        %2549 = vmatpush2.msra.mxu0 0.0
        %2550 = vmatprep.mubr.f32.mxu0 0.0
        %2551 = vmatmul.mubr.f32.gmra.mxu0 %v2484
        %v2552 = vpop.f32.mrf.mxu0
        %v2553 = vadd.f32 0.0, %v2552
        %v2554 = vpop.f32.mrf.mxu0
        %2555 = vdwg.mxu0
        %2556 = vrot.lane.b32.xlu0 %v1986, 96
        %v2557 = vpop.permute.xlu0 %2556
        %v2560 = vsel %vm808, %v2315, 0
        %2562 = vmatprep.subr.mxu0 0.0
        %2563 = vmatpush1.msra.mxu0 0.0
        %2564 = vmatprep.subr.mxu0 0.0
        %2565 = vmatpush1.msra.mxu0 0.0
        %2566 = vmatprep.subr.mxu0 0.0
        %2567 = vmatpush1.msra.mxu0 0.0
        %2568 = vmatprep.subr.mxu0 0.0
        %2569 = vmatpush1.msra.mxu0 0.0
        %2570 = vmatprep.subr.mxu0 0.0
        %2571 = vmatpush1.msra.mxu0 0.0
        %2572 = vmatprep.subr.mxu0 0.0
        %2573 = vmatpush1.msra.mxu0 0.0
        %2574 = vmatprep.subr.mxu0 0.0
        %2575 = vmatpush1.msra.mxu0 0.0
        %2576 = vmatprep.subr.mxu0 0.0
        %2577 = vmatpush1.msra.mxu0 0.0
        %2578 = vmatprep.subr.mxu0 0.0
        %2579 = vmatpush1.msra.mxu0 0.0
        %2580 = vmatprep.subr.mxu0 0.0
        %2581 = vmatpush1.msra.mxu0 0.0
        %2582 = vmatprep.subr.mxu0 0.0
        %2583 = vmatpush1.msra.mxu0 0.0
        %2584 = vmatprep.subr.mxu0 0.0
        %2585 = vmatpush1.msra.mxu0 0.0
        %2586 = vmatprep.subr.mxu0 0.0
        %2587 = vmatpush1.msra.mxu0 0.0
        %2588 = vmatprep.subr.mxu0 0.0
        %2589 = vmatpush1.msra.mxu0 0.0
        %2590 = vmatprep.subr.mxu0 0.0
        %2591 = vmatpush1.msra.mxu0 0.0
        %2592 = vmatprep.subr.mxu0 0.0
        %2593 = vmatpush1.msra.mxu0 %v2557
        %2594 = vmatprep.subr.mxu0 0.0
        %2595 = vmatpush2.msra.mxu0 0.0
        %2596 = vmatprep.subr.mxu0 0.0
        %2597 = vmatpush2.msra.mxu0 0.0
        %2598 = vmatprep.subr.mxu0 0.0
        %2599 = vmatpush2.msra.mxu0 0.0
        %2600 = vmatprep.subr.mxu0 0.0
        %2601 = vmatpush2.msra.mxu0 0.0
        %2602 = vmatprep.subr.mxu0 0.0
        %2603 = vmatpush2.msra.mxu0 0.0
        %2604 = vmatprep.subr.mxu0 0.0
        %2605 = vmatpush2.msra.mxu0 0.0
        %2606 = vmatprep.subr.mxu0 0.0
        %2607 = vmatpush2.msra.mxu0 0.0
        %2608 = vmatprep.subr.mxu0 0.0
        %2609 = vmatpush2.msra.mxu0 0.0
        %2610 = vmatprep.subr.mxu0 0.0
        %2611 = vmatpush2.msra.mxu0 0.0
        %2612 = vmatprep.subr.mxu0 0.0
        %2613 = vmatpush2.msra.mxu0 0.0
        %2614 = vmatprep.subr.mxu0 0.0
        %2615 = vmatpush2.msra.mxu0 0.0
        %2616 = vmatprep.subr.mxu0 0.0
        %2617 = vmatpush2.msra.mxu0 0.0
        %2618 = vmatprep.subr.mxu0 0.0
        %2619 = vmatpush2.msra.mxu0 0.0
        %2620 = vmatprep.subr.mxu0 0.0
        %2621 = vmatpush2.msra.mxu0 0.0
        %2622 = vmatprep.subr.mxu0 0.0
        %2623 = vmatpush2.msra.mxu0 0.0
        %2624 = vmatprep.subr.mxu0 0.0
        %2625 = vmatpush2.msra.mxu0 0.0
        %2626 = vmatprep.mubr.f32.mxu0 0.0
        %2627 = vmatmul.mubr.f32.gmra.mxu0 %v2560
        %v2628 = vpop.f32.mrf.mxu0
        %v2629 = vadd.f32 0.0, %v2628
        %v2630 = vpop.f32.mrf.mxu0
        %2631 = vdwg.mxu0
        %v2632 = vrcp.pop %v2318
        %v2633 = vrcp.pop %v2321
        %v2634 = vrcp.pop %v2324
        %v2635 = vrcp.pop %v2327
        %v2636 = vmul.f32 %v2401, %v2632
        %v2637 = vmul.f32 %v2477, %v2633
        %v2638 = vmul.f32 %v2553, %v2634
        %v2639 = vmul.f32 %v2629, %v2635
        %v2641 = vsel %vm808, %v2636, 0
        %2643 = vmatprep.subr.mxu0 0.0
        %2644 = vmatpush1.msra.mxu0 0.0
        %2645 = vmatprep.subr.mxu0 0.0
        %2646 = vmatpush1.msra.mxu0 0.0
        %2647 = vmatprep.subr.mxu0 0.0
        %2648 = vmatpush1.msra.mxu0 0.0
        %2649 = vmatprep.subr.mxu0 0.0
        %2650 = vmatpush1.msra.mxu0 0.0
        %2651 = vmatprep.subr.mxu0 0.0
        %2652 = vmatpush1.msra.mxu0 0.0
        %2653 = vmatprep.subr.mxu0 0.0
        %2654 = vmatpush1.msra.mxu0 0.0
        %2655 = vmatprep.subr.mxu0 0.0
        %2656 = vmatpush1.msra.mxu0 0.0
        %2657 = vmatprep.subr.mxu0 0.0
        %2658 = vmatpush1.msra.mxu0 0.0
        %2659 = vmatprep.subr.mxu0 0.0
        %2660 = vmatpush1.msra.mxu0 0.0
        %2661 = vmatprep.subr.mxu0 0.0
        %2662 = vmatpush1.msra.mxu0 0.0
        %2663 = vmatprep.subr.mxu0 0.0
        %2664 = vmatpush1.msra.mxu0 0.0
        %2665 = vmatprep.subr.mxu0 0.0
        %2666 = vmatpush1.msra.mxu0 0.0
        %2667 = vmatprep.subr.mxu0 0.0
        %2668 = vmatpush1.msra.mxu0 0.0
        %2669 = vmatprep.subr.mxu0 0.0
        %2670 = vmatpush1.msra.mxu0 0.0
        %2671 = vmatprep.subr.mxu0 0.0
        %2672 = vmatpush1.msra.mxu0 0.0
        %2673 = vmatprep.subr.mxu0 0.0
        %2674 = vmatpush1.msra.mxu0 %v1987
        %2675 = vmatprep.subr.mxu0 0.0
        %2676 = vmatpush2.msra.mxu0 0.0
        %2677 = vmatprep.subr.mxu0 0.0
        %2678 = vmatpush2.msra.mxu0 0.0
        %2679 = vmatprep.subr.mxu0 0.0
        %2680 = vmatpush2.msra.mxu0 0.0
        %2681 = vmatprep.subr.mxu0 0.0
        %2682 = vmatpush2.msra.mxu0 0.0
        %2683 = vmatprep.subr.mxu0 0.0
        %2684 = vmatpush2.msra.mxu0 0.0
        %2685 = vmatprep.subr.mxu0 0.0
        %2686 = vmatpush2.msra.mxu0 0.0
        %2687 = vmatprep.subr.mxu0 0.0
        %2688 = vmatpush2.msra.mxu0 0.0
        %2689 = vmatprep.subr.mxu0 0.0
        %2690 = vmatpush2.msra.mxu0 0.0
        %2691 = vmatprep.subr.mxu0 0.0
        %2692 = vmatpush2.msra.mxu0 0.0
        %2693 = vmatprep.subr.mxu0 0.0
        %2694 = vmatpush2.msra.mxu0 0.0
        %2695 = vmatprep.subr.mxu0 0.0
        %2696 = vmatpush2.msra.mxu0 0.0
        %2697 = vmatprep.subr.mxu0 0.0
        %2698 = vmatpush2.msra.mxu0 0.0
        %2699 = vmatprep.subr.mxu0 0.0
        %2700 = vmatpush2.msra.mxu0 0.0
        %2701 = vmatprep.subr.mxu0 0.0
        %2702 = vmatpush2.msra.mxu0 0.0
        %2703 = vmatprep.subr.mxu0 0.0
        %2704 = vmatpush2.msra.mxu0 0.0
        %2705 = vmatprep.subr.mxu0 0.0
        %2706 = vmatpush2.msra.mxu0 0.0
        %2707 = vmatprep.mubr.f32.mxu0 0.0
        %2708 = vmatmul.mubr.f32.gmra.mxu0 %v2641
        %v2709 = vpop.f32.mrf.mxu0
        %v2710 = vadd.f32 0.0, %v2709
        %v2711 = vpop.f32.mrf.mxu0
        %2712 = vdwg.mxu0
        %v2714 = vsel %vm808, %v2637, 0
        %2716 = vmatprep.subr.mxu0 0.0
        %2717 = vmatpush1.msra.mxu0 0.0
        %2718 = vmatprep.subr.mxu0 0.0
        %2719 = vmatpush1.msra.mxu0 0.0
        %2720 = vmatprep.subr.mxu0 0.0
        %2721 = vmatpush1.msra.mxu0 0.0
        %2722 = vmatprep.subr.mxu0 0.0
        %2723 = vmatpush1.msra.mxu0 0.0
        %2724 = vmatprep.subr.mxu0 0.0
        %2725 = vmatpush1.msra.mxu0 0.0
        %2726 = vmatprep.subr.mxu0 0.0
        %2727 = vmatpush1.msra.mxu0 0.0
        %2728 = vmatprep.subr.mxu0 0.0
        %2729 = vmatpush1.msra.mxu0 0.0
        %2730 = vmatprep.subr.mxu0 0.0
        %2731 = vmatpush1.msra.mxu0 0.0
        %2732 = vmatprep.subr.mxu0 0.0
        %2733 = vmatpush1.msra.mxu0 0.0
        %2734 = vmatprep.subr.mxu0 0.0
        %2735 = vmatpush1.msra.mxu0 0.0
        %2736 = vmatprep.subr.mxu0 0.0
        %2737 = vmatpush1.msra.mxu0 0.0
        %2738 = vmatprep.subr.mxu0 0.0
        %2739 = vmatpush1.msra.mxu0 0.0
        %2740 = vmatprep.subr.mxu0 0.0
        %2741 = vmatpush1.msra.mxu0 0.0
        %2742 = vmatprep.subr.mxu0 0.0
        %2743 = vmatpush1.msra.mxu0 0.0
        %2744 = vmatprep.subr.mxu0 0.0
        %2745 = vmatpush1.msra.mxu0 0.0
        %2746 = vmatprep.subr.mxu0 0.0
        %2747 = vmatpush1.msra.mxu0 %v1988
        %2748 = vmatprep.subr.mxu0 0.0
        %2749 = vmatpush2.msra.mxu0 0.0
        %2750 = vmatprep.subr.mxu0 0.0
        %2751 = vmatpush2.msra.mxu0 0.0
        %2752 = vmatprep.subr.mxu0 0.0
        %2753 = vmatpush2.msra.mxu0 0.0
        %2754 = vmatprep.subr.mxu0 0.0
        %2755 = vmatpush2.msra.mxu0 0.0
        %2756 = vmatprep.subr.mxu0 0.0
        %2757 = vmatpush2.msra.mxu0 0.0
        %2758 = vmatprep.subr.mxu0 0.0
        %2759 = vmatpush2.msra.mxu0 0.0
        %2760 = vmatprep.subr.mxu0 0.0
        %2761 = vmatpush2.msra.mxu0 0.0
        %2762 = vmatprep.subr.mxu0 0.0
        %2763 = vmatpush2.msra.mxu0 0.0
        %2764 = vmatprep.subr.mxu0 0.0
        %2765 = vmatpush2.msra.mxu0 0.0
        %2766 = vmatprep.subr.mxu0 0.0
        %2767 = vmatpush2.msra.mxu0 0.0
        %2768 = vmatprep.subr.mxu0 0.0
        %2769 = vmatpush2.msra.mxu0 0.0
        %2770 = vmatprep.subr.mxu0 0.0
        %2771 = vmatpush2.msra.mxu0 0.0
        %2772 = vmatprep.subr.mxu0 0.0
        %2773 = vmatpush2.msra.mxu0 0.0
        %2774 = vmatprep.subr.mxu0 0.0
        %2775 = vmatpush2.msra.mxu0 0.0
        %2776 = vmatprep.subr.mxu0 0.0
        %2777 = vmatpush2.msra.mxu0 0.0
        %2778 = vmatprep.subr.mxu0 0.0
        %2779 = vmatpush2.msra.mxu0 0.0
        %2780 = vmatprep.mubr.f32.mxu0 0.0
        %2781 = vmatmul.mubr.f32.gmra.mxu0 %v2714
        %v2782 = vpop.f32.mrf.mxu0
        %v2783 = vadd.f32 0.0, %v2782
        %v2784 = vpop.f32.mrf.mxu0
        %2785 = vdwg.mxu0
        %v2787 = vsel %vm808, %v2638, 0
        %2789 = vmatprep.subr.mxu0 0.0
        %2790 = vmatpush1.msra.mxu0 0.0
        %2791 = vmatprep.subr.mxu0 0.0
        %2792 = vmatpush1.msra.mxu0 0.0
        %2793 = vmatprep.subr.mxu0 0.0
        %2794 = vmatpush1.msra.mxu0 0.0
        %2795 = vmatprep.subr.mxu0 0.0
        %2796 = vmatpush1.msra.mxu0 0.0
        %2797 = vmatprep.subr.mxu0 0.0
        %2798 = vmatpush1.msra.mxu0 0.0
        %2799 = vmatprep.subr.mxu0 0.0
        %2800 = vmatpush1.msra.mxu0 0.0
        %2801 = vmatprep.subr.mxu0 0.0
        %2802 = vmatpush1.msra.mxu0 0.0
        %2803 = vmatprep.subr.mxu0 0.0
        %2804 = vmatpush1.msra.mxu0 0.0
        %2805 = vmatprep.subr.mxu0 0.0
        %2806 = vmatpush1.msra.mxu0 0.0
        %2807 = vmatprep.subr.mxu0 0.0
        %2808 = vmatpush1.msra.mxu0 0.0
        %2809 = vmatprep.subr.mxu0 0.0
        %2810 = vmatpush1.msra.mxu0 0.0
        %2811 = vmatprep.subr.mxu0 0.0
        %2812 = vmatpush1.msra.mxu0 0.0
        %2813 = vmatprep.subr.mxu0 0.0
        %2814 = vmatpush1.msra.mxu0 0.0
        %2815 = vmatprep.subr.mxu0 0.0
        %2816 = vmatpush1.msra.mxu0 0.0
        %2817 = vmatprep.subr.mxu0 0.0
        %2818 = vmatpush1.msra.mxu0 0.0
        %2819 = vmatprep.subr.mxu0 0.0
        %2820 = vmatpush1.msra.mxu0 %v1989
        %2821 = vmatprep.subr.mxu0 0.0
        %2822 = vmatpush2.msra.mxu0 0.0
        %2823 = vmatprep.subr.mxu0 0.0
        %2824 = vmatpush2.msra.mxu0 0.0
        %2825 = vmatprep.subr.mxu0 0.0
        %2826 = vmatpush2.msra.mxu0 0.0
        %2827 = vmatprep.subr.mxu0 0.0
        %2828 = vmatpush2.msra.mxu0 0.0
        %2829 = vmatprep.subr.mxu0 0.0
        %2830 = vmatpush2.msra.mxu0 0.0
        %2831 = vmatprep.subr.mxu0 0.0
        %2832 = vmatpush2.msra.mxu0 0.0
        %2833 = vmatprep.subr.mxu0 0.0
        %2834 = vmatpush2.msra.mxu0 0.0
        %2835 = vmatprep.subr.mxu0 0.0
        %2836 = vmatpush2.msra.mxu0 0.0
        %2837 = vmatprep.subr.mxu0 0.0
        %2838 = vmatpush2.msra.mxu0 0.0
        %2839 = vmatprep.subr.mxu0 0.0
        %2840 = vmatpush2.msra.mxu0 0.0
        %2841 = vmatprep.subr.mxu0 0.0
        %2842 = vmatpush2.msra.mxu0 0.0
        %2843 = vmatprep.subr.mxu0 0.0
        %2844 = vmatpush2.msra.mxu0 0.0
        %2845 = vmatprep.subr.mxu0 0.0
        %2846 = vmatpush2.msra.mxu0 0.0
        %2847 = vmatprep.subr.mxu0 0.0
        %2848 = vmatpush2.msra.mxu0 0.0
        %2849 = vmatprep.subr.mxu0 0.0
        %2850 = vmatpush2.msra.mxu0 0.0
        %2851 = vmatprep.subr.mxu0 0.0
        %2852 = vmatpush2.msra.mxu0 0.0
        %2853 = vmatprep.mubr.f32.mxu0 0.0
        %2854 = vmatmul.mubr.f32.gmra.mxu0 %v2787
        %v2855 = vpop.f32.mrf.mxu0
        %v2856 = vadd.f32 0.0, %v2855
        %v2857 = vpop.f32.mrf.mxu0
        %2858 = vdwg.mxu0
        %v2860 = vsel %vm808, %v2639, 0
        %2862 = vmatprep.subr.mxu0 0.0
        %2863 = vmatpush1.msra.mxu0 0.0
        %2864 = vmatprep.subr.mxu0 0.0
        %2865 = vmatpush1.msra.mxu0 0.0
        %2866 = vmatprep.subr.mxu0 0.0
        %2867 = vmatpush1.msra.mxu0 0.0
        %2868 = vmatprep.subr.mxu0 0.0
        %2869 = vmatpush1.msra.mxu0 0.0
        %2870 = vmatprep.subr.mxu0 0.0
        %2871 = vmatpush1.msra.mxu0 0.0
        %2872 = vmatprep.subr.mxu0 0.0
        %2873 = vmatpush1.msra.mxu0 0.0
        %2874 = vmatprep.subr.mxu0 0.0
        %2875 = vmatpush1.msra.mxu0 0.0
        %2876 = vmatprep.subr.mxu0 0.0
        %2877 = vmatpush1.msra.mxu0 0.0
        %2878 = vmatprep.subr.mxu0 0.0
        %2879 = vmatpush1.msra.mxu0 0.0
        %2880 = vmatprep.subr.mxu0 0.0
        %2881 = vmatpush1.msra.mxu0 0.0
        %2882 = vmatprep.subr.mxu0 0.0
        %2883 = vmatpush1.msra.mxu0 0.0
        %2884 = vmatprep.subr.mxu0 0.0
        %2885 = vmatpush1.msra.mxu0 0.0
        %2886 = vmatprep.subr.mxu0 0.0
        %2887 = vmatpush1.msra.mxu0 0.0
        %2888 = vmatprep.subr.mxu0 0.0
        %2889 = vmatpush1.msra.mxu0 0.0
        %2890 = vmatprep.subr.mxu0 0.0
        %2891 = vmatpush1.msra.mxu0 0.0
        %2892 = vmatprep.subr.mxu0 0.0
        %2893 = vmatpush1.msra.mxu0 %v1990
        %2894 = vmatprep.subr.mxu0 0.0
        %2895 = vmatpush2.msra.mxu0 0.0
        %2896 = vmatprep.subr.mxu0 0.0
        %2897 = vmatpush2.msra.mxu0 0.0
        %2898 = vmatprep.subr.mxu0 0.0
        %2899 = vmatpush2.msra.mxu0 0.0
        %2900 = vmatprep.subr.mxu0 0.0
        %2901 = vmatpush2.msra.mxu0 0.0
        %2902 = vmatprep.subr.mxu0 0.0
        %2903 = vmatpush2.msra.mxu0 0.0
        %2904 = vmatprep.subr.mxu0 0.0
        %2905 = vmatpush2.msra.mxu0 0.0
        %2906 = vmatprep.subr.mxu0 0.0
        %2907 = vmatpush2.msra.mxu0 0.0
        %2908 = vmatprep.subr.mxu0 0.0
        %2909 = vmatpush2.msra.mxu0 0.0
        %2910 = vmatprep.subr.mxu0 0.0
        %2911 = vmatpush2.msra.mxu0 0.0
        %2912 = vmatprep.subr.mxu0 0.0
        %2913 = vmatpush2.msra.mxu0 0.0
        %2914 = vmatprep.subr.mxu0 0.0
        %2915 = vmatpush2.msra.mxu0 0.0
        %2916 = vmatprep.subr.mxu0 0.0
        %2917 = vmatpush2.msra.mxu0 0.0
        %2918 = vmatprep.subr.mxu0 0.0
        %2919 = vmatpush2.msra.mxu0 0.0
        %2920 = vmatprep.subr.mxu0 0.0
        %2921 = vmatpush2.msra.mxu0 0.0
        %2922 = vmatprep.subr.mxu0 0.0
        %2923 = vmatpush2.msra.mxu0 0.0
        %2924 = vmatprep.subr.mxu0 0.0
        %2925 = vmatpush2.msra.mxu0 0.0
        %2926 = vmatprep.mubr.f32.mxu0 0.0
        %2927 = vmatmul.mubr.f32.gmra.mxu0 %v2860
        %v2928 = vpop.f32.mrf.mxu0
        %v2929 = vadd.f32 0.0, %v2928
        %v2930 = vpop.f32.mrf.mxu0
        %2931 = vdwg.mxu0
        %v2932 = vsel %vm719, %v2710, 0.0
        %v2933 = vsel %vm719, %v2783, 0.0
        %v2934 = vadd.f32 %v2932, %v2933
        %v2935 = vsel %vm719, %v2856, 0.0
        %v2936 = vadd.f32 %v2934, %v2935
        %v2937 = vsel %vm719, %v2929, 0.0
        %v2938 = vadd.f32 %v2936, %v2937
        %v2940 = vlaneseq
        %v2941 = vshrl.u32 %v2940, 7
        %v2942 = vsub.s32 0, %v2941
        %v2943 = vrot.slane %v1991, %v2942
        %v2945 = vadd.f32 %v2938, %v2943
        %v2946 = vadd.f32 %v1804, %v2945
        %v2947 = vsel %vm719, %v2946, 0.0
        %2948 = vadd.xlane.f32.xlu0 %v2947
        %v2949 = vpop.xlane.xlu0 %2948
        %v2950 = vmul.f32 %v2949, %v1780
        %v2951 = vsub.f32 %v2946, %v2950
        %v2952 = vmul.f32 %v2951, %v2951
        %v2953 = vsel %vm719, %v2952, 0.0
        %2954 = vadd.xlane.f32.xlu0 %v2953
        %v2955 = vpop.xlane.xlu0 %2954
        %v2956 = vmul.f32 %v2955, %v1780
        %v2957 = vadd.f32 %v2956, 1e-05
        %v2958 = vrsqrt.pop %v2957
        %v2959 = vmul.f32 %v2951, %v2958
        %v2960 = vmul.f32 %v2959, %v1795
        %v2961 = vadd.f32 %v2960, %v1802
        %v2962 = vld [vmem:[#allocation8] sm:$0xff]
        %v2963 = vld [vmem:[#allocation8 + $0x8] sm:$0xff]
        %v2964 = vld [vmem:[#allocation8 + $0x10] sm:$0xff]
        %v2965 = vld [vmem:[#allocation8 + $0x18] sm:$0xff]
        %v2966 = vld [vmem:[%s14] sm:$0x1]
        %v2968 = vlaneseq
        %v2969 = vshrl.u32 %v2968, 7
        %v2970 = vsub.s32 0, %v2969
        %v2971 = vrot.slane %v2966, %v2970
        %v2974 = vsel %vm719, %v2961, 0
        %2976 = vmatprep.subr.mxu0 0.0
        %2977 = vmatpush1.msra.mxu0 0.0
        %2978 = vmatprep.subr.mxu0 0.0
        %2979 = vmatpush1.msra.mxu0 0.0
        %2980 = vmatprep.subr.mxu0 0.0
        %2981 = vmatpush1.msra.mxu0 0.0
        %2982 = vmatprep.subr.mxu0 0.0
        %2983 = vmatpush1.msra.mxu0 0.0
        %2984 = vmatprep.subr.mxu0 0.0
        %2985 = vmatpush1.msra.mxu0 0.0
        %2986 = vmatprep.subr.mxu0 0.0
        %2987 = vmatpush1.msra.mxu0 0.0
        %2988 = vmatprep.subr.mxu0 0.0
        %2989 = vmatpush1.msra.mxu0 0.0
        %2990 = vmatprep.subr.mxu0 0.0
        %2991 = vmatpush1.msra.mxu0 0.0
        %2992 = vmatprep.subr.mxu0 0.0
        %2993 = vmatpush1.msra.mxu0 0.0
        %2994 = vmatprep.subr.mxu0 0.0
        %2995 = vmatpush1.msra.mxu0 0.0
        %2996 = vmatprep.subr.mxu0 0.0
        %2997 = vmatpush1.msra.mxu0 0.0
        %2998 = vmatprep.subr.mxu0 0.0
        %2999 = vmatpush1.msra.mxu0 0.0
        %3000 = vmatprep.subr.mxu0 0.0
        %3001 = vmatpush1.msra.mxu0 %v2965
        %3002 = vmatprep.subr.mxu0 0.0
        %3003 = vmatpush1.msra.mxu0 %v2964
        %3004 = vmatprep.subr.mxu0 0.0
        %3005 = vmatpush1.msra.mxu0 %v2963
        %3006 = vmatprep.subr.mxu0 0.0
        %3007 = vmatpush1.msra.mxu0 %v2962
        %3008 = vmatprep.subr.mxu0 0.0
        %3009 = vmatpush2.msra.mxu0 0.0
        %3010 = vmatprep.subr.mxu0 0.0
        %3011 = vmatpush2.msra.mxu0 0.0
        %3012 = vmatprep.subr.mxu0 0.0
        %3013 = vmatpush2.msra.mxu0 0.0
        %3014 = vmatprep.subr.mxu0 0.0
        %3015 = vmatpush2.msra.mxu0 0.0
        %3016 = vmatprep.subr.mxu0 0.0
        %3017 = vmatpush2.msra.mxu0 0.0
        %3018 = vmatprep.subr.mxu0 0.0
        %3019 = vmatpush2.msra.mxu0 0.0
        %3020 = vmatprep.subr.mxu0 0.0
        %3021 = vmatpush2.msra.mxu0 0.0
        %3022 = vmatprep.subr.mxu0 0.0
        %3023 = vmatpush2.msra.mxu0 0.0
        %3024 = vmatprep.subr.mxu0 0.0
        %3025 = vmatpush2.msra.mxu0 0.0
        %3026 = vmatprep.subr.mxu0 0.0
        %3027 = vmatpush2.msra.mxu0 0.0
        %3028 = vmatprep.subr.mxu0 0.0
        %3029 = vmatpush2.msra.mxu0 0.0
        %3030 = vmatprep.subr.mxu0 0.0
        %3031 = vmatpush2.msra.mxu0 0.0
        %3032 = vmatprep.subr.mxu0 0.0
        %3033 = vmatpush2.msra.mxu0 0.0
        %3034 = vmatprep.subr.mxu0 0.0
        %3035 = vmatpush2.msra.mxu0 0.0
        %3036 = vmatprep.subr.mxu0 0.0
        %3037 = vmatpush2.msra.mxu0 0.0
        %3038 = vmatprep.subr.mxu0 0.0
        %3039 = vmatpush2.msra.mxu0 0.0
        %3040 = vmatprep.mubr.f32.mxu0 0.0
        %3041 = vmatmul.mubr.f32.gmra.mxu0 %v2974
        %v3042 = vpop.f32.mrf.mxu0
        %v3043 = vadd.f32 %v2971, %v3042
        %v3044 = vpop.f32.mrf.mxu0
        %3045 = vdwg.mxu0
        %v3046 = vmax.f32 %v3043, 0.0
        %v3047 = vld [vmem:[%s15] sm:$0xff]
        %v3048 = vld [vmem:[%s15 + $0x8] sm:$0xff]
        %v3049 = vld [vmem:[%s15 + $0x10] sm:$0xff]
        %v3050 = vld [vmem:[%s15 + $0x18] sm:$0xff]
        %v3051 = vld [vmem:[%s15 + $0x20] sm:$0xff]
        %v3052 = vld [vmem:[%s15 + $0x28] sm:$0xff]
        %v3053 = vld [vmem:[%s15 + $0x30] sm:$0xff]
        %v3054 = vld [vmem:[%s15 + $0x38] sm:$0xff]
        %v3055 = vld [vmem:[%s15 + $0x40] sm:$0xff]
        %v3056 = vld [vmem:[%s15 + $0x48] sm:$0xff]
        %v3057 = vld [vmem:[%s15 + $0x50] sm:$0xff]
        %v3058 = vld [vmem:[%s15 + $0x58] sm:$0xff]
        %v3059 = vld [vmem:[%s15 + $0x60] sm:$0xff]
        %v3060 = vld [vmem:[%s15 + $0x68] sm:$0xff]
        %v3061 = vld [vmem:[%s15 + $0x70] sm:$0xff]
        %v3062 = vld [vmem:[%s15 + $0x78] sm:$0xff]
        %v3063 = vld [vmem:[%s16] sm:$0x1]
        %v3065 = vlaneseq
        %v3066 = vshrl.u32 %v3065, 7
        %v3067 = vsub.s32 0, %v3066
        %v3068 = vrot.slane %v3063, %v3067
        %3070 = vmatprep.subr.mxu0 0.0
        %3071 = vmatpush1.msra.mxu0 %v3062
        %3072 = vmatprep.subr.mxu0 0.0
        %3073 = vmatpush1.msra.mxu0 %v3061
        %3074 = vmatprep.subr.mxu0 0.0
        %3075 = vmatpush1.msra.mxu0 %v3060
        %3076 = vmatprep.subr.mxu0 0.0
        %3077 = vmatpush1.msra.mxu0 %v3059
        %3078 = vmatprep.subr.mxu0 0.0
        %3079 = vmatpush1.msra.mxu0 %v3058
        %3080 = vmatprep.subr.mxu0 0.0
        %3081 = vmatpush1.msra.mxu0 %v3057
        %3082 = vmatprep.subr.mxu0 0.0
        %3083 = vmatpush1.msra.mxu0 %v3056
        %3084 = vmatprep.subr.mxu0 0.0
        %3085 = vmatpush1.msra.mxu0 %v3055
        %3086 = vmatprep.subr.mxu0 0.0
        %3087 = vmatpush1.msra.mxu0 %v3054
        %3088 = vmatprep.subr.mxu0 0.0
        %3089 = vmatpush1.msra.mxu0 %v3053
        %3090 = vmatprep.subr.mxu0 0.0
        %3091 = vmatpush1.msra.mxu0 %v3052
        %3092 = vmatprep.subr.mxu0 0.0
        %3093 = vmatpush1.msra.mxu0 %v3051
        %3094 = vmatprep.subr.mxu0 0.0
        %3095 = vmatpush1.msra.mxu0 %v3050
        %3096 = vmatprep.subr.mxu0 0.0
        %3097 = vmatpush1.msra.mxu0 %v3049
        %3098 = vmatprep.subr.mxu0 0.0
        %3099 = vmatpush1.msra.mxu0 %v3048
        %3100 = vmatprep.subr.mxu0 0.0
        %3101 = vmatpush1.msra.mxu0 %v3047
        %3102 = vmatprep.subr.mxu0 0.0
        %3103 = vmatpush2.msra.mxu0 0.0
        %3104 = vmatprep.subr.mxu0 0.0
        %3105 = vmatpush2.msra.mxu0 0.0
        %3106 = vmatprep.subr.mxu0 0.0
        %3107 = vmatpush2.msra.mxu0 0.0
        %3108 = vmatprep.subr.mxu0 0.0
        %3109 = vmatpush2.msra.mxu0 0.0
        %3110 = vmatprep.subr.mxu0 0.0
        %3111 = vmatpush2.msra.mxu0 0.0
        %3112 = vmatprep.subr.mxu0 0.0
        %3113 = vmatpush2.msra.mxu0 0.0
        %3114 = vmatprep.subr.mxu0 0.0
        %3115 = vmatpush2.msra.mxu0 0.0
        %3116 = vmatprep.subr.mxu0 0.0
        %3117 = vmatpush2.msra.mxu0 0.0
        %3118 = vmatprep.subr.mxu0 0.0
        %3119 = vmatpush2.msra.mxu0 0.0
        %3120 = vmatprep.subr.mxu0 0.0
        %3121 = vmatpush2.msra.mxu0 0.0
        %3122 = vmatprep.subr.mxu0 0.0
        %3123 = vmatpush2.msra.mxu0 0.0
        %3124 = vmatprep.subr.mxu0 0.0
        %3125 = vmatpush2.msra.mxu0 0.0
        %3126 = vmatprep.subr.mxu0 0.0
        %3127 = vmatpush2.msra.mxu0 0.0
        %3128 = vmatprep.subr.mxu0 0.0
        %3129 = vmatpush2.msra.mxu0 0.0
        %3130 = vmatprep.subr.mxu0 0.0
        %3131 = vmatpush2.msra.mxu0 0.0
        %3132 = vmatprep.subr.mxu0 0.0
        %3133 = vmatpush2.msra.mxu0 0.0
        %3134 = vmatprep.mubr.f32.mxu0 0.0
        %3135 = vmatmul.mubr.f32.gmra.mxu0 %v3046
        %v3136 = vpop.f32.mrf.mxu0
        %v3137 = vadd.f32 %v3068, %v3136
        %v3138 = vpop.f32.mrf.mxu0
        %3139 = vdwg.mxu0
        %v3140 = vadd.f32 %v2961, %v3137
        %v3141 = vsel %vm719, %v3140, 0.0
        %3142 = vadd.xlane.f32.xlu0 %v3141
        %v3143 = vpop.xlane.xlu0 %3142
        %v3144 = vmul.f32 %v3143, %v1780
        %v3145 = vsub.f32 %v3140, %v3144
        %v3146 = vmul.f32 %v3145, %v3145
        %v3147 = vsel %vm719, %v3146, 0.0
        %3148 = vadd.xlane.f32.xlu0 %v3147
        %v3149 = vpop.xlane.xlu0 %3148
        %v3150 = vmul.f32 %v3149, %v1780
        %v3151 = vadd.f32 %v3150, 1e-05
        %v3152 = vrsqrt.pop %v3151
        %v3153 = vmul.f32 %v3145, %v3152
        %v3154 = vmul.f32 %v3153, %v1795
        %v3155 = vadd.f32 %v3154, %v1802
        %3156 = vst.msk [vmem:[%s703] sm:$0xff] %vm719, %v3155
        %s3157 = sand.u32 %s462, 1
        %s3158 = scalar_lea.sflag [#allocation4], %s3157
        %s3159 = sand.u32 %s462, 1
        %s3160 = smul.addr %s3159, 8
        %s3161 = scalar_lea.vmem [#allocation10], %s3160
        // Predicated region
        $region113: #{tpu_custom_call.1} parent=95 // pred_check
          %p3162 = pneg %p472
        $region114: #{tpu_custom_call.1} parent=95 // pred_check_branch
          %3164 = sbr.rel (%p3162) target = $region116
        $region115: #{tpu_custom_call.1} parent=95 // pred_region
          %s3166 = ssub.s32 128, 128
          %3167 = vsyncadd %s3158, %s3166
          %s3168 = smul.addr %s40, 128
          %s3169 = scalar_lea.hbm %s19, %s3168
          %s3171 = sshll.u32 %s3161, 4
          %s3172 = int_to_ptr.vmem [resolvable:$true] %s3171
          %3174 = dma.vmem_to_hbm [thread:$0]  %s3172, 128, %s3169, %s3158
        $region116: #{tpu_custom_call.1} parent=95 // pred_fallthru
          _
      $region96: #{tpu_custom_call.1} parent=5 // pred_fallthru
        _
      %p3175 = scmp.le.s32.totalorder 2, %s35
      // Predicated region
      $region117: #{tpu_custom_call.1} parent=5 // pred_check
        %p3176 = pneg %p3175
      $region118: #{tpu_custom_call.1} parent=5 // pred_check_branch
        %3178 = sbr.rel (%p3176) target = $region120
      $region119: #{tpu_custom_call.1} parent=5 // pred_region
        %s3179 = ssub.s32 %s35, 2
        // Predicated region
        $region121: #{tpu_custom_call.1} parent=119 // pred_check
          %p3180 = pneg %p478
        $region122: #{tpu_custom_call.1} parent=119 // pred_check_branch
          %3182 = sbr.rel (%p3180) target = $region124
        $region123: #{tpu_custom_call.1} parent=119 // pred_region
          %s3183 = sand.u32 %s463, 1
          %s3184 = scalar_lea.sflag [#allocation4], %s3183
          %s3185 = sand.u32 %s463, 1
          %s3186 = smul.addr %s3185, 8
          %s3187 = scalar_lea.vmem [#allocation10], %s3186
          %3188 = dma.done %s3184, 128
        $region124: #{tpu_custom_call.1} parent=119 // pred_fallthru
          _
      $region120: #{tpu_custom_call.1} parent=5 // pred_fallthru
        _
    $region6: #{tpu_custom_call.1} parent=1 // loop_footer
      %s39 = sadd.s32 1, %s35
    $region7: #{tpu_custom_call.1} parent=1 // loop_footer_branch
      %34 = sbr.rel target = $region3
    $region8: #{tpu_custom_call.1} parent=1 // loop_exit
      _
    %3189 = vsyncpa [#allocation3], 1
    %s3190 = scalar_lea.sflag [#allocation3], 1
    %3191 = vsyncpa %s3190, 1
    %3192 = vsyncpa [#allocation6], 1
    %s3193 = scalar_lea.sflag [#allocation6], 1
    %3194 = vsyncpa %s3193, 1
    %3195 = vsyncpa [#allocation9], 1
    %3196 = vsyncpa [#allocation4], 1
    %s3197 = scalar_lea.sflag [#allocation4], 1
    %3198 = vsyncpa %s3197, 1

</llo_original>
